<compile_context>
chip_gen: v5e
topology: v5e:2x2
jax: 0.10.0
libtpu: 0.0.40
codegen_flags: <defaults>
</compile_context>

<pallas_src>
import jax
import jax.numpy as jnp
from jax import lax
from jax.experimental import pallas as pl
from jax.experimental.pallas import tpu as pltpu

PREC = lax.Precision.HIGHEST  # host-side weight folding / pure-JAX reference only


def cru_pallas(x_nchw, wsq1, wsq2, wg_torch, bg, wpwc1, wpwc2,
               up_ch, group_size, images_per_block=1):
    N, C, H, W = x_nchw.shape
    P = H * W
    csu = wsq1.shape[1]
    low_ch = C - up_ch
    gks = wg_torch.shape[-1]
    n_taps = gks * gks
    assert gks == 3, "kernel written for 3x3 GWC (padding = gks//2 = 1)"

    NB = images_per_block
    assert N % NB == 0, "images_per_block must divide the batch"
    grid = (N // NB,)

    # Flat halo on the pixel (lane) axis: >= W+1 zeros each side, lane-aligned so the
    # center tap load is 128-aligned.  Handles the dy image-boundary zero padding exactly.
    halo = 128 * ((W + 1 + 127) // 128)
    pp = P + 2 * halo

    # ---------------- one-time weight folding (host, tiny) ----------------
    # Dense per-tap GWC weight [9, C, csu] (zeros across groups); tap t = ky*3 + kx.
    cout_g = C // group_size
    cin_g = csu // group_size
    w1 = jnp.zeros((n_taps, C, csu), jnp.float32)
    for g in range(group_size):
        blk = wg_torch[g * cout_g:(g + 1) * cout_g]           # [cout_g, cin_g, 3, 3]
        blk = jnp.transpose(blk, (2, 3, 0, 1)).reshape(n_taps, cout_g, cin_g)
        w1 = w1.at[:, g * cout_g:(g + 1) * cout_g,
                   g * cin_g:(g + 1) * cin_g].set(blk)
    w1 = w1.at[n_taps // 2].add(wpwc1.T)                      # fold PWC1 into center tap
    # Y2 = [PWC2 o squeeze2 ; squeeze2] applied to raw low  ->  [C, low_ch]
    w2 = jnp.concatenate(
        [jnp.matmul(wpwc2.T, wsq2.T, precision=PREC), wsq2.T], axis=0)
    b2d = bg.reshape(C, 1).astype(jnp.float32)

    # dx row-wrap masks over output pixels (lane axis), built once on host: [2, P]
    xs = jnp.arange(P, dtype=jnp.int32) % W
    edge_masks = jnp.stack([(xs != 0), (xs != W - 1)], axis=0).astype(jnp.float32)

    # ---------------- activation glue (channels-major, pixels on lanes) ----------------
    up = x_nchw[:, :up_ch].reshape(N, up_ch, P)
    low = x_nchw[:, up_ch:].reshape(N, low_ch, P).astype(jnp.float32)
    up_sq = jnp.einsum('cd,ncp->ndp', wsq1, up, precision=PREC)     # squeeze1 (1x1, no bias)
    up_sq = jnp.pad(up_sq, ((0, 0), (0, 0), (halo, halo)))          # flat zero halo

    taps = [(dy, dx) for dy in (-1, 0, 1) for dx in (-1, 0, 1)]     # t = (dy+1)*3 + (dx+1)
    inv_p = 1.0 / P

    def kernel(up_ref, low_ref, mask_ref, w1_ref, w2_ref, b_ref, out_ref):
        # up_ref  : [NB, csu, pp]   flat-padded squeezed up path
        # low_ref : [NB, low_ch, P] raw low channels
        # mask_ref: [2, P]          row-wrap masks (row 0: dx=-1, row 1: dx=+1)
        # w1_ref  : [9, C, csu]     per-tap dense GWC (+PWC1 on center tap)
        # w2_ref  : [C, low_ch]     folded (PWC2 o squeeze2 ; squeeze2)
        # b_ref   : [C, 1]          GWC bias
        # out_ref : [NB, C, P]
        mask_l = mask_ref[0:1, :]         # zero where output column x == 0   (dx = -1)
        mask_r = mask_ref[1:2, :]         # zero where output column x == W-1 (dx = +1)
        w2v = w2_ref[...]
        bv = b_ref[...]

        for img in range(NB):
            low_img = low_ref[img]                                   # [low_ch, P]

            def masked_tap(t):
                dy, dx = taps[t]
                v = up_ref[img, :, pl.ds(halo + dy * W + dx, P)]     # [csu, P]
                if dx == -1:
                    v = v * mask_l
                elif dx == 1:
                    v = v * mask_r
                return v

            # ---- phase 1: pooled softmax logits from input means (linearity) ----
            low_mean = jnp.sum(low_img, axis=1, keepdims=True) * inv_p          # [low_ch,1]
            m2 = jnp.dot(w2v, low_mean, preferred_element_type=jnp.float32)     # [C,1]
            m1 = bv
            for t in range(n_taps):
                tmean = jnp.sum(masked_tap(t), axis=1, keepdims=True) * inv_p   # [csu,1]
                m1 = m1 + jnp.dot(w1_ref[t], tmean,
                                  preferred_element_type=jnp.float32)

            # softmax over the 2C pooled channels -> per-branch scales (all on [C,1])
            mx = jnp.maximum(jnp.max(m1, axis=0, keepdims=True),
                             jnp.max(m2, axis=0, keepdims=True))                # [1,1]
            e1 = jnp.exp(m1 - mx)
            e2 = jnp.exp(m2 - mx)
            inv = pl.reciprocal(jnp.sum(e1, axis=0, keepdims=True)
                                + jnp.sum(e2, axis=0, keepdims=True),
                                approx=True)                                    # [1,1]
            s1 = e1 * inv                                                       # [C,1]
            s2 = e2 * inv

            # ---- phase 2: pre-scaled accumulation, single lane-dense store ----
            acc = jnp.dot(w2v * s2, low_img,
                          preferred_element_type=jnp.float32) + bv * s1         # [C,P]
            for t in range(n_taps):
                acc = acc + jnp.dot(w1_ref[t] * s1, masked_tap(t),
                                    preferred_element_type=jnp.float32)
            out_ref[img] = acc.astype(out_ref.dtype)

    # VMEM budget: double-buffered blocks + resident weights/masks + live values, padded
    # to (8,128) tiles, with headroom; clamped to [32 MiB, 64 MiB] (v7x-safe).
    def tiled_bytes(r, c):
        return ((r + 7) // 8) * 8 * ((c + 127) // 128) * 128 * 4
    block_bytes = NB * (tiled_bytes(csu, pp) + tiled_bytes(low_ch, P) + tiled_bytes(C, P))
    const_bytes = (n_taps * tiled_bytes(C, csu) + tiled_bytes(C, low_ch)
                   + tiled_bytes(C, 1) + tiled_bytes(2, P))
    live_bytes = 2 * tiled_bytes(C, P) + 2 * tiled_bytes(csu, P)
    need = 2 * block_bytes + 2 * const_bytes + live_bytes + (2 << 20)
    vmem_limit = int(min(max(need, 32 << 20), 64 << 20))

    out = pl.pallas_call(
        kernel,
        out_shape=jax.ShapeDtypeStruct((N, C, P), x_nchw.dtype),
        grid=grid,
        in_specs=[
            pl.BlockSpec((NB, csu, pp), lambda i: (i, 0, 0)),
            pl.BlockSpec((NB, low_ch, P), lambda i: (i, 0, 0)),
            pl.BlockSpec((2, P), lambda i: (0, 0)),
            pl.BlockSpec((n_taps, C, csu), lambda i: (0, 0, 0)),
            pl.BlockSpec((C, low_ch), lambda i: (0, 0)),
            pl.BlockSpec((C, 1), lambda i: (0, 0)),
        ],
        out_specs=pl.BlockSpec((NB, C, P), lambda i: (i, 0, 0)),
        compiler_params=pltpu.CompilerParams(
            dimension_semantics=("parallel",),
            vmem_limit_bytes=vmem_limit),
    )(up_sq, low, edge_masks, w1, w2, b2d)

    return out.reshape(N, C, H, W)


def cru_reference(x_nchw, wsq1, wsq2, wg_torch, bg, wpwc1, wpwc2,
                  up_ch, group_size):
    """Pure-JAX reference mirroring the PyTorch forward (NHWC internally)."""
    N, C, H, W = x_nchw.shape
    x = jnp.transpose(x_nchw, (0, 2, 3, 1))
    up, low = x[..., :up_ch], x[..., up_ch:]
    up_sq = jnp.einsum('nhwc,cd->nhwd', up, wsq1, precision=PREC)
    low_sq = jnp.einsum('nhwc,cd->nhwd', low, wsq2, precision=PREC)
    wg_hwio = jnp.transpose(wg_torch, (2, 3, 1, 0))            # [3,3,Csu/g,C]
    gwc = lax.conv_general_dilated(
        up_sq, wg_hwio, (1, 1), 'SAME',
        dimension_numbers=('NHWC', 'HWIO', 'NHWC'),
        feature_group_count=group_size, precision=PREC) + bg
    y1 = gwc + jnp.einsum('nhwc,cd->nhwd', up_sq, wpwc1, precision=PREC)
    y2 = jnp.concatenate(
        [jnp.einsum('nhwc,cd->nhwd', low_sq, wpwc2, precision=PREC), low_sq], axis=-1)
    out = jnp.concatenate([y1, y2], axis=-1)                   # [N,H,W,2C]
    pooled = jnp.mean(out, axis=(1, 2), keepdims=True)
    out = jax.nn.softmax(pooled, axis=-1) * out
    o1, o2 = out[..., :C], out[..., C:]
    return jnp.transpose(o1 + o2, (0, 3, 1, 2))


if __name__ == "__main__":
    # module config
    op_channel, alpha, squeeze_radio, group_size, gks = 8, 0.5, 2, 2, 3
    up_ch = int(alpha * op_channel)            # 4
    low_ch = op_channel - up_ch                # 4
    csu = up_ch // squeeze_radio               # 2
    csl = low_ch // squeeze_radio              # 2
    N, H, W = 2, 16, 16

    key = jax.random.PRNGKey(0)
    ks = jax.random.split(key, 7)
    # 1x1 conv weights stored directly in matmul layout [in, out]
    wsq1 = jax.random.normal(ks[0], (up_ch, csu), jnp.float32) * 0.2
    wsq2 = jax.random.normal(ks[1], (low_ch, csl), jnp.float32) * 0.2
    # GWC weight in PyTorch layout [C_out, C_in/groups, kH, kW] (+ bias, default bias=True)
    wg_torch = jax.random.normal(ks[2], (op_channel, csu // group_size, gks, gks),
                                 jnp.float32) * 0.2
    bg = jax.random.normal(ks[3], (op_channel,), jnp.float32) * 0.1
    wpwc1 = jax.random.normal(ks[4], (csu, op_channel), jnp.float32) * 0.2
    wpwc2 = jax.random.normal(ks[5], (csl, op_channel - csl), jnp.float32) * 0.2
    x = jax.random.normal(ks[6], (N, op_channel, H, W), jnp.float32)

    cru_fn = jax.jit(cru_pallas, static_argnums=(7, 8, 9))
    out = cru_fn(x, wsq1, wsq2, wg_torch, bg, wpwc1, wpwc2, up_ch, group_size, 2)
    out = jax.block_until_ready(out)

    ref = cru_reference(x, wsq1, wsq2, wg_torch, bg, wpwc1, wpwc2, up_ch, group_size)
    ref = jax.block_until_ready(ref)

    max_err = float(jnp.max(jnp.abs(out - ref)))
    assert out.shape == (N, op_channel, H, W), out.shape
    assert max_err < 2e-3, f"mismatch vs reference, max abs err = {max_err}"
    print("KERNEL_OK")
</pallas_src>

<mosaic_0001>
module attributes {stable_mosaic.version = 11 : i64} {
  func.func @kernel(%arg0: i32, %arg1: memref<2x2x512xf32, #tpu.memory_space<vmem>>, %arg2: memref<2x4x256xf32, #tpu.memory_space<vmem>>, %arg3: memref<2x256xf32, #tpu.memory_space<vmem>>, %arg4: memref<9x8x2xf32, #tpu.memory_space<vmem>>, %arg5: memref<8x4xf32, #tpu.memory_space<vmem>>, %arg6: memref<8x1xf32, #tpu.memory_space<vmem>>, %arg7: memref<2x8x256xf32, #tpu.memory_space<vmem>>) attributes {dimension_semantics = [#tpu.dimension_semantics<parallel>], iteration_bounds = array<i64: 1>, scalar_prefetch = 0 : i64, scratch_operands = 0 : i64, tpu.core_type = #tpu.core_type<tc>, window_params = [{transform_indices = @transform_0, window_bounds = array<i64: 2, 2, 512>}, {transform_indices = @transform_1, window_bounds = array<i64: 2, 4, 256>}, {pipeline_mode = #tpu.pipeline_mode<synchronous>, transform_indices = @transform_2, window_bounds = array<i64: 2, 256>}, {pipeline_mode = #tpu.pipeline_mode<synchronous>, transform_indices = @transform_3, window_bounds = array<i64: 9, 8, 2>}, {pipeline_mode = #tpu.pipeline_mode<synchronous>, transform_indices = @transform_4, window_bounds = array<i64: 8, 4>}, {pipeline_mode = #tpu.pipeline_mode<synchronous>, transform_indices = @transform_5, window_bounds = array<i64: 8, 1>}, {transform_indices = @transform_6, window_bounds = array<i64: 2, 8, 256>}]} {
    %c0 = arith.constant 0 : index
    %c0_0 = arith.constant 0 : index
    %0 = vector.load %arg3[%c0, %c0_0] : memref<2x256xf32, #tpu.memory_space<vmem>>, vector<1x256xf32>
    %c1 = arith.constant 1 : index
    %c0_1 = arith.constant 0 : index
    %1 = vector.load %arg3[%c1, %c0_1] : memref<2x256xf32, #tpu.memory_space<vmem>>, vector<1x256xf32>
    %c0_2 = arith.constant 0 : index
    %c0_3 = arith.constant 0 : index
    %2 = vector.load %arg5[%c0_2, %c0_3] : memref<8x4xf32, #tpu.memory_space<vmem>>, vector<8x4xf32>
    %c0_4 = arith.constant 0 : index
    %c0_5 = arith.constant 0 : index
    %3 = vector.load %arg6[%c0_4, %c0_5] : memref<8x1xf32, #tpu.memory_space<vmem>>, vector<8x1xf32>
    %c0_6 = arith.constant 0 : index
    %c0_7 = arith.constant 0 : index
    %c0_8 = arith.constant 0 : index
    %4 = vector.load %arg2[%c0_6, %c0_7, %c0_8] : memref<2x4x256xf32, #tpu.memory_space<vmem>>, vector<1x4x256xf32>
    %5 = vector.shape_cast %4 : vector<1x4x256xf32> to vector<4x256xf32>
    %cst = arith.constant dense<0.000000e+00> : vector<4xf32>
    %6 = vector.multi_reduction <add>, %5, %cst [1] : vector<4x256xf32> to vector<4xf32>
    %7 = vector.shape_cast %6 : vector<4xf32> to vector<4x1xf32>
    %cst_9 = arith.constant 3.906250e-03 : f32
    %8 = vector.broadcast %cst_9 : f32 to vector<4x1xf32>
    %9 = arith.mulf %7, %8 : vector<4x1xf32>
    %cst_10 = arith.constant dense<0.000000e+00> : vector<8x1xf32>
    %10 = tpu.matmul %2, %9, %cst_10 {dimension_numbers = #tpu.dot_dimension_numbers<[1], [0], [0], [1], [0, 0, 1, 1], [], []>} : vector<8x4xf32>, vector<4x1xf32>, vector<8x1xf32> -> vector<8x1xf32>
    %c0_11 = arith.constant 0 : index
    %c0_12 = arith.constant 0 : index
    %c111 = arith.constant 111 : index
    %11 = vector.load %arg1[%c0_11, %c0_12, %c111] : memref<2x2x512xf32, #tpu.memory_space<vmem>>, vector<1x2x256xf32>
    %12 = vector.shape_cast %11 : vector<1x2x256xf32> to vector<2x256xf32>
    %13 = vector.broadcast %0 : vector<1x256xf32> to vector<2x256xf32>
    %14 = arith.mulf %12, %13 : vector<2x256xf32>
    %cst_13 = arith.constant dense<0.000000e+00> : vector<2xf32>
    %15 = vector.multi_reduction <add>, %14, %cst_13 [1] : vector<2x256xf32> to vector<2xf32>
    %16 = vector.shape_cast %15 : vector<2xf32> to vector<2x1xf32>
    %cst_14 = arith.constant 3.906250e-03 : f32
    %17 = vector.broadcast %cst_14 : f32 to vector<2x1xf32>
    %18 = arith.mulf %16, %17 : vector<2x1xf32>
    %c0_15 = arith.constant 0 : index
    %c0_16 = arith.constant 0 : index
    %c0_17 = arith.constant 0 : index
    %19 = vector.load %arg4[%c0_15, %c0_16, %c0_17] : memref<9x8x2xf32, #tpu.memory_space<vmem>>, vector<1x8x2xf32>
    %20 = vector.shape_cast %19 : vector<1x8x2xf32> to vector<8x2xf32>
    %cst_18 = arith.constant dense<0.000000e+00> : vector<8x1xf32>
    %21 = tpu.matmul %20, %18, %cst_18 {dimension_numbers = #tpu.dot_dimension_numbers<[1], [0], [0], [1], [0, 0, 1, 1], [], []>} : vector<8x2xf32>, vector<2x1xf32>, vector<8x1xf32> -> vector<8x1xf32>
    %22 = arith.addf %3, %21 : vector<8x1xf32>
    %c0_19 = arith.constant 0 : index
    %c0_20 = arith.constant 0 : index
    %c112 = arith.constant 112 : index
    %23 = vector.load %arg1[%c0_19, %c0_20, %c112] : memref<2x2x512xf32, #tpu.memory_space<vmem>>, vector<1x2x256xf32>
    %24 = vector.shape_cast %23 : vector<1x2x256xf32> to vector<2x256xf32>
    %cst_21 = arith.constant dense<0.000000e+00> : vector<2xf32>
    %25 = vector.multi_reduction <add>, %24, %cst_21 [1] : vector<2x256xf32> to vector<2xf32>
    %26 = vector.shape_cast %25 : vector<2xf32> to vector<2x1xf32>
    %cst_22 = arith.constant 3.906250e-03 : f32
    %27 = vector.broadcast %cst_22 : f32 to vector<2x1xf32>
    %28 = arith.mulf %26, %27 : vector<2x1xf32>
    %c1_23 = arith.constant 1 : index
    %c0_24 = arith.constant 0 : index
    %c0_25 = arith.constant 0 : index
    %29 = vector.load %arg4[%c1_23, %c0_24, %c0_25] : memref<9x8x2xf32, #tpu.memory_space<vmem>>, vector<1x8x2xf32>
    %30 = vector.shape_cast %29 : vector<1x8x2xf32> to vector<8x2xf32>
    %cst_26 = arith.constant dense<0.000000e+00> : vector<8x1xf32>
    %31 = tpu.matmul %30, %28, %cst_26 {dimension_numbers = #tpu.dot_dimension_numbers<[1], [0], [0], [1], [0, 0, 1, 1], [], []>} : vector<8x2xf32>, vector<2x1xf32>, vector<8x1xf32> -> vector<8x1xf32>
    %32 = arith.addf %22, %31 : vector<8x1xf32>
    %c0_27 = arith.constant 0 : index
    %c0_28 = arith.constant 0 : index
    %c113 = arith.constant 113 : index
    %33 = vector.load %arg1[%c0_27, %c0_28, %c113] : memref<2x2x512xf32, #tpu.memory_space<vmem>>, vector<1x2x256xf32>
    %34 = vector.shape_cast %33 : vector<1x2x256xf32> to vector<2x256xf32>
    %35 = vector.broadcast %1 : vector<1x256xf32> to vector<2x256xf32>
    %36 = arith.mulf %34, %35 : vector<2x256xf32>
    %cst_29 = arith.constant dense<0.000000e+00> : vector<2xf32>
    %37 = vector.multi_reduction <add>, %36, %cst_29 [1] : vector<2x256xf32> to vector<2xf32>
    %38 = vector.shape_cast %37 : vector<2xf32> to vector<2x1xf32>
    %cst_30 = arith.constant 3.906250e-03 : f32
    %39 = vector.broadcast %cst_30 : f32 to vector<2x1xf32>
    %40 = arith.mulf %38, %39 : vector<2x1xf32>
    %c2 = arith.constant 2 : index
    %c0_31 = arith.constant 0 : index
    %c0_32 = arith.constant 0 : index
    %41 = vector.load %arg4[%c2, %c0_31, %c0_32] : memref<9x8x2xf32, #tpu.memory_space<vmem>>, vector<1x8x2xf32>
    %42 = vector.shape_cast %41 : vector<1x8x2xf32> to vector<8x2xf32>
    %cst_33 = arith.constant dense<0.000000e+00> : vector<8x1xf32>
    %43 = tpu.matmul %42, %40, %cst_33 {dimension_numbers = #tpu.dot_dimension_numbers<[1], [0], [0], [1], [0, 0, 1, 1], [], []>} : vector<8x2xf32>, vector<2x1xf32>, vector<8x1xf32> -> vector<8x1xf32>
    %44 = arith.addf %32, %43 : vector<8x1xf32>
    %c0_34 = arith.constant 0 : index
    %c0_35 = arith.constant 0 : index
    %c127 = arith.constant 127 : index
    %45 = vector.load %arg1[%c0_34, %c0_35, %c127] : memref<2x2x512xf32, #tpu.memory_space<vmem>>, vector<1x2x256xf32>
    %46 = vector.shape_cast %45 : vector<1x2x256xf32> to vector<2x256xf32>
    %47 = vector.broadcast %0 : vector<1x256xf32> to vector<2x256xf32>
    %48 = arith.mulf %46, %47 : vector<2x256xf32>
    %cst_36 = arith.constant dense<0.000000e+00> : vector<2xf32>
    %49 = vector.multi_reduction <add>, %48, %cst_36 [1] : vector<2x256xf32> to vector<2xf32>
    %50 = vector.shape_cast %49 : vector<2xf32> to vector<2x1xf32>
    %cst_37 = arith.constant 3.906250e-03 : f32
    %51 = vector.broadcast %cst_37 : f32 to vector<2x1xf32>
    %52 = arith.mulf %50, %51 : vector<2x1xf32>
    %c3 = arith.constant 3 : index
    %c0_38 = arith.constant 0 : index
    %c0_39 = arith.constant 0 : index
    %53 = vector.load %arg4[%c3, %c0_38, %c0_39] : memref<9x8x2xf32, #tpu.memory_space<vmem>>, vector<1x8x2xf32>
    %54 = vector.shape_cast %53 : vector<1x8x2xf32> to vector<8x2xf32>
    %cst_40 = arith.constant dense<0.000000e+00> : vector<8x1xf32>
    %55 = tpu.matmul %54, %52, %cst_40 {dimension_numbers = #tpu.dot_dimension_numbers<[1], [0], [0], [1], [0, 0, 1, 1], [], []>} : vector<8x2xf32>, vector<2x1xf32>, vector<8x1xf32> -> vector<8x1xf32>
    %56 = arith.addf %44, %55 : vector<8x1xf32>
    %c0_41 = arith.constant 0 : index
    %c0_42 = arith.constant 0 : index
    %c128 = arith.constant 128 : index
    %57 = vector.load %arg1[%c0_41, %c0_42, %c128] : memref<2x2x512xf32, #tpu.memory_space<vmem>>, vector<1x2x256xf32>
    %58 = vector.shape_cast %57 : vector<1x2x256xf32> to vector<2x256xf32>
    %cst_43 = arith.constant dense<0.000000e+00> : vector<2xf32>
    %59 = vector.multi_reduction <add>, %58, %cst_43 [1] : vector<2x256xf32> to vector<2xf32>
    %60 = vector.shape_cast %59 : vector<2xf32> to vector<2x1xf32>
    %cst_44 = arith.constant 3.906250e-03 : f32
    %61 = vector.broadcast %cst_44 : f32 to vector<2x1xf32>
    %62 = arith.mulf %60, %61 : vector<2x1xf32>
    %c4 = arith.constant 4 : index
    %c0_45 = arith.constant 0 : index
    %c0_46 = arith.constant 0 : index
    %63 = vector.load %arg4[%c4, %c0_45, %c0_46] : memref<9x8x2xf32, #tpu.memory_space<vmem>>, vector<1x8x2xf32>
    %64 = vector.shape_cast %63 : vector<1x8x2xf32> to vector<8x2xf32>
    %cst_47 = arith.constant dense<0.000000e+00> : vector<8x1xf32>
    %65 = tpu.matmul %64, %62, %cst_47 {dimension_numbers = #tpu.dot_dimension_numbers<[1], [0], [0], [1], [0, 0, 1, 1], [], []>} : vector<8x2xf32>, vector<2x1xf32>, vector<8x1xf32> -> vector<8x1xf32>
    %66 = arith.addf %56, %65 : vector<8x1xf32>
    %c0_48 = arith.constant 0 : index
    %c0_49 = arith.constant 0 : index
    %c129 = arith.constant 129 : index
    %67 = vector.load %arg1[%c0_48, %c0_49, %c129] : memref<2x2x512xf32, #tpu.memory_space<vmem>>, vector<1x2x256xf32>
    %68 = vector.shape_cast %67 : vector<1x2x256xf32> to vector<2x256xf32>
    %69 = vector.broadcast %1 : vector<1x256xf32> to vector<2x256xf32>
    %70 = arith.mulf %68, %69 : vector<2x256xf32>
    %cst_50 = arith.constant dense<0.000000e+00> : vector<2xf32>
    %71 = vector.multi_reduction <add>, %70, %cst_50 [1] : vector<2x256xf32> to vector<2xf32>
    %72 = vector.shape_cast %71 : vector<2xf32> to vector<2x1xf32>
    %cst_51 = arith.constant 3.906250e-03 : f32
    %73 = vector.broadcast %cst_51 : f32 to vector<2x1xf32>
    %74 = arith.mulf %72, %73 : vector<2x1xf32>
    %c5 = arith.constant 5 : index
    %c0_52 = arith.constant 0 : index
    %c0_53 = arith.constant 0 : index
    %75 = vector.load %arg4[%c5, %c0_52, %c0_53] : memref<9x8x2xf32, #tpu.memory_space<vmem>>, vector<1x8x2xf32>
    %76 = vector.shape_cast %75 : vector<1x8x2xf32> to vector<8x2xf32>
    %cst_54 = arith.constant dense<0.000000e+00> : vector<8x1xf32>
    %77 = tpu.matmul %76, %74, %cst_54 {dimension_numbers = #tpu.dot_dimension_numbers<[1], [0], [0], [1], [0, 0, 1, 1], [], []>} : vector<8x2xf32>, vector<2x1xf32>, vector<8x1xf32> -> vector<8x1xf32>
    %78 = arith.addf %66, %77 : vector<8x1xf32>
    %c0_55 = arith.constant 0 : index
    %c0_56 = arith.constant 0 : index
    %c143 = arith.constant 143 : index
    %79 = vector.load %arg1[%c0_55, %c0_56, %c143] : memref<2x2x512xf32, #tpu.memory_space<vmem>>, vector<1x2x256xf32>
    %80 = vector.shape_cast %79 : vector<1x2x256xf32> to vector<2x256xf32>
    %81 = vector.broadcast %0 : vector<1x256xf32> to vector<2x256xf32>
    %82 = arith.mulf %80, %81 : vector<2x256xf32>
    %cst_57 = arith.constant dense<0.000000e+00> : vector<2xf32>
    %83 = vector.multi_reduction <add>, %82, %cst_57 [1] : vector<2x256xf32> to vector<2xf32>
    %84 = vector.shape_cast %83 : vector<2xf32> to vector<2x1xf32>
    %cst_58 = arith.constant 3.906250e-03 : f32
    %85 = vector.broadcast %cst_58 : f32 to vector<2x1xf32>
    %86 = arith.mulf %84, %85 : vector<2x1xf32>
    %c6 = arith.constant 6 : index
    %c0_59 = arith.constant 0 : index
    %c0_60 = arith.constant 0 : index
    %87 = vector.load %arg4[%c6, %c0_59, %c0_60] : memref<9x8x2xf32, #tpu.memory_space<vmem>>, vector<1x8x2xf32>
    %88 = vector.shape_cast %87 : vector<1x8x2xf32> to vector<8x2xf32>
    %cst_61 = arith.constant dense<0.000000e+00> : vector<8x1xf32>
    %89 = tpu.matmul %88, %86, %cst_61 {dimension_numbers = #tpu.dot_dimension_numbers<[1], [0], [0], [1], [0, 0, 1, 1], [], []>} : vector<8x2xf32>, vector<2x1xf32>, vector<8x1xf32> -> vector<8x1xf32>
    %90 = arith.addf %78, %89 : vector<8x1xf32>
    %c0_62 = arith.constant 0 : index
    %c0_63 = arith.constant 0 : index
    %c144 = arith.constant 144 : index
    %91 = vector.load %arg1[%c0_62, %c0_63, %c144] : memref<2x2x512xf32, #tpu.memory_space<vmem>>, vector<1x2x256xf32>
    %92 = vector.shape_cast %91 : vector<1x2x256xf32> to vector<2x256xf32>
    %cst_64 = arith.constant dense<0.000000e+00> : vector<2xf32>
    %93 = vector.multi_reduction <add>, %92, %cst_64 [1] : vector<2x256xf32> to vector<2xf32>
    %94 = vector.shape_cast %93 : vector<2xf32> to vector<2x1xf32>
    %cst_65 = arith.constant 3.906250e-03 : f32
    %95 = vector.broadcast %cst_65 : f32 to vector<2x1xf32>
    %96 = arith.mulf %94, %95 : vector<2x1xf32>
    %c7 = arith.constant 7 : index
    %c0_66 = arith.constant 0 : index
    %c0_67 = arith.constant 0 : index
    %97 = vector.load %arg4[%c7, %c0_66, %c0_67] : memref<9x8x2xf32, #tpu.memory_space<vmem>>, vector<1x8x2xf32>
    %98 = vector.shape_cast %97 : vector<1x8x2xf32> to vector<8x2xf32>
    %cst_68 = arith.constant dense<0.000000e+00> : vector<8x1xf32>
    %99 = tpu.matmul %98, %96, %cst_68 {dimension_numbers = #tpu.dot_dimension_numbers<[1], [0], [0], [1], [0, 0, 1, 1], [], []>} : vector<8x2xf32>, vector<2x1xf32>, vector<8x1xf32> -> vector<8x1xf32>
    %100 = arith.addf %90, %99 : vector<8x1xf32>
    %c0_69 = arith.constant 0 : index
    %c0_70 = arith.constant 0 : index
    %c145 = arith.constant 145 : index
    %101 = vector.load %arg1[%c0_69, %c0_70, %c145] : memref<2x2x512xf32, #tpu.memory_space<vmem>>, vector<1x2x256xf32>
    %102 = vector.shape_cast %101 : vector<1x2x256xf32> to vector<2x256xf32>
    %103 = vector.broadcast %1 : vector<1x256xf32> to vector<2x256xf32>
    %104 = arith.mulf %102, %103 : vector<2x256xf32>
    %cst_71 = arith.constant dense<0.000000e+00> : vector<2xf32>
    %105 = vector.multi_reduction <add>, %104, %cst_71 [1] : vector<2x256xf32> to vector<2xf32>
    %106 = vector.shape_cast %105 : vector<2xf32> to vector<2x1xf32>
    %cst_72 = arith.constant 3.906250e-03 : f32
    %107 = vector.broadcast %cst_72 : f32 to vector<2x1xf32>
    %108 = arith.mulf %106, %107 : vector<2x1xf32>
    %c8 = arith.constant 8 : index
    %c0_73 = arith.constant 0 : index
    %c0_74 = arith.constant 0 : index
    %109 = vector.load %arg4[%c8, %c0_73, %c0_74] : memref<9x8x2xf32, #tpu.memory_space<vmem>>, vector<1x8x2xf32>
    %110 = vector.shape_cast %109 : vector<1x8x2xf32> to vector<8x2xf32>
    %cst_75 = arith.constant dense<0.000000e+00> : vector<8x1xf32>
    %111 = tpu.matmul %110, %108, %cst_75 {dimension_numbers = #tpu.dot_dimension_numbers<[1], [0], [0], [1], [0, 0, 1, 1], [], []>} : vector<8x2xf32>, vector<2x1xf32>, vector<8x1xf32> -> vector<8x1xf32>
    %112 = arith.addf %100, %111 : vector<8x1xf32>
    %cst_76 = arith.constant dense<0xFF800000> : vector<1xf32>
    %113 = vector.multi_reduction <maximumf>, %112, %cst_76 [0] : vector<8x1xf32> to vector<1xf32>
    %114 = vector.shape_cast %113 : vector<1xf32> to vector<1x1xf32>
    %cst_77 = arith.constant dense<0xFF800000> : vector<1xf32>
    %115 = vector.multi_reduction <maximumf>, %10, %cst_77 [0] : vector<8x1xf32> to vector<1xf32>
    %116 = vector.shape_cast %115 : vector<1xf32> to vector<1x1xf32>
    %117 = arith.maximumf %114, %116 : vector<1x1xf32>
    %118 = vector.broadcast %117 : vector<1x1xf32> to vector<8x1xf32>
    %119 = arith.subf %112, %118 : vector<8x1xf32>
    %120 = math.exp %119 : vector<8x1xf32>
    %121 = vector.broadcast %117 : vector<1x1xf32> to vector<8x1xf32>
    %122 = arith.subf %10, %121 : vector<8x1xf32>
    %123 = math.exp %122 : vector<8x1xf32>
    %cst_78 = arith.constant dense<0.000000e+00> : vector<1xf32>
    %124 = vector.multi_reduction <add>, %120, %cst_78 [0] : vector<8x1xf32> to vector<1xf32>
    %125 = vector.shape_cast %124 : vector<1xf32> to vector<1x1xf32>
    %cst_79 = arith.constant dense<0.000000e+00> : vector<1xf32>
    %126 = vector.multi_reduction <add>, %123, %cst_79 [0] : vector<8x1xf32> to vector<1xf32>
    %127 = vector.shape_cast %126 : vector<1xf32> to vector<1x1xf32>
    %128 = arith.addf %125, %127 : vector<1x1xf32>
    %129 = tpu.reciprocal %128 {approx = true} : vector<1x1xf32> -> vector<1x1xf32>
    %130 = vector.broadcast %129 : vector<1x1xf32> to vector<8x1xf32>
    %131 = arith.mulf %120, %130 : vector<8x1xf32>
    %132 = vector.broadcast %129 : vector<1x1xf32> to vector<8x1xf32>
    %133 = arith.mulf %123, %132 : vector<8x1xf32>
    %134 = vector.broadcast %133 : vector<8x1xf32> to vector<8x4xf32>
    %135 = arith.mulf %2, %134 : vector<8x4xf32>
    %cst_80 = arith.constant dense<0.000000e+00> : vector<8x256xf32>
    %136 = tpu.matmul %135, %5, %cst_80 {dimension_numbers = #tpu.dot_dimension_numbers<[1], [0], [0], [1], [0, 0, 1, 1], [], []>} : vector<8x4xf32>, vector<4x256xf32>, vector<8x256xf32> -> vector<8x256xf32>
    %137 = arith.mulf %3, %131 : vector<8x1xf32>
    %138 = vector.broadcast %137 : vector<8x1xf32> to vector<8x256xf32>
    %139 = arith.addf %136, %138 : vector<8x256xf32>
    %c0_81 = arith.constant 0 : index
    %c0_82 = arith.constant 0 : index
    %c0_83 = arith.constant 0 : index
    %140 = vector.load %arg4[%c0_81, %c0_82, %c0_83] : memref<9x8x2xf32, #tpu.memory_space<vmem>>, vector<1x8x2xf32>
    %141 = vector.shape_cast %140 : vector<1x8x2xf32> to vector<8x2xf32>
    %142 = vector.broadcast %131 : vector<8x1xf32> to vector<8x2xf32>
    %143 = arith.mulf %141, %142 : vector<8x2xf32>
    %c0_84 = arith.constant 0 : index
    %c0_85 = arith.constant 0 : index
    %c111_86 = arith.constant 111 : index
    %144 = vector.load %arg1[%c0_84, %c0_85, %c111_86] : memref<2x2x512xf32, #tpu.memory_space<vmem>>, vector<1x2x256xf32>
    %145 = vector.shape_cast %144 : vector<1x2x256xf32> to vector<2x256xf32>
    %146 = vector.broadcast %0 : vector<1x256xf32> to vector<2x256xf32>
    %147 = arith.mulf %145, %146 : vector<2x256xf32>
    %cst_87 = arith.constant dense<0.000000e+00> : vector<8x256xf32>
    %148 = tpu.matmul %143, %147, %cst_87 {dimension_numbers = #tpu.dot_dimension_numbers<[1], [0], [0], [1], [0, 0, 1, 1], [], []>} : vector<8x2xf32>, vector<2x256xf32>, vector<8x256xf32> -> vector<8x256xf32>
    %149 = arith.addf %139, %148 : vector<8x256xf32>
    %c1_88 = arith.constant 1 : index
    %c0_89 = arith.constant 0 : index
    %c0_90 = arith.constant 0 : index
    %150 = vector.load %arg4[%c1_88, %c0_89, %c0_90] : memref<9x8x2xf32, #tpu.memory_space<vmem>>, vector<1x8x2xf32>
    %151 = vector.shape_cast %150 : vector<1x8x2xf32> to vector<8x2xf32>
    %152 = vector.broadcast %131 : vector<8x1xf32> to vector<8x2xf32>
    %153 = arith.mulf %151, %152 : vector<8x2xf32>
    %c0_91 = arith.constant 0 : index
    %c0_92 = arith.constant 0 : index
    %c112_93 = arith.constant 112 : index
    %154 = vector.load %arg1[%c0_91, %c0_92, %c112_93] : memref<2x2x512xf32, #tpu.memory_space<vmem>>, vector<1x2x256xf32>
    %155 = vector.shape_cast %154 : vector<1x2x256xf32> to vector<2x256xf32>
    %cst_94 = arith.constant dense<0.000000e+00> : vector<8x256xf32>
    %156 = tpu.matmul %153, %155, %cst_94 {dimension_numbers = #tpu.dot_dimension_numbers<[1], [0], [0], [1], [0, 0, 1, 1], [], []>} : vector<8x2xf32>, vector<2x256xf32>, vector<8x256xf32> -> vector<8x256xf32>
    %157 = arith.addf %149, %156 : vector<8x256xf32>
    %c2_95 = arith.constant 2 : index
    %c0_96 = arith.constant 0 : index
    %c0_97 = arith.constant 0 : index
    %158 = vector.load %arg4[%c2_95, %c0_96, %c0_97] : memref<9x8x2xf32, #tpu.memory_space<vmem>>, vector<1x8x2xf32>
    %159 = vector.shape_cast %158 : vector<1x8x2xf32> to vector<8x2xf32>
    %160 = vector.broadcast %131 : vector<8x1xf32> to vector<8x2xf32>
    %161 = arith.mulf %159, %160 : vector<8x2xf32>
    %c0_98 = arith.constant 0 : index
    %c0_99 = arith.constant 0 : index
    %c113_100 = arith.constant 113 : index
    %162 = vector.load %arg1[%c0_98, %c0_99, %c113_100] : memref<2x2x512xf32, #tpu.memory_space<vmem>>, vector<1x2x256xf32>
    %163 = vector.shape_cast %162 : vector<1x2x256xf32> to vector<2x256xf32>
    %164 = vector.broadcast %1 : vector<1x256xf32> to vector<2x256xf32>
    %165 = arith.mulf %163, %164 : vector<2x256xf32>
    %cst_101 = arith.constant dense<0.000000e+00> : vector<8x256xf32>
    %166 = tpu.matmul %161, %165, %cst_101 {dimension_numbers = #tpu.dot_dimension_numbers<[1], [0], [0], [1], [0, 0, 1, 1], [], []>} : vector<8x2xf32>, vector<2x256xf32>, vector<8x256xf32> -> vector<8x256xf32>
    %167 = arith.addf %157, %166 : vector<8x256xf32>
    %c3_102 = arith.constant 3 : index
    %c0_103 = arith.constant 0 : index
    %c0_104 = arith.constant 0 : index
    %168 = vector.load %arg4[%c3_102, %c0_103, %c0_104] : memref<9x8x2xf32, #tpu.memory_space<vmem>>, vector<1x8x2xf32>
    %169 = vector.shape_cast %168 : vector<1x8x2xf32> to vector<8x2xf32>
    %170 = vector.broadcast %131 : vector<8x1xf32> to vector<8x2xf32>
    %171 = arith.mulf %169, %170 : vector<8x2xf32>
    %c0_105 = arith.constant 0 : index
    %c0_106 = arith.constant 0 : index
    %c127_107 = arith.constant 127 : index
    %172 = vector.load %arg1[%c0_105, %c0_106, %c127_107] : memref<2x2x512xf32, #tpu.memory_space<vmem>>, vector<1x2x256xf32>
    %173 = vector.shape_cast %172 : vector<1x2x256xf32> to vector<2x256xf32>
    %174 = vector.broadcast %0 : vector<1x256xf32> to vector<2x256xf32>
    %175 = arith.mulf %173, %174 : vector<2x256xf32>
    %cst_108 = arith.constant dense<0.000000e+00> : vector<8x256xf32>
    %176 = tpu.matmul %171, %175, %cst_108 {dimension_numbers = #tpu.dot_dimension_numbers<[1], [0], [0], [1], [0, 0, 1, 1], [], []>} : vector<8x2xf32>, vector<2x256xf32>, vector<8x256xf32> -> vector<8x256xf32>
    %177 = arith.addf %167, %176 : vector<8x256xf32>
    %c4_109 = arith.constant 4 : index
    %c0_110 = arith.constant 0 : index
    %c0_111 = arith.constant 0 : index
    %178 = vector.load %arg4[%c4_109, %c0_110, %c0_111] : memref<9x8x2xf32, #tpu.memory_space<vmem>>, vector<1x8x2xf32>
    %179 = vector.shape_cast %178 : vector<1x8x2xf32> to vector<8x2xf32>
    %180 = vector.broadcast %131 : vector<8x1xf32> to vector<8x2xf32>
    %181 = arith.mulf %179, %180 : vector<8x2xf32>
    %c0_112 = arith.constant 0 : index
    %c0_113 = arith.constant 0 : index
    %c128_114 = arith.constant 128 : index
    %182 = vector.load %arg1[%c0_112, %c0_113, %c128_114] : memref<2x2x512xf32, #tpu.memory_space<vmem>>, vector<1x2x256xf32>
    %183 = vector.shape_cast %182 : vector<1x2x256xf32> to vector<2x256xf32>
    %cst_115 = arith.constant dense<0.000000e+00> : vector<8x256xf32>
    %184 = tpu.matmul %181, %183, %cst_115 {dimension_numbers = #tpu.dot_dimension_numbers<[1], [0], [0], [1], [0, 0, 1, 1], [], []>} : vector<8x2xf32>, vector<2x256xf32>, vector<8x256xf32> -> vector<8x256xf32>
    %185 = arith.addf %177, %184 : vector<8x256xf32>
    %c5_116 = arith.constant 5 : index
    %c0_117 = arith.constant 0 : index
    %c0_118 = arith.constant 0 : index
    %186 = vector.load %arg4[%c5_116, %c0_117, %c0_118] : memref<9x8x2xf32, #tpu.memory_space<vmem>>, vector<1x8x2xf32>
    %187 = vector.shape_cast %186 : vector<1x8x2xf32> to vector<8x2xf32>
    %188 = vector.broadcast %131 : vector<8x1xf32> to vector<8x2xf32>
    %189 = arith.mulf %187, %188 : vector<8x2xf32>
    %c0_119 = arith.constant 0 : index
    %c0_120 = arith.constant 0 : index
    %c129_121 = arith.constant 129 : index
    %190 = vector.load %arg1[%c0_119, %c0_120, %c129_121] : memref<2x2x512xf32, #tpu.memory_space<vmem>>, vector<1x2x256xf32>
    %191 = vector.shape_cast %190 : vector<1x2x256xf32> to vector<2x256xf32>
    %192 = vector.broadcast %1 : vector<1x256xf32> to vector<2x256xf32>
    %193 = arith.mulf %191, %192 : vector<2x256xf32>
    %cst_122 = arith.constant dense<0.000000e+00> : vector<8x256xf32>
    %194 = tpu.matmul %189, %193, %cst_122 {dimension_numbers = #tpu.dot_dimension_numbers<[1], [0], [0], [1], [0, 0, 1, 1], [], []>} : vector<8x2xf32>, vector<2x256xf32>, vector<8x256xf32> -> vector<8x256xf32>
    %195 = arith.addf %185, %194 : vector<8x256xf32>
    %c6_123 = arith.constant 6 : index
    %c0_124 = arith.constant 0 : index
    %c0_125 = arith.constant 0 : index
    %196 = vector.load %arg4[%c6_123, %c0_124, %c0_125] : memref<9x8x2xf32, #tpu.memory_space<vmem>>, vector<1x8x2xf32>
    %197 = vector.shape_cast %196 : vector<1x8x2xf32> to vector<8x2xf32>
    %198 = vector.broadcast %131 : vector<8x1xf32> to vector<8x2xf32>
    %199 = arith.mulf %197, %198 : vector<8x2xf32>
    %c0_126 = arith.constant 0 : index
    %c0_127 = arith.constant 0 : index
    %c143_128 = arith.constant 143 : index
    %200 = vector.load %arg1[%c0_126, %c0_127, %c143_128] : memref<2x2x512xf32, #tpu.memory_space<vmem>>, vector<1x2x256xf32>
    %201 = vector.shape_cast %200 : vector<1x2x256xf32> to vector<2x256xf32>
    %202 = vector.broadcast %0 : vector<1x256xf32> to vector<2x256xf32>
    %203 = arith.mulf %201, %202 : vector<2x256xf32>
    %cst_129 = arith.constant dense<0.000000e+00> : vector<8x256xf32>
    %204 = tpu.matmul %199, %203, %cst_129 {dimension_numbers = #tpu.dot_dimension_numbers<[1], [0], [0], [1], [0, 0, 1, 1], [], []>} : vector<8x2xf32>, vector<2x256xf32>, vector<8x256xf32> -> vector<8x256xf32>
    %205 = arith.addf %195, %204 : vector<8x256xf32>
    %c7_130 = arith.constant 7 : index
    %c0_131 = arith.constant 0 : index
    %c0_132 = arith.constant 0 : index
    %206 = vector.load %arg4[%c7_130, %c0_131, %c0_132] : memref<9x8x2xf32, #tpu.memory_space<vmem>>, vector<1x8x2xf32>
    %207 = vector.shape_cast %206 : vector<1x8x2xf32> to vector<8x2xf32>
    %208 = vector.broadcast %131 : vector<8x1xf32> to vector<8x2xf32>
    %209 = arith.mulf %207, %208 : vector<8x2xf32>
    %c0_133 = arith.constant 0 : index
    %c0_134 = arith.constant 0 : index
    %c144_135 = arith.constant 144 : index
    %210 = vector.load %arg1[%c0_133, %c0_134, %c144_135] : memref<2x2x512xf32, #tpu.memory_space<vmem>>, vector<1x2x256xf32>
    %211 = vector.shape_cast %210 : vector<1x2x256xf32> to vector<2x256xf32>
    %cst_136 = arith.constant dense<0.000000e+00> : vector<8x256xf32>
    %212 = tpu.matmul %209, %211, %cst_136 {dimension_numbers = #tpu.dot_dimension_numbers<[1], [0], [0], [1], [0, 0, 1, 1], [], []>} : vector<8x2xf32>, vector<2x256xf32>, vector<8x256xf32> -> vector<8x256xf32>
    %213 = arith.addf %205, %212 : vector<8x256xf32>
    %c8_137 = arith.constant 8 : index
    %c0_138 = arith.constant 0 : index
    %c0_139 = arith.constant 0 : index
    %214 = vector.load %arg4[%c8_137, %c0_138, %c0_139] : memref<9x8x2xf32, #tpu.memory_space<vmem>>, vector<1x8x2xf32>
    %215 = vector.shape_cast %214 : vector<1x8x2xf32> to vector<8x2xf32>
    %216 = vector.broadcast %131 : vector<8x1xf32> to vector<8x2xf32>
    %217 = arith.mulf %215, %216 : vector<8x2xf32>
    %c0_140 = arith.constant 0 : index
    %c0_141 = arith.constant 0 : index
    %c145_142 = arith.constant 145 : index
    %218 = vector.load %arg1[%c0_140, %c0_141, %c145_142] : memref<2x2x512xf32, #tpu.memory_space<vmem>>, vector<1x2x256xf32>
    %219 = vector.shape_cast %218 : vector<1x2x256xf32> to vector<2x256xf32>
    %220 = vector.broadcast %1 : vector<1x256xf32> to vector<2x256xf32>
    %221 = arith.mulf %219, %220 : vector<2x256xf32>
    %cst_143 = arith.constant dense<0.000000e+00> : vector<8x256xf32>
    %222 = tpu.matmul %217, %221, %cst_143 {dimension_numbers = #tpu.dot_dimension_numbers<[1], [0], [0], [1], [0, 0, 1, 1], [], []>} : vector<8x2xf32>, vector<2x256xf32>, vector<8x256xf32> -> vector<8x256xf32>
    %223 = arith.addf %213, %222 : vector<8x256xf32>
    %c0_144 = arith.constant 0 : index
    %c0_145 = arith.constant 0 : index
    %c0_146 = arith.constant 0 : index
    %224 = vector.load %arg7[%c0_144, %c0_145, %c0_146] : memref<2x8x256xf32, #tpu.memory_space<vmem>>, vector<1x8x256xf32>
    %225 = vector.shape_cast %224 : vector<1x8x256xf32> to vector<8x256xf32>
    %226 = vector.shape_cast %223 : vector<8x256xf32> to vector<1x8x256xf32>
    tpu.vector_store %arg7[%c0_144, %c0_145, %c0_146], %226 {strides = array<i32>} : memref<2x8x256xf32, #tpu.memory_space<vmem>>, vector<1x8x256xf32>,
    %c1_147 = arith.constant 1 : index
    %c0_148 = arith.constant 0 : index
    %c0_149 = arith.constant 0 : index
    %227 = vector.load %arg2[%c1_147, %c0_148, %c0_149] : memref<2x4x256xf32, #tpu.memory_space<vmem>>, vector<1x4x256xf32>
    %228 = vector.shape_cast %227 : vector<1x4x256xf32> to vector<4x256xf32>
    %cst_150 = arith.constant dense<0.000000e+00> : vector<4xf32>
    %229 = vector.multi_reduction <add>, %228, %cst_150 [1] : vector<4x256xf32> to vector<4xf32>
    %230 = vector.shape_cast %229 : vector<4xf32> to vector<4x1xf32>
    %cst_151 = arith.constant 3.906250e-03 : f32
    %231 = vector.broadcast %cst_151 : f32 to vector<4x1xf32>
    %232 = arith.mulf %230, %231 : vector<4x1xf32>
    %cst_152 = arith.constant dense<0.000000e+00> : vector<8x1xf32>
    %233 = tpu.matmul %2, %232, %cst_152 {dimension_numbers = #tpu.dot_dimension_numbers<[1], [0], [0], [1], [0, 0, 1, 1], [], []>} : vector<8x4xf32>, vector<4x1xf32>, vector<8x1xf32> -> vector<8x1xf32>
    %c1_153 = arith.constant 1 : index
    %c0_154 = arith.constant 0 : index
    %c111_155 = arith.constant 111 : index
    %234 = vector.load %arg1[%c1_153, %c0_154, %c111_155] : memref<2x2x512xf32, #tpu.memory_space<vmem>>, vector<1x2x256xf32>
    %235 = vector.shape_cast %234 : vector<1x2x256xf32> to vector<2x256xf32>
    %236 = vector.broadcast %0 : vector<1x256xf32> to vector<2x256xf32>
    %237 = arith.mulf %235, %236 : vector<2x256xf32>
    %cst_156 = arith.constant dense<0.000000e+00> : vector<2xf32>
    %238 = vector.multi_reduction <add>, %237, %cst_156 [1] : vector<2x256xf32> to vector<2xf32>
    %239 = vector.shape_cast %238 : vector<2xf32> to vector<2x1xf32>
    %cst_157 = arith.constant 3.906250e-03 : f32
    %240 = vector.broadcast %cst_157 : f32 to vector<2x1xf32>
    %241 = arith.mulf %239, %240 : vector<2x1xf32>
    %c0_158 = arith.constant 0 : index
    %c0_159 = arith.constant 0 : index
    %c0_160 = arith.constant 0 : index
    %242 = vector.load %arg4[%c0_158, %c0_159, %c0_160] : memref<9x8x2xf32, #tpu.memory_space<vmem>>, vector<1x8x2xf32>
    %243 = vector.shape_cast %242 : vector<1x8x2xf32> to vector<8x2xf32>
    %cst_161 = arith.constant dense<0.000000e+00> : vector<8x1xf32>
    %244 = tpu.matmul %243, %241, %cst_161 {dimension_numbers = #tpu.dot_dimension_numbers<[1], [0], [0], [1], [0, 0, 1, 1], [], []>} : vector<8x2xf32>, vector<2x1xf32>, vector<8x1xf32> -> vector<8x1xf32>
    %245 = arith.addf %3, %244 : vector<8x1xf32>
    %c1_162 = arith.constant 1 : index
    %c0_163 = arith.constant 0 : index
    %c112_164 = arith.constant 112 : index
    %246 = vector.load %arg1[%c1_162, %c0_163, %c112_164] : memref<2x2x512xf32, #tpu.memory_space<vmem>>, vector<1x2x256xf32>
    %247 = vector.shape_cast %246 : vector<1x2x256xf32> to vector<2x256xf32>
    %cst_165 = arith.constant dense<0.000000e+00> : vector<2xf32>
    %248 = vector.multi_reduction <add>, %247, %cst_165 [1] : vector<2x256xf32> to vector<2xf32>
    %249 = vector.shape_cast %248 : vector<2xf32> to vector<2x1xf32>
    %cst_166 = arith.constant 3.906250e-03 : f32
    %250 = vector.broadcast %cst_166 : f32 to vector<2x1xf32>
    %251 = arith.mulf %249, %250 : vector<2x1xf32>
    %c1_167 = arith.constant 1 : index
    %c0_168 = arith.constant 0 : index
    %c0_169 = arith.constant 0 : index
    %252 = vector.load %arg4[%c1_167, %c0_168, %c0_169] : memref<9x8x2xf32, #tpu.memory_space<vmem>>, vector<1x8x2xf32>
    %253 = vector.shape_cast %252 : vector<1x8x2xf32> to vector<8x2xf32>
    %cst_170 = arith.constant dense<0.000000e+00> : vector<8x1xf32>
    %254 = tpu.matmul %253, %251, %cst_170 {dimension_numbers = #tpu.dot_dimension_numbers<[1], [0], [0], [1], [0, 0, 1, 1], [], []>} : vector<8x2xf32>, vector<2x1xf32>, vector<8x1xf32> -> vector<8x1xf32>
    %255 = arith.addf %245, %254 : vector<8x1xf32>
    %c1_171 = arith.constant 1 : index
    %c0_172 = arith.constant 0 : index
    %c113_173 = arith.constant 113 : index
    %256 = vector.load %arg1[%c1_171, %c0_172, %c113_173] : memref<2x2x512xf32, #tpu.memory_space<vmem>>, vector<1x2x256xf32>
    %257 = vector.shape_cast %256 : vector<1x2x256xf32> to vector<2x256xf32>
    %258 = vector.broadcast %1 : vector<1x256xf32> to vector<2x256xf32>
    %259 = arith.mulf %257, %258 : vector<2x256xf32>
    %cst_174 = arith.constant dense<0.000000e+00> : vector<2xf32>
    %260 = vector.multi_reduction <add>, %259, %cst_174 [1] : vector<2x256xf32> to vector<2xf32>
    %261 = vector.shape_cast %260 : vector<2xf32> to vector<2x1xf32>
    %cst_175 = arith.constant 3.906250e-03 : f32
    %262 = vector.broadcast %cst_175 : f32 to vector<2x1xf32>
    %263 = arith.mulf %261, %262 : vector<2x1xf32>
    %c2_176 = arith.constant 2 : index
    %c0_177 = arith.constant 0 : index
    %c0_178 = arith.constant 0 : index
    %264 = vector.load %arg4[%c2_176, %c0_177, %c0_178] : memref<9x8x2xf32, #tpu.memory_space<vmem>>, vector<1x8x2xf32>
    %265 = vector.shape_cast %264 : vector<1x8x2xf32> to vector<8x2xf32>
    %cst_179 = arith.constant dense<0.000000e+00> : vector<8x1xf32>
    %266 = tpu.matmul %265, %263, %cst_179 {dimension_numbers = #tpu.dot_dimension_numbers<[1], [0], [0], [1], [0, 0, 1, 1], [], []>} : vector<8x2xf32>, vector<2x1xf32>, vector<8x1xf32> -> vector<8x1xf32>
    %267 = arith.addf %255, %266 : vector<8x1xf32>
    %c1_180 = arith.constant 1 : index
    %c0_181 = arith.constant 0 : index
    %c127_182 = arith.constant 127 : index
    %268 = vector.load %arg1[%c1_180, %c0_181, %c127_182] : memref<2x2x512xf32, #tpu.memory_space<vmem>>, vector<1x2x256xf32>
    %269 = vector.shape_cast %268 : vector<1x2x256xf32> to vector<2x256xf32>
    %270 = vector.broadcast %0 : vector<1x256xf32> to vector<2x256xf32>
    %271 = arith.mulf %269, %270 : vector<2x256xf32>
    %cst_183 = arith.constant dense<0.000000e+00> : vector<2xf32>
    %272 = vector.multi_reduction <add>, %271, %cst_183 [1] : vector<2x256xf32> to vector<2xf32>
    %273 = vector.shape_cast %272 : vector<2xf32> to vector<2x1xf32>
    %cst_184 = arith.constant 3.906250e-03 : f32
    %274 = vector.broadcast %cst_184 : f32 to vector<2x1xf32>
    %275 = arith.mulf %273, %274 : vector<2x1xf32>
    %c3_185 = arith.constant 3 : index
    %c0_186 = arith.constant 0 : index
    %c0_187 = arith.constant 0 : index
    %276 = vector.load %arg4[%c3_185, %c0_186, %c0_187] : memref<9x8x2xf32, #tpu.memory_space<vmem>>, vector<1x8x2xf32>
    %277 = vector.shape_cast %276 : vector<1x8x2xf32> to vector<8x2xf32>
    %cst_188 = arith.constant dense<0.000000e+00> : vector<8x1xf32>
    %278 = tpu.matmul %277, %275, %cst_188 {dimension_numbers = #tpu.dot_dimension_numbers<[1], [0], [0], [1], [0, 0, 1, 1], [], []>} : vector<8x2xf32>, vector<2x1xf32>, vector<8x1xf32> -> vector<8x1xf32>
    %279 = arith.addf %267, %278 : vector<8x1xf32>
    %c1_189 = arith.constant 1 : index
    %c0_190 = arith.constant 0 : index
    %c128_191 = arith.constant 128 : index
    %280 = vector.load %arg1[%c1_189, %c0_190, %c128_191] : memref<2x2x512xf32, #tpu.memory_space<vmem>>, vector<1x2x256xf32>
    %281 = vector.shape_cast %280 : vector<1x2x256xf32> to vector<2x256xf32>
    %cst_192 = arith.constant dense<0.000000e+00> : vector<2xf32>
    %282 = vector.multi_reduction <add>, %281, %cst_192 [1] : vector<2x256xf32> to vector<2xf32>
    %283 = vector.shape_cast %282 : vector<2xf32> to vector<2x1xf32>
    %cst_193 = arith.constant 3.906250e-03 : f32
    %284 = vector.broadcast %cst_193 : f32 to vector<2x1xf32>
    %285 = arith.mulf %283, %284 : vector<2x1xf32>
    %c4_194 = arith.constant 4 : index
    %c0_195 = arith.constant 0 : index
    %c0_196 = arith.constant 0 : index
    %286 = vector.load %arg4[%c4_194, %c0_195, %c0_196] : memref<9x8x2xf32, #tpu.memory_space<vmem>>, vector<1x8x2xf32>
    %287 = vector.shape_cast %286 : vector<1x8x2xf32> to vector<8x2xf32>
    %cst_197 = arith.constant dense<0.000000e+00> : vector<8x1xf32>
    %288 = tpu.matmul %287, %285, %cst_197 {dimension_numbers = #tpu.dot_dimension_numbers<[1], [0], [0], [1], [0, 0, 1, 1], [], []>} : vector<8x2xf32>, vector<2x1xf32>, vector<8x1xf32> -> vector<8x1xf32>
    %289 = arith.addf %279, %288 : vector<8x1xf32>
    %c1_198 = arith.constant 1 : index
    %c0_199 = arith.constant 0 : index
    %c129_200 = arith.constant 129 : index
    %290 = vector.load %arg1[%c1_198, %c0_199, %c129_200] : memref<2x2x512xf32, #tpu.memory_space<vmem>>, vector<1x2x256xf32>
    %291 = vector.shape_cast %290 : vector<1x2x256xf32> to vector<2x256xf32>
    %292 = vector.broadcast %1 : vector<1x256xf32> to vector<2x256xf32>
    %293 = arith.mulf %291, %292 : vector<2x256xf32>
    %cst_201 = arith.constant dense<0.000000e+00> : vector<2xf32>
    %294 = vector.multi_reduction <add>, %293, %cst_201 [1] : vector<2x256xf32> to vector<2xf32>
    %295 = vector.shape_cast %294 : vector<2xf32> to vector<2x1xf32>
    %cst_202 = arith.constant 3.906250e-03 : f32
    %296 = vector.broadcast %cst_202 : f32 to vector<2x1xf32>
    %297 = arith.mulf %295, %296 : vector<2x1xf32>
    %c5_203 = arith.constant 5 : index
    %c0_204 = arith.constant 0 : index
    %c0_205 = arith.constant 0 : index
    %298 = vector.load %arg4[%c5_203, %c0_204, %c0_205] : memref<9x8x2xf32, #tpu.memory_space<vmem>>, vector<1x8x2xf32>
    %299 = vector.shape_cast %298 : vector<1x8x2xf32> to vector<8x2xf32>
    %cst_206 = arith.constant dense<0.000000e+00> : vector<8x1xf32>
    %300 = tpu.matmul %299, %297, %cst_206 {dimension_numbers = #tpu.dot_dimension_numbers<[1], [0], [0], [1], [0, 0, 1, 1], [], []>} : vector<8x2xf32>, vector<2x1xf32>, vector<8x1xf32> -> vector<8x1xf32>
    %301 = arith.addf %289, %300 : vector<8x1xf32>
    %c1_207 = arith.constant 1 : index
    %c0_208 = arith.constant 0 : index
    %c143_209 = arith.constant 143 : index
    %302 = vector.load %arg1[%c1_207, %c0_208, %c143_209] : memref<2x2x512xf32, #tpu.memory_space<vmem>>, vector<1x2x256xf32>
    %303 = vector.shape_cast %302 : vector<1x2x256xf32> to vector<2x256xf32>
    %304 = vector.broadcast %0 : vector<1x256xf32> to vector<2x256xf32>
    %305 = arith.mulf %303, %304 : vector<2x256xf32>
    %cst_210 = arith.constant dense<0.000000e+00> : vector<2xf32>
    %306 = vector.multi_reduction <add>, %305, %cst_210 [1] : vector<2x256xf32> to vector<2xf32>
    %307 = vector.shape_cast %306 : vector<2xf32> to vector<2x1xf32>
    %cst_211 = arith.constant 3.906250e-03 : f32
    %308 = vector.broadcast %cst_211 : f32 to vector<2x1xf32>
    %309 = arith.mulf %307, %308 : vector<2x1xf32>
    %c6_212 = arith.constant 6 : index
    %c0_213 = arith.constant 0 : index
    %c0_214 = arith.constant 0 : index
    %310 = vector.load %arg4[%c6_212, %c0_213, %c0_214] : memref<9x8x2xf32, #tpu.memory_space<vmem>>, vector<1x8x2xf32>
    %311 = vector.shape_cast %310 : vector<1x8x2xf32> to vector<8x2xf32>
    %cst_215 = arith.constant dense<0.000000e+00> : vector<8x1xf32>
    %312 = tpu.matmul %311, %309, %cst_215 {dimension_numbers = #tpu.dot_dimension_numbers<[1], [0], [0], [1], [0, 0, 1, 1], [], []>} : vector<8x2xf32>, vector<2x1xf32>, vector<8x1xf32> -> vector<8x1xf32>
    %313 = arith.addf %301, %312 : vector<8x1xf32>
    %c1_216 = arith.constant 1 : index
    %c0_217 = arith.constant 0 : index
    %c144_218 = arith.constant 144 : index
    %314 = vector.load %arg1[%c1_216, %c0_217, %c144_218] : memref<2x2x512xf32, #tpu.memory_space<vmem>>, vector<1x2x256xf32>
    %315 = vector.shape_cast %314 : vector<1x2x256xf32> to vector<2x256xf32>
    %cst_219 = arith.constant dense<0.000000e+00> : vector<2xf32>
    %316 = vector.multi_reduction <add>, %315, %cst_219 [1] : vector<2x256xf32> to vector<2xf32>
    %317 = vector.shape_cast %316 : vector<2xf32> to vector<2x1xf32>
    %cst_220 = arith.constant 3.906250e-03 : f32
    %318 = vector.broadcast %cst_220 : f32 to vector<2x1xf32>
    %319 = arith.mulf %317, %318 : vector<2x1xf32>
    %c7_221 = arith.constant 7 : index
    %c0_222 = arith.constant 0 : index
    %c0_223 = arith.constant 0 : index
    %320 = vector.load %arg4[%c7_221, %c0_222, %c0_223] : memref<9x8x2xf32, #tpu.memory_space<vmem>>, vector<1x8x2xf32>
    %321 = vector.shape_cast %320 : vector<1x8x2xf32> to vector<8x2xf32>
    %cst_224 = arith.constant dense<0.000000e+00> : vector<8x1xf32>
    %322 = tpu.matmul %321, %319, %cst_224 {dimension_numbers = #tpu.dot_dimension_numbers<[1], [0], [0], [1], [0, 0, 1, 1], [], []>} : vector<8x2xf32>, vector<2x1xf32>, vector<8x1xf32> -> vector<8x1xf32>
    %323 = arith.addf %313, %322 : vector<8x1xf32>
    %c1_225 = arith.constant 1 : index
    %c0_226 = arith.constant 0 : index
    %c145_227 = arith.constant 145 : index
    %324 = vector.load %arg1[%c1_225, %c0_226, %c145_227] : memref<2x2x512xf32, #tpu.memory_space<vmem>>, vector<1x2x256xf32>
    %325 = vector.shape_cast %324 : vector<1x2x256xf32> to vector<2x256xf32>
    %326 = vector.broadcast %1 : vector<1x256xf32> to vector<2x256xf32>
    %327 = arith.mulf %325, %326 : vector<2x256xf32>
    %cst_228 = arith.constant dense<0.000000e+00> : vector<2xf32>
    %328 = vector.multi_reduction <add>, %327, %cst_228 [1] : vector<2x256xf32> to vector<2xf32>
    %329 = vector.shape_cast %328 : vector<2xf32> to vector<2x1xf32>
    %cst_229 = arith.constant 3.906250e-03 : f32
    %330 = vector.broadcast %cst_229 : f32 to vector<2x1xf32>
    %331 = arith.mulf %329, %330 : vector<2x1xf32>
    %c8_230 = arith.constant 8 : index
    %c0_231 = arith.constant 0 : index
    %c0_232 = arith.constant 0 : index
    %332 = vector.load %arg4[%c8_230, %c0_231, %c0_232] : memref<9x8x2xf32, #tpu.memory_space<vmem>>, vector<1x8x2xf32>
    %333 = vector.shape_cast %332 : vector<1x8x2xf32> to vector<8x2xf32>
    %cst_233 = arith.constant dense<0.000000e+00> : vector<8x1xf32>
    %334 = tpu.matmul %333, %331, %cst_233 {dimension_numbers = #tpu.dot_dimension_numbers<[1], [0], [0], [1], [0, 0, 1, 1], [], []>} : vector<8x2xf32>, vector<2x1xf32>, vector<8x1xf32> -> vector<8x1xf32>
    %335 = arith.addf %323, %334 : vector<8x1xf32>
    %cst_234 = arith.constant dense<0xFF800000> : vector<1xf32>
    %336 = vector.multi_reduction <maximumf>, %335, %cst_234 [0] : vector<8x1xf32> to vector<1xf32>
    %337 = vector.shape_cast %336 : vector<1xf32> to vector<1x1xf32>
    %cst_235 = arith.constant dense<0xFF800000> : vector<1xf32>
    %338 = vector.multi_reduction <maximumf>, %233, %cst_235 [0] : vector<8x1xf32> to vector<1xf32>
    %339 = vector.shape_cast %338 : vector<1xf32> to vector<1x1xf32>
    %340 = arith.maximumf %337, %339 : vector<1x1xf32>
    %341 = vector.broadcast %340 : vector<1x1xf32> to vector<8x1xf32>
    %342 = arith.subf %335, %341 : vector<8x1xf32>
    %343 = math.exp %342 : vector<8x1xf32>
    %344 = vector.broadcast %340 : vector<1x1xf32> to vector<8x1xf32>
    %345 = arith.subf %233, %344 : vector<8x1xf32>
    %346 = math.exp %345 : vector<8x1xf32>
    %cst_236 = arith.constant dense<0.000000e+00> : vector<1xf32>
    %347 = vector.multi_reduction <add>, %343, %cst_236 [0] : vector<8x1xf32> to vector<1xf32>
    %348 = vector.shape_cast %347 : vector<1xf32> to vector<1x1xf32>
    %cst_237 = arith.constant dense<0.000000e+00> : vector<1xf32>
    %349 = vector.multi_reduction <add>, %346, %cst_237 [0] : vector<8x1xf32> to vector<1xf32>
    %350 = vector.shape_cast %349 : vector<1xf32> to vector<1x1xf32>
    %351 = arith.addf %348, %350 : vector<1x1xf32>
    %352 = tpu.reciprocal %351 {approx = true} : vector<1x1xf32> -> vector<1x1xf32>
    %353 = vector.broadcast %352 : vector<1x1xf32> to vector<8x1xf32>
    %354 = arith.mulf %343, %353 : vector<8x1xf32>
    %355 = vector.broadcast %352 : vector<1x1xf32> to vector<8x1xf32>
    %356 = arith.mulf %346, %355 : vector<8x1xf32>
    %357 = vector.broadcast %356 : vector<8x1xf32> to vector<8x4xf32>
    %358 = arith.mulf %2, %357 : vector<8x4xf32>
    %cst_238 = arith.constant dense<0.000000e+00> : vector<8x256xf32>
    %359 = tpu.matmul %358, %228, %cst_238 {dimension_numbers = #tpu.dot_dimension_numbers<[1], [0], [0], [1], [0, 0, 1, 1], [], []>} : vector<8x4xf32>, vector<4x256xf32>, vector<8x256xf32> -> vector<8x256xf32>
    %360 = arith.mulf %3, %354 : vector<8x1xf32>
    %361 = vector.broadcast %360 : vector<8x1xf32> to vector<8x256xf32>
    %362 = arith.addf %359, %361 : vector<8x256xf32>
    %c0_239 = arith.constant 0 : index
    %c0_240 = arith.constant 0 : index
    %c0_241 = arith.constant 0 : index
    %363 = vector.load %arg4[%c0_239, %c0_240, %c0_241] : memref<9x8x2xf32, #tpu.memory_space<vmem>>, vector<1x8x2xf32>
    %364 = vector.shape_cast %363 : vector<1x8x2xf32> to vector<8x2xf32>
    %365 = vector.broadcast %354 : vector<8x1xf32> to vector<8x2xf32>
    %366 = arith.mulf %364, %365 : vector<8x2xf32>
    %c1_242 = arith.constant 1 : index
    %c0_243 = arith.constant 0 : index
    %c111_244 = arith.constant 111 : index
    %367 = vector.load %arg1[%c1_242, %c0_243, %c111_244] : memref<2x2x512xf32, #tpu.memory_space<vmem>>, vector<1x2x256xf32>
    %368 = vector.shape_cast %367 : vector<1x2x256xf32> to vector<2x256xf32>
    %369 = vector.broadcast %0 : vector<1x256xf32> to vector<2x256xf32>
    %370 = arith.mulf %368, %369 : vector<2x256xf32>
    %cst_245 = arith.constant dense<0.000000e+00> : vector<8x256xf32>
    %371 = tpu.matmul %366, %370, %cst_245 {dimension_numbers = #tpu.dot_dimension_numbers<[1], [0], [0], [1], [0, 0, 1, 1], [], []>} : vector<8x2xf32>, vector<2x256xf32>, vector<8x256xf32> -> vector<8x256xf32>
    %372 = arith.addf %362, %371 : vector<8x256xf32>
    %c1_246 = arith.constant 1 : index
    %c0_247 = arith.constant 0 : index
    %c0_248 = arith.constant 0 : index
    %373 = vector.load %arg4[%c1_246, %c0_247, %c0_248] : memref<9x8x2xf32, #tpu.memory_space<vmem>>, vector<1x8x2xf32>
    %374 = vector.shape_cast %373 : vector<1x8x2xf32> to vector<8x2xf32>
    %375 = vector.broadcast %354 : vector<8x1xf32> to vector<8x2xf32>
    %376 = arith.mulf %374, %375 : vector<8x2xf32>
    %c1_249 = arith.constant 1 : index
    %c0_250 = arith.constant 0 : index
    %c112_251 = arith.constant 112 : index
    %377 = vector.load %arg1[%c1_249, %c0_250, %c112_251] : memref<2x2x512xf32, #tpu.memory_space<vmem>>, vector<1x2x256xf32>
    %378 = vector.shape_cast %377 : vector<1x2x256xf32> to vector<2x256xf32>
    %cst_252 = arith.constant dense<0.000000e+00> : vector<8x256xf32>
    %379 = tpu.matmul %376, %378, %cst_252 {dimension_numbers = #tpu.dot_dimension_numbers<[1], [0], [0], [1], [0, 0, 1, 1], [], []>} : vector<8x2xf32>, vector<2x256xf32>, vector<8x256xf32> -> vector<8x256xf32>
    %380 = arith.addf %372, %379 : vector<8x256xf32>
    %c2_253 = arith.constant 2 : index
    %c0_254 = arith.constant 0 : index
    %c0_255 = arith.constant 0 : index
    %381 = vector.load %arg4[%c2_253, %c0_254, %c0_255] : memref<9x8x2xf32, #tpu.memory_space<vmem>>, vector<1x8x2xf32>
    %382 = vector.shape_cast %381 : vector<1x8x2xf32> to vector<8x2xf32>
    %383 = vector.broadcast %354 : vector<8x1xf32> to vector<8x2xf32>
    %384 = arith.mulf %382, %383 : vector<8x2xf32>
    %c1_256 = arith.constant 1 : index
    %c0_257 = arith.constant 0 : index
    %c113_258 = arith.constant 113 : index
    %385 = vector.load %arg1[%c1_256, %c0_257, %c113_258] : memref<2x2x512xf32, #tpu.memory_space<vmem>>, vector<1x2x256xf32>
    %386 = vector.shape_cast %385 : vector<1x2x256xf32> to vector<2x256xf32>
    %387 = vector.broadcast %1 : vector<1x256xf32> to vector<2x256xf32>
    %388 = arith.mulf %386, %387 : vector<2x256xf32>
    %cst_259 = arith.constant dense<0.000000e+00> : vector<8x256xf32>
    %389 = tpu.matmul %384, %388, %cst_259 {dimension_numbers = #tpu.dot_dimension_numbers<[1], [0], [0], [1], [0, 0, 1, 1], [], []>} : vector<8x2xf32>, vector<2x256xf32>, vector<8x256xf32> -> vector<8x256xf32>
    %390 = arith.addf %380, %389 : vector<8x256xf32>
    %c3_260 = arith.constant 3 : index
    %c0_261 = arith.constant 0 : index
    %c0_262 = arith.constant 0 : index
    %391 = vector.load %arg4[%c3_260, %c0_261, %c0_262] : memref<9x8x2xf32, #tpu.memory_space<vmem>>, vector<1x8x2xf32>
    %392 = vector.shape_cast %391 : vector<1x8x2xf32> to vector<8x2xf32>
    %393 = vector.broadcast %354 : vector<8x1xf32> to vector<8x2xf32>
    %394 = arith.mulf %392, %393 : vector<8x2xf32>
    %c1_263 = arith.constant 1 : index
    %c0_264 = arith.constant 0 : index
    %c127_265 = arith.constant 127 : index
    %395 = vector.load %arg1[%c1_263, %c0_264, %c127_265] : memref<2x2x512xf32, #tpu.memory_space<vmem>>, vector<1x2x256xf32>
    %396 = vector.shape_cast %395 : vector<1x2x256xf32> to vector<2x256xf32>
    %397 = vector.broadcast %0 : vector<1x256xf32> to vector<2x256xf32>
    %398 = arith.mulf %396, %397 : vector<2x256xf32>
    %cst_266 = arith.constant dense<0.000000e+00> : vector<8x256xf32>
    %399 = tpu.matmul %394, %398, %cst_266 {dimension_numbers = #tpu.dot_dimension_numbers<[1], [0], [0], [1], [0, 0, 1, 1], [], []>} : vector<8x2xf32>, vector<2x256xf32>, vector<8x256xf32> -> vector<8x256xf32>
    %400 = arith.addf %390, %399 : vector<8x256xf32>
    %c4_267 = arith.constant 4 : index
    %c0_268 = arith.constant 0 : index
    %c0_269 = arith.constant 0 : index
    %401 = vector.load %arg4[%c4_267, %c0_268, %c0_269] : memref<9x8x2xf32, #tpu.memory_space<vmem>>, vector<1x8x2xf32>
    %402 = vector.shape_cast %401 : vector<1x8x2xf32> to vector<8x2xf32>
    %403 = vector.broadcast %354 : vector<8x1xf32> to vector<8x2xf32>
    %404 = arith.mulf %402, %403 : vector<8x2xf32>
    %c1_270 = arith.constant 1 : index
    %c0_271 = arith.constant 0 : index
    %c128_272 = arith.constant 128 : index
    %405 = vector.load %arg1[%c1_270, %c0_271, %c128_272] : memref<2x2x512xf32, #tpu.memory_space<vmem>>, vector<1x2x256xf32>
    %406 = vector.shape_cast %405 : vector<1x2x256xf32> to vector<2x256xf32>
    %cst_273 = arith.constant dense<0.000000e+00> : vector<8x256xf32>
    %407 = tpu.matmul %404, %406, %cst_273 {dimension_numbers = #tpu.dot_dimension_numbers<[1], [0], [0], [1], [0, 0, 1, 1], [], []>} : vector<8x2xf32>, vector<2x256xf32>, vector<8x256xf32> -> vector<8x256xf32>
    %408 = arith.addf %400, %407 : vector<8x256xf32>
    %c5_274 = arith.constant 5 : index
    %c0_275 = arith.constant 0 : index
    %c0_276 = arith.constant 0 : index
    %409 = vector.load %arg4[%c5_274, %c0_275, %c0_276] : memref<9x8x2xf32, #tpu.memory_space<vmem>>, vector<1x8x2xf32>
    %410 = vector.shape_cast %409 : vector<1x8x2xf32> to vector<8x2xf32>
    %411 = vector.broadcast %354 : vector<8x1xf32> to vector<8x2xf32>
    %412 = arith.mulf %410, %411 : vector<8x2xf32>
    %c1_277 = arith.constant 1 : index
    %c0_278 = arith.constant 0 : index
    %c129_279 = arith.constant 129 : index
    %413 = vector.load %arg1[%c1_277, %c0_278, %c129_279] : memref<2x2x512xf32, #tpu.memory_space<vmem>>, vector<1x2x256xf32>
    %414 = vector.shape_cast %413 : vector<1x2x256xf32> to vector<2x256xf32>
    %415 = vector.broadcast %1 : vector<1x256xf32> to vector<2x256xf32>
    %416 = arith.mulf %414, %415 : vector<2x256xf32>
    %cst_280 = arith.constant dense<0.000000e+00> : vector<8x256xf32>
    %417 = tpu.matmul %412, %416, %cst_280 {dimension_numbers = #tpu.dot_dimension_numbers<[1], [0], [0], [1], [0, 0, 1, 1], [], []>} : vector<8x2xf32>, vector<2x256xf32>, vector<8x256xf32> -> vector<8x256xf32>
    %418 = arith.addf %408, %417 : vector<8x256xf32>
    %c6_281 = arith.constant 6 : index
    %c0_282 = arith.constant 0 : index
    %c0_283 = arith.constant 0 : index
    %419 = vector.load %arg4[%c6_281, %c0_282, %c0_283] : memref<9x8x2xf32, #tpu.memory_space<vmem>>, vector<1x8x2xf32>
    %420 = vector.shape_cast %419 : vector<1x8x2xf32> to vector<8x2xf32>
    %421 = vector.broadcast %354 : vector<8x1xf32> to vector<8x2xf32>
    %422 = arith.mulf %420, %421 : vector<8x2xf32>
    %c1_284 = arith.constant 1 : index
    %c0_285 = arith.constant 0 : index
    %c143_286 = arith.constant 143 : index
    %423 = vector.load %arg1[%c1_284, %c0_285, %c143_286] : memref<2x2x512xf32, #tpu.memory_space<vmem>>, vector<1x2x256xf32>
    %424 = vector.shape_cast %423 : vector<1x2x256xf32> to vector<2x256xf32>
    %425 = vector.broadcast %0 : vector<1x256xf32> to vector<2x256xf32>
    %426 = arith.mulf %424, %425 : vector<2x256xf32>
    %cst_287 = arith.constant dense<0.000000e+00> : vector<8x256xf32>
    %427 = tpu.matmul %422, %426, %cst_287 {dimension_numbers = #tpu.dot_dimension_numbers<[1], [0], [0], [1], [0, 0, 1, 1], [], []>} : vector<8x2xf32>, vector<2x256xf32>, vector<8x256xf32> -> vector<8x256xf32>
    %428 = arith.addf %418, %427 : vector<8x256xf32>
    %c7_288 = arith.constant 7 : index
    %c0_289 = arith.constant 0 : index
    %c0_290 = arith.constant 0 : index
    %429 = vector.load %arg4[%c7_288, %c0_289, %c0_290] : memref<9x8x2xf32, #tpu.memory_space<vmem>>, vector<1x8x2xf32>
    %430 = vector.shape_cast %429 : vector<1x8x2xf32> to vector<8x2xf32>
    %431 = vector.broadcast %354 : vector<8x1xf32> to vector<8x2xf32>
    %432 = arith.mulf %430, %431 : vector<8x2xf32>
    %c1_291 = arith.constant 1 : index
    %c0_292 = arith.constant 0 : index
    %c144_293 = arith.constant 144 : index
    %433 = vector.load %arg1[%c1_291, %c0_292, %c144_293] : memref<2x2x512xf32, #tpu.memory_space<vmem>>, vector<1x2x256xf32>
    %434 = vector.shape_cast %433 : vector<1x2x256xf32> to vector<2x256xf32>
    %cst_294 = arith.constant dense<0.000000e+00> : vector<8x256xf32>
    %435 = tpu.matmul %432, %434, %cst_294 {dimension_numbers = #tpu.dot_dimension_numbers<[1], [0], [0], [1], [0, 0, 1, 1], [], []>} : vector<8x2xf32>, vector<2x256xf32>, vector<8x256xf32> -> vector<8x256xf32>
    %436 = arith.addf %428, %435 : vector<8x256xf32>
    %c8_295 = arith.constant 8 : index
    %c0_296 = arith.constant 0 : index
    %c0_297 = arith.constant 0 : index
    %437 = vector.load %arg4[%c8_295, %c0_296, %c0_297] : memref<9x8x2xf32, #tpu.memory_space<vmem>>, vector<1x8x2xf32>
    %438 = vector.shape_cast %437 : vector<1x8x2xf32> to vector<8x2xf32>
    %439 = vector.broadcast %354 : vector<8x1xf32> to vector<8x2xf32>
    %440 = arith.mulf %438, %439 : vector<8x2xf32>
    %c1_298 = arith.constant 1 : index
    %c0_299 = arith.constant 0 : index
    %c145_300 = arith.constant 145 : index
    %441 = vector.load %arg1[%c1_298, %c0_299, %c145_300] : memref<2x2x512xf32, #tpu.memory_space<vmem>>, vector<1x2x256xf32>
    %442 = vector.shape_cast %441 : vector<1x2x256xf32> to vector<2x256xf32>
    %443 = vector.broadcast %1 : vector<1x256xf32> to vector<2x256xf32>
    %444 = arith.mulf %442, %443 : vector<2x256xf32>
    %cst_301 = arith.constant dense<0.000000e+00> : vector<8x256xf32>
    %445 = tpu.matmul %440, %444, %cst_301 {dimension_numbers = #tpu.dot_dimension_numbers<[1], [0], [0], [1], [0, 0, 1, 1], [], []>} : vector<8x2xf32>, vector<2x256xf32>, vector<8x256xf32> -> vector<8x256xf32>
    %446 = arith.addf %436, %445 : vector<8x256xf32>
    %c1_302 = arith.constant 1 : index
    %c0_303 = arith.constant 0 : index
    %c0_304 = arith.constant 0 : index
    %447 = vector.load %arg7[%c1_302, %c0_303, %c0_304] : memref<2x8x256xf32, #tpu.memory_space<vmem>>, vector<1x8x256xf32>
    %448 = vector.shape_cast %447 : vector<1x8x256xf32> to vector<8x256xf32>
    %449 = vector.shape_cast %446 : vector<8x256xf32> to vector<1x8x256xf32>
    tpu.vector_store %arg7[%c1_302, %c0_303, %c0_304], %449 {strides = array<i32>} : memref<2x8x256xf32, #tpu.memory_space<vmem>>, vector<1x8x256xf32>,
    return
  }
  func.func @transform_0(%arg0: i32) -> (i32, i32, i32) {
    %c0_i32 = arith.constant 0 : i32
    %c0_i32_0 = arith.constant 0 : i32
    %c0_i32_1 = arith.constant 0 : i32
    return %arg0, %c0_i32, %c0_i32_0 : i32, i32, i32
  }
  func.func @transform_1(%arg0: i32) -> (i32, i32, i32) {
    %c0_i32 = arith.constant 0 : i32
    %c0_i32_0 = arith.constant 0 : i32
    %c0_i32_1 = arith.constant 0 : i32
    return %arg0, %c0_i32, %c0_i32_0 : i32, i32, i32
  }
  func.func @transform_2(%arg0: i32) -> (i32, i32) {
    %c0_i32 = arith.constant 0 : i32
    %c0_i32_0 = arith.constant 0 : i32
    %c0_i32_1 = arith.constant 0 : i32
    return %c0_i32, %c0_i32_0 : i32, i32
  }
  func.func @transform_3(%arg0: i32) -> (i32, i32, i32) {
    %c0_i32 = arith.constant 0 : i32
    %c0_i32_0 = arith.constant 0 : i32
    %c0_i32_1 = arith.constant 0 : i32
    %c0_i32_2 = arith.constant 0 : i32
    return %c0_i32, %c0_i32_0, %c0_i32_1 : i32, i32, i32
  }
  func.func @transform_4(%arg0: i32) -> (i32, i32) {
    %c0_i32 = arith.constant 0 : i32
    %c0_i32_0 = arith.constant 0 : i32
    %c0_i32_1 = arith.constant 0 : i32
    return %c0_i32, %c0_i32_0 : i32, i32
  }
  func.func @transform_5(%arg0: i32) -> (i32, i32) {
    %c0_i32 = arith.constant 0 : i32
    %c0_i32_0 = arith.constant 0 : i32
    %c0_i32_1 = arith.constant 0 : i32
    return %c0_i32, %c0_i32_0 : i32, i32
  }
  func.func @transform_6(%arg0: i32) -> (i32, i32, i32) {
    %c0_i32 = arith.constant 0 : i32
    %c0_i32_0 = arith.constant 0 : i32
    %c0_i32_1 = arith.constant 0 : i32
    return %arg0, %c0_i32, %c0_i32_0 : i32, i32, i32
  }
}

</mosaic_0001>

<llo_original>
// kernel: cru_pallas.1
$region0: #{cru_pallas.1}
  #allocation0 [shape = 'u32[]', space=smem, size = 0x4, offset = 0x4, fixed_abs, tag = 'smem constant byte address 0x4 - core index']
  #allocation1 [shape = 'u32[72,128]{1,0:T(1,128)}', space=vmem, size = 0x9000, scoped, tag = 'internal scratch']
  %s0 = inlined_call_operand.vmem [shape: f32[2,2,512], index: 0, kind: input, shape index: {}]
  %s1 = inlined_call_operand.vmem [shape: f32[2,4,256], index: 1, kind: input, shape index: {}]
  %s2 = inlined_call_operand.vmem [shape: f32[2,256], index: 2, kind: input, shape index: {}]
  %s3 = inlined_call_operand.vmem [shape: f32[9,8,2], index: 3, kind: input, shape index: {}]
  %s4 = inlined_call_operand.vmem [shape: f32[8,4], index: 4, kind: input, shape index: {}]
  %s5 = inlined_call_operand.vmem [shape: f32[8,1], index: 5, kind: input, shape index: {}]
  %s6 = inlined_call_operand.vmem [shape: f32[2,8,256], index: 6, kind: output, shape index: {}]
  %s7 = sld [smem:[#allocation0]]
  $region34: #{cru_pallas.1} parent=0
    _
  %s9 = ssub.s32 1, %s7
  %s10 = scalar_select 0, %s9, %s7
  // Predicated region
  $region2: #{cru_pallas.1} parent=0 // pred_check
    _
  $region3: #{cru_pallas.1} parent=0 // pred_check_branch
    %12 = sbr.rel (0) target = $region5
  $region4: #{cru_pallas.1} parent=0 // pred_region
    _
  $region5: #{cru_pallas.1} parent=0 // pred_fallthru
    _
  // Predicated region
  $region6: #{cru_pallas.1} parent=0 // pred_check
    _
  $region7: #{cru_pallas.1} parent=0 // pred_check_branch
    %14 = sbr.rel (0) target = $region9
  $region8: #{cru_pallas.1} parent=0 // pred_region
    _
  $region9: #{cru_pallas.1} parent=0 // pred_fallthru
    _
  // Predicated region
  $region10: #{cru_pallas.1} parent=0 // pred_check
    _
  $region11: #{cru_pallas.1} parent=0 // pred_check_branch
    %16 = sbr.rel (0) target = $region13
  $region12: #{cru_pallas.1} parent=0 // pred_region
    _
  $region13: #{cru_pallas.1} parent=0 // pred_fallthru
    _
  // Predicated region
  $region14: #{cru_pallas.1} parent=0 // pred_check
    _
  $region15: #{cru_pallas.1} parent=0 // pred_check_branch
    %18 = sbr.rel (0) target = $region17
  $region16: #{cru_pallas.1} parent=0 // pred_region
    _
  $region17: #{cru_pallas.1} parent=0 // pred_fallthru
    _
  // Predicated region
  $region18: #{cru_pallas.1} parent=0 // pred_check
    _
  $region19: #{cru_pallas.1} parent=0 // pred_check_branch
    %20 = sbr.rel (0) target = $region21
  $region20: #{cru_pallas.1} parent=0 // pred_region
    _
  $region21: #{cru_pallas.1} parent=0 // pred_fallthru
    _
  // Predicated region
  $region22: #{cru_pallas.1} parent=0 // pred_check
    _
  $region23: #{cru_pallas.1} parent=0 // pred_check_branch
    %22 = sbr.rel (0) target = $region25
  $region24: #{cru_pallas.1} parent=0 // pred_region
    _
  $region25: #{cru_pallas.1} parent=0 // pred_fallthru
    _
  %v23 = vld [vmem:[%s2] ss:$2 sm:$0x3]
  %s24 = scalar_lea.vmem %s2, 1
  %v25 = vld [vmem:[%s24] ss:$2 sm:$0x3]
  %v26 = vld [vmem:[%s4] sm:$0xff]
  %v27 = vld [vmem:[%s5] sm:$0xff]
  %v28 = vld [vmem:[%s1] sm:$0xff]
  %30 = vst [vmem:[#allocation1] ss:$2 sm:$0xff] %v28
  %v31 = vld.sshfl [vmem:[#allocation1] sm:$0xff pattern:$0x75316420]
  %v32 = vld.sshfl [vmem:[#allocation1 + $0x8] sm:$0xff pattern:$0x75316420]
  %vm35 = vcmask 1043456
  %v36 = vsel %vm35, %v31, 0.0
  %v37 = vsel %vm35, %v32, 0.0
  %v38 = vadd.f32 %v36, %v37
  %39 = vadd.xlane.f32.xlu0 %v38
  %v40 = vpop.xlane.xlu0 %39
  %v41 = vmul.f32 %v40, 0.00390625
  %vm42 = vcmask 31744
  %v44 = vsel %vm42, %v26, 0
  %v47 = vsel %vm35, %v41, 0
  %49 = vmatpush.msra.mxu0 0.0
  %50 = vmatpush.msra.mxu0 0.0
  %51 = vmatpush.msra.mxu0 0.0
  %52 = vmatpush.msra.mxu0 0.0
  %53 = vmatpush.msra.mxu0 0.0
  %54 = vmatpush.msra.mxu0 0.0
  %55 = vmatpush.msra.mxu0 0.0
  %56 = vmatpush.msra.mxu0 0.0
  %57 = vmatpush.msra.mxu0 0.0
  %58 = vmatpush.msra.mxu0 0.0
  %59 = vmatpush.msra.mxu0 0.0
  %60 = vmatpush.msra.mxu0 0.0
  %61 = vmatpush.msra.mxu0 0.0
  %62 = vmatpush.msra.mxu0 0.0
  %63 = vmatpush.msra.mxu0 0.0
  %64 = vmatpush.msra.mxu0 %v47
  %65 = vmatmul.f32.gmra.mxu0 %v44
  %v66 = vpop.f32.mrf.mxu0
  %v67 = vadd.f32 0.0, %v66
  %68 = vdwg.mxu0
  %v69 = vld [vmem:[%s0] sm:$0x3f]
  %v71 = vperm.slane %v23, 0
  %v72 = vperm.slane %v23, 1
  %v73 = vrot.slane %v72, 6
  %vm74 = vcmask 1041408
  %v75 = vsel %vm74, %v71, %v73
  %76 = vrot.lane.b32.xlu0 %v75, 111
  %v77 = vpop.permute.xlu0 %76
  %v78 = vrot.slane %v77, 6
  %vm79 = vcmask 908288
  %v80 = vsel %vm79, %v78, %v77
  %v82 = vmul.f32 %v69, %v80
  %84 = vst [vmem:[#allocation1] ss:$4 sm:$0xff] %v82
  %v85 = vld.sshfl [vmem:[#allocation1] sm:$0xff pattern:$0x73625140]
  %v86 = vld.sshfl [vmem:[#allocation1 + $0x8] sm:$0xff pattern:$0x73625140]
  %v87 = vld.sshfl [vmem:[#allocation1 + $0x10] sm:$0xff pattern:$0x73625140]
  %88 = vrot.lane.b32.xlu0 %v85, 17
  %v89 = vpop.permute.xlu0 %88
  %90 = vrot.lane.b32.xlu0 %v86, 17
  %v91 = vpop.permute.xlu0 %90
  %92 = vrot.lane.b32.xlu0 %v87, 17
  %v93 = vpop.permute.xlu0 %92
  %vm94 = vcmask 138240
  %v95 = vsel %vm94, %v89, %v91
  %v96 = vsel %vm94, %v91, %v93
  %v99 = vsel %vm74, %v95, 0.0
  %v100 = vsel %vm74, %v96, 0.0
  %v101 = vadd.f32 %v99, %v100
  %102 = vadd.xlane.f32.xlu0 %v101
  %v103 = vpop.xlane.xlu0 %102
  %v104 = vmul.f32 %v103, 0.00390625
  %v105 = vld [vmem:[%s3] sm:$0xff]
  %vm106 = vcmask 15360
  %v108 = vsel %vm106, %v105, 0
  %v111 = vsel %vm74, %v104, 0
  %113 = vmatpush.msra.mxu0 0.0
  %114 = vmatpush.msra.mxu0 0.0
  %115 = vmatpush.msra.mxu0 0.0
  %116 = vmatpush.msra.mxu0 0.0
  %117 = vmatpush.msra.mxu0 0.0
  %118 = vmatpush.msra.mxu0 0.0
  %119 = vmatpush.msra.mxu0 0.0
  %120 = vmatpush.msra.mxu0 0.0
  %121 = vmatpush.msra.mxu0 0.0
  %122 = vmatpush.msra.mxu0 0.0
  %123 = vmatpush.msra.mxu0 0.0
  %124 = vmatpush.msra.mxu0 0.0
  %125 = vmatpush.msra.mxu0 0.0
  %126 = vmatpush.msra.mxu0 0.0
  %127 = vmatpush.msra.mxu0 0.0
  %128 = vmatpush.msra.mxu0 %v111
  %129 = vmatmul.f32.gmra.mxu0 %v108
  %v130 = vpop.f32.mrf.mxu0
  %v131 = vadd.f32 0.0, %v130
  %132 = vdwg.mxu0
  %v133 = vadd.f32 %v27, %v131
  %v134 = vld [vmem:[%s0] sm:$0x3f]
  %136 = vst [vmem:[#allocation1] ss:$4 sm:$0xff] %v134
  %v137 = vld.sshfl [vmem:[#allocation1] sm:$0xff pattern:$0x73625140]
  %v138 = vld.sshfl [vmem:[#allocation1 + $0x8] sm:$0xff pattern:$0x73625140]
  %v139 = vld.sshfl [vmem:[#allocation1 + $0x10] sm:$0xff pattern:$0x73625140]
  %140 = vrot.lane.b32.xlu0 %v137, 16
  %v141 = vpop.permute.xlu0 %140
  %142 = vrot.lane.b32.xlu0 %v138, 16
  %v143 = vpop.permute.xlu0 %142
  %144 = vrot.lane.b32.xlu0 %v139, 16
  %v145 = vpop.permute.xlu0 %144
  %vm146 = vcmask 130048
  %v147 = vsel %vm146, %v141, %v143
  %v148 = vsel %vm146, %v143, %v145
  %v151 = vsel %vm74, %v147, 0.0
  %v152 = vsel %vm74, %v148, 0.0
  %v153 = vadd.f32 %v151, %v152
  %154 = vadd.xlane.f32.xlu0 %v153
  %v155 = vpop.xlane.xlu0 %154
  %v156 = vmul.f32 %v155, 0.00390625
  %s157 = scalar_lea.vmem %s3, 8
  %v158 = vld [vmem:[%s157] sm:$0xff]
  %v160 = vsel %vm106, %v158, 0
  %v163 = vsel %vm74, %v156, 0
  %165 = vmatpush.msra.mxu0 0.0
  %166 = vmatpush.msra.mxu0 0.0
  %167 = vmatpush.msra.mxu0 0.0
  %168 = vmatpush.msra.mxu0 0.0
  %169 = vmatpush.msra.mxu0 0.0
  %170 = vmatpush.msra.mxu0 0.0
  %171 = vmatpush.msra.mxu0 0.0
  %172 = vmatpush.msra.mxu0 0.0
  %173 = vmatpush.msra.mxu0 0.0
  %174 = vmatpush.msra.mxu0 0.0
  %175 = vmatpush.msra.mxu0 0.0
  %176 = vmatpush.msra.mxu0 0.0
  %177 = vmatpush.msra.mxu0 0.0
  %178 = vmatpush.msra.mxu0 0.0
  %179 = vmatpush.msra.mxu0 0.0
  %180 = vmatpush.msra.mxu0 %v163
  %181 = vmatmul.f32.gmra.mxu0 %v160
  %v182 = vpop.f32.mrf.mxu0
  %v183 = vadd.f32 0.0, %v182
  %184 = vdwg.mxu0
  %v185 = vadd.f32 %v133, %v183
  %v186 = vld [vmem:[%s0] sm:$0x3f]
  %v188 = vperm.slane %v25, 0
  %v189 = vperm.slane %v25, 1
  %v190 = vrot.slane %v189, 6
  %v191 = vsel %vm74, %v188, %v190
  %192 = vrot.lane.b32.xlu0 %v191, 113
  %v193 = vpop.permute.xlu0 %192
  %v194 = vrot.slane %v193, 6
  %vm195 = vcmask 924672
  %v196 = vsel %vm195, %v194, %v193
  %v198 = vmul.f32 %v186, %v196
  %200 = vst [vmem:[#allocation1] ss:$4 sm:$0xff] %v198
  %v201 = vld.sshfl [vmem:[#allocation1] sm:$0xff pattern:$0x73625140]
  %v202 = vld.sshfl [vmem:[#allocation1 + $0x8] sm:$0xff pattern:$0x73625140]
  %v203 = vld.sshfl [vmem:[#allocation1 + $0x10] sm:$0xff pattern:$0x73625140]
  %204 = vrot.lane.b32.xlu0 %v201, 15
  %v205 = vpop.permute.xlu0 %204
  %206 = vrot.lane.b32.xlu0 %v202, 15
  %v207 = vpop.permute.xlu0 %206
  %208 = vrot.lane.b32.xlu0 %v203, 15
  %v209 = vpop.permute.xlu0 %208
  %vm210 = vcmask 121856
  %v211 = vsel %vm210, %v205, %v207
  %v212 = vsel %vm210, %v207, %v209
  %v215 = vsel %vm74, %v211, 0.0
  %v216 = vsel %vm74, %v212, 0.0
  %v217 = vadd.f32 %v215, %v216
  %218 = vadd.xlane.f32.xlu0 %v217
  %v219 = vpop.xlane.xlu0 %218
  %v220 = vmul.f32 %v219, 0.00390625
  %s221 = scalar_lea.vmem %s3, 16
  %v222 = vld [vmem:[%s221] sm:$0xff]
  %v224 = vsel %vm106, %v222, 0
  %v227 = vsel %vm74, %v220, 0
  %229 = vmatpush.msra.mxu0 0.0
  %230 = vmatpush.msra.mxu0 0.0
  %231 = vmatpush.msra.mxu0 0.0
  %232 = vmatpush.msra.mxu0 0.0
  %233 = vmatpush.msra.mxu0 0.0
  %234 = vmatpush.msra.mxu0 0.0
  %235 = vmatpush.msra.mxu0 0.0
  %236 = vmatpush.msra.mxu0 0.0
  %237 = vmatpush.msra.mxu0 0.0
  %238 = vmatpush.msra.mxu0 0.0
  %239 = vmatpush.msra.mxu0 0.0
  %240 = vmatpush.msra.mxu0 0.0
  %241 = vmatpush.msra.mxu0 0.0
  %242 = vmatpush.msra.mxu0 0.0
  %243 = vmatpush.msra.mxu0 0.0
  %244 = vmatpush.msra.mxu0 %v227
  %245 = vmatmul.f32.gmra.mxu0 %v224
  %v246 = vpop.f32.mrf.mxu0
  %v247 = vadd.f32 0.0, %v246
  %248 = vdwg.mxu0
  %v249 = vadd.f32 %v185, %v247
  %v250 = vld [vmem:[%s0] sm:$0x3f]
  %251 = vrot.lane.b32.xlu0 %v75, 127
  %v252 = vpop.permute.xlu0 %251
  %v253 = vrot.slane %v252, 6
  %vm254 = vcmask 1039360
  %v255 = vsel %vm254, %v253, %v252
  %v257 = vmul.f32 %v250, %v255
  %259 = vst [vmem:[#allocation1] ss:$4 sm:$0xff] %v257
  %v260 = vld.sshfl [vmem:[#allocation1] sm:$0xff pattern:$0x73625140]
  %v261 = vld.sshfl [vmem:[#allocation1 + $0x8] sm:$0xff pattern:$0x73625140]
  %v262 = vld.sshfl [vmem:[#allocation1 + $0x10] sm:$0xff pattern:$0x73625140]
  %263 = vrot.lane.b32.xlu0 %v260, 1
  %v264 = vpop.permute.xlu0 %263
  %265 = vrot.lane.b32.xlu0 %v261, 1
  %v266 = vpop.permute.xlu0 %265
  %267 = vrot.lane.b32.xlu0 %v262, 1
  %v268 = vpop.permute.xlu0 %267
  %vm269 = vcmask 7168
  %v270 = vsel %vm269, %v264, %v266
  %v271 = vsel %vm269, %v266, %v268
  %v274 = vsel %vm74, %v270, 0.0
  %v275 = vsel %vm74, %v271, 0.0
  %v276 = vadd.f32 %v274, %v275
  %277 = vadd.xlane.f32.xlu0 %v276
  %v278 = vpop.xlane.xlu0 %277
  %v279 = vmul.f32 %v278, 0.00390625
  %s280 = scalar_lea.vmem %s3, 24
  %v281 = vld [vmem:[%s280] sm:$0xff]
  %v283 = vsel %vm106, %v281, 0
  %v286 = vsel %vm74, %v279, 0
  %288 = vmatpush.msra.mxu0 0.0
  %289 = vmatpush.msra.mxu0 0.0
  %290 = vmatpush.msra.mxu0 0.0
  %291 = vmatpush.msra.mxu0 0.0
  %292 = vmatpush.msra.mxu0 0.0
  %293 = vmatpush.msra.mxu0 0.0
  %294 = vmatpush.msra.mxu0 0.0
  %295 = vmatpush.msra.mxu0 0.0
  %296 = vmatpush.msra.mxu0 0.0
  %297 = vmatpush.msra.mxu0 0.0
  %298 = vmatpush.msra.mxu0 0.0
  %299 = vmatpush.msra.mxu0 0.0
  %300 = vmatpush.msra.mxu0 0.0
  %301 = vmatpush.msra.mxu0 0.0
  %302 = vmatpush.msra.mxu0 0.0
  %303 = vmatpush.msra.mxu0 %v286
  %304 = vmatmul.f32.gmra.mxu0 %v283
  %v305 = vpop.f32.mrf.mxu0
  %v306 = vadd.f32 0.0, %v305
  %307 = vdwg.mxu0
  %v308 = vadd.f32 %v249, %v306
  %v309 = vld [vmem:[%s0 + $0x2] sm:$0xf]
  %311 = vst [vmem:[#allocation1] ss:$4 sm:$0xff] %v309
  %v312 = vld.sshfl [vmem:[#allocation1] sm:$0xff pattern:$0x73625140]
  %v313 = vld.sshfl [vmem:[#allocation1 + $0x8] sm:$0xff pattern:$0x73625140]
  %v316 = vsel %vm74, %v312, 0.0
  %v317 = vsel %vm74, %v313, 0.0
  %v318 = vadd.f32 %v316, %v317
  %319 = vadd.xlane.f32.xlu0 %v318
  %v320 = vpop.xlane.xlu0 %319
  %v321 = vmul.f32 %v320, 0.00390625
  %s322 = scalar_lea.vmem %s3, 32
  %v323 = vld [vmem:[%s322] sm:$0xff]
  %v325 = vsel %vm106, %v323, 0
  %v328 = vsel %vm74, %v321, 0
  %330 = vmatpush.msra.mxu0 0.0
  %331 = vmatpush.msra.mxu0 0.0
  %332 = vmatpush.msra.mxu0 0.0
  %333 = vmatpush.msra.mxu0 0.0
  %334 = vmatpush.msra.mxu0 0.0
  %335 = vmatpush.msra.mxu0 0.0
  %336 = vmatpush.msra.mxu0 0.0
  %337 = vmatpush.msra.mxu0 0.0
  %338 = vmatpush.msra.mxu0 0.0
  %339 = vmatpush.msra.mxu0 0.0
  %340 = vmatpush.msra.mxu0 0.0
  %341 = vmatpush.msra.mxu0 0.0
  %342 = vmatpush.msra.mxu0 0.0
  %343 = vmatpush.msra.mxu0 0.0
  %344 = vmatpush.msra.mxu0 0.0
  %345 = vmatpush.msra.mxu0 %v328
  %346 = vmatmul.f32.gmra.mxu0 %v325
  %v347 = vpop.f32.mrf.mxu0
  %v348 = vadd.f32 0.0, %v347
  %349 = vdwg.mxu0
  %v350 = vadd.f32 %v308, %v348
  %v351 = vld [vmem:[%s0 + $0x2] sm:$0x3f]
  %352 = vrot.lane.b32.xlu0 %v191, 1
  %v353 = vpop.permute.xlu0 %352
  %v354 = vrot.slane %v353, 6
  %v355 = vsel %vm269, %v354, %v353
  %v357 = vmul.f32 %v351, %v355
  %359 = vst [vmem:[#allocation1] ss:$4 sm:$0xff] %v357
  %v360 = vld.sshfl [vmem:[#allocation1] sm:$0xff pattern:$0x73625140]
  %v361 = vld.sshfl [vmem:[#allocation1 + $0x8] sm:$0xff pattern:$0x73625140]
  %v362 = vld.sshfl [vmem:[#allocation1 + $0x10] sm:$0xff pattern:$0x73625140]
  %363 = vrot.lane.b32.xlu0 %v360, 127
  %v364 = vpop.permute.xlu0 %363
  %365 = vrot.lane.b32.xlu0 %v361, 127
  %v366 = vpop.permute.xlu0 %365
  %367 = vrot.lane.b32.xlu0 %v362, 127
  %v368 = vpop.permute.xlu0 %367
  %v369 = vsel %vm254, %v364, %v366
  %v370 = vsel %vm254, %v366, %v368
  %v373 = vsel %vm74, %v369, 0.0
  %v374 = vsel %vm74, %v370, 0.0
  %v375 = vadd.f32 %v373, %v374
  %376 = vadd.xlane.f32.xlu0 %v375
  %v377 = vpop.xlane.xlu0 %376
  %v378 = vmul.f32 %v377, 0.00390625
  %s379 = scalar_lea.vmem %s3, 40
  %v380 = vld [vmem:[%s379] sm:$0xff]
  %v382 = vsel %vm106, %v380, 0
  %v385 = vsel %vm74, %v378, 0
  %387 = vmatpush.msra.mxu0 0.0
  %388 = vmatpush.msra.mxu0 0.0
  %389 = vmatpush.msra.mxu0 0.0
  %390 = vmatpush.msra.mxu0 0.0
  %391 = vmatpush.msra.mxu0 0.0
  %392 = vmatpush.msra.mxu0 0.0
  %393 = vmatpush.msra.mxu0 0.0
  %394 = vmatpush.msra.mxu0 0.0
  %395 = vmatpush.msra.mxu0 0.0
  %396 = vmatpush.msra.mxu0 0.0
  %397 = vmatpush.msra.mxu0 0.0
  %398 = vmatpush.msra.mxu0 0.0
  %399 = vmatpush.msra.mxu0 0.0
  %400 = vmatpush.msra.mxu0 0.0
  %401 = vmatpush.msra.mxu0 0.0
  %402 = vmatpush.msra.mxu0 %v385
  %403 = vmatmul.f32.gmra.mxu0 %v382
  %v404 = vpop.f32.mrf.mxu0
  %v405 = vadd.f32 0.0, %v404
  %406 = vdwg.mxu0
  %v407 = vadd.f32 %v350, %v405
  %v408 = vld [vmem:[%s0 + $0x2] sm:$0x3f]
  %409 = vrot.lane.b32.xlu0 %v75, 15
  %v410 = vpop.permute.xlu0 %409
  %v411 = vrot.slane %v410, 6
  %v412 = vsel %vm210, %v411, %v410
  %v414 = vmul.f32 %v408, %v412
  %416 = vst [vmem:[#allocation1] ss:$4 sm:$0xff] %v414
  %v417 = vld.sshfl [vmem:[#allocation1] sm:$0xff pattern:$0x73625140]
  %v418 = vld.sshfl [vmem:[#allocation1 + $0x8] sm:$0xff pattern:$0x73625140]
  %v419 = vld.sshfl [vmem:[#allocation1 + $0x10] sm:$0xff pattern:$0x73625140]
  %420 = vrot.lane.b32.xlu0 %v417, 113
  %v421 = vpop.permute.xlu0 %420
  %422 = vrot.lane.b32.xlu0 %v418, 113
  %v423 = vpop.permute.xlu0 %422
  %424 = vrot.lane.b32.xlu0 %v419, 113
  %v425 = vpop.permute.xlu0 %424
  %v426 = vsel %vm195, %v421, %v423
  %v427 = vsel %vm195, %v423, %v425
  %v430 = vsel %vm74, %v426, 0.0
  %v431 = vsel %vm74, %v427, 0.0
  %v432 = vadd.f32 %v430, %v431
  %433 = vadd.xlane.f32.xlu0 %v432
  %v434 = vpop.xlane.xlu0 %433
  %v435 = vmul.f32 %v434, 0.00390625
  %s436 = scalar_lea.vmem %s3, 48
  %v437 = vld [vmem:[%s436] sm:$0xff]
  %v439 = vsel %vm106, %v437, 0
  %v442 = vsel %vm74, %v435, 0
  %444 = vmatpush.msra.mxu0 0.0
  %445 = vmatpush.msra.mxu0 0.0
  %446 = vmatpush.msra.mxu0 0.0
  %447 = vmatpush.msra.mxu0 0.0
  %448 = vmatpush.msra.mxu0 0.0
  %449 = vmatpush.msra.mxu0 0.0
  %450 = vmatpush.msra.mxu0 0.0
  %451 = vmatpush.msra.mxu0 0.0
  %452 = vmatpush.msra.mxu0 0.0
  %453 = vmatpush.msra.mxu0 0.0
  %454 = vmatpush.msra.mxu0 0.0
  %455 = vmatpush.msra.mxu0 0.0
  %456 = vmatpush.msra.mxu0 0.0
  %457 = vmatpush.msra.mxu0 0.0
  %458 = vmatpush.msra.mxu0 0.0
  %459 = vmatpush.msra.mxu0 %v442
  %460 = vmatmul.f32.gmra.mxu0 %v439
  %v461 = vpop.f32.mrf.mxu0
  %v462 = vadd.f32 0.0, %v461
  %463 = vdwg.mxu0
  %v464 = vadd.f32 %v407, %v462
  %v465 = vld [vmem:[%s0 + $0x2] sm:$0x3f]
  %467 = vst [vmem:[#allocation1] ss:$4 sm:$0xff] %v465
  %v468 = vld.sshfl [vmem:[#allocation1] sm:$0xff pattern:$0x73625140]
  %v469 = vld.sshfl [vmem:[#allocation1 + $0x8] sm:$0xff pattern:$0x73625140]
  %v470 = vld.sshfl [vmem:[#allocation1 + $0x10] sm:$0xff pattern:$0x73625140]
  %471 = vrot.lane.b32.xlu0 %v468, 112
  %v472 = vpop.permute.xlu0 %471
  %473 = vrot.lane.b32.xlu0 %v469, 112
  %v474 = vpop.permute.xlu0 %473
  %475 = vrot.lane.b32.xlu0 %v470, 112
  %v476 = vpop.permute.xlu0 %475
  %vm477 = vcmask 916480
  %v478 = vsel %vm477, %v472, %v474
  %v479 = vsel %vm477, %v474, %v476
  %v482 = vsel %vm74, %v478, 0.0
  %v483 = vsel %vm74, %v479, 0.0
  %v484 = vadd.f32 %v482, %v483
  %485 = vadd.xlane.f32.xlu0 %v484
  %v486 = vpop.xlane.xlu0 %485
  %v487 = vmul.f32 %v486, 0.00390625
  %s488 = scalar_lea.vmem %s3, 56
  %v489 = vld [vmem:[%s488] sm:$0xff]
  %v491 = vsel %vm106, %v489, 0
  %v494 = vsel %vm74, %v487, 0
  %496 = vmatpush.msra.mxu0 0.0
  %497 = vmatpush.msra.mxu0 0.0
  %498 = vmatpush.msra.mxu0 0.0
  %499 = vmatpush.msra.mxu0 0.0
  %500 = vmatpush.msra.mxu0 0.0
  %501 = vmatpush.msra.mxu0 0.0
  %502 = vmatpush.msra.mxu0 0.0
  %503 = vmatpush.msra.mxu0 0.0
  %504 = vmatpush.msra.mxu0 0.0
  %505 = vmatpush.msra.mxu0 0.0
  %506 = vmatpush.msra.mxu0 0.0
  %507 = vmatpush.msra.mxu0 0.0
  %508 = vmatpush.msra.mxu0 0.0
  %509 = vmatpush.msra.mxu0 0.0
  %510 = vmatpush.msra.mxu0 0.0
  %511 = vmatpush.msra.mxu0 %v494
  %512 = vmatmul.f32.gmra.mxu0 %v491
  %v513 = vpop.f32.mrf.mxu0
  %v514 = vadd.f32 0.0, %v513
  %515 = vdwg.mxu0
  %v516 = vadd.f32 %v464, %v514
  %v517 = vld [vmem:[%s0 + $0x2] sm:$0x3f]
  %518 = vrot.lane.b32.xlu0 %v191, 17
  %v519 = vpop.permute.xlu0 %518
  %v520 = vrot.slane %v519, 6
  %v521 = vsel %vm94, %v520, %v519
  %v523 = vmul.f32 %v517, %v521
  %525 = vst [vmem:[#allocation1] ss:$4 sm:$0xff] %v523
  %v526 = vld.sshfl [vmem:[#allocation1] sm:$0xff pattern:$0x73625140]
  %v527 = vld.sshfl [vmem:[#allocation1 + $0x8] sm:$0xff pattern:$0x73625140]
  %v528 = vld.sshfl [vmem:[#allocation1 + $0x10] sm:$0xff pattern:$0x73625140]
  %529 = vrot.lane.b32.xlu0 %v526, 111
  %v530 = vpop.permute.xlu0 %529
  %531 = vrot.lane.b32.xlu0 %v527, 111
  %v532 = vpop.permute.xlu0 %531
  %533 = vrot.lane.b32.xlu0 %v528, 111
  %v534 = vpop.permute.xlu0 %533
  %v535 = vsel %vm79, %v530, %v532
  %v536 = vsel %vm79, %v532, %v534
  %v539 = vsel %vm74, %v535, 0.0
  %v540 = vsel %vm74, %v536, 0.0
  %v541 = vadd.f32 %v539, %v540
  %542 = vadd.xlane.f32.xlu0 %v541
  %v543 = vpop.xlane.xlu0 %542
  %v544 = vmul.f32 %v543, 0.00390625
  %s545 = scalar_lea.vmem %s3, 64
  %v546 = vld [vmem:[%s545] sm:$0xff]
  %v548 = vsel %vm106, %v546, 0
  %v551 = vsel %vm74, %v544, 0
  %553 = vmatpush.msra.mxu0 0.0
  %554 = vmatpush.msra.mxu0 0.0
  %555 = vmatpush.msra.mxu0 0.0
  %556 = vmatpush.msra.mxu0 0.0
  %557 = vmatpush.msra.mxu0 0.0
  %558 = vmatpush.msra.mxu0 0.0
  %559 = vmatpush.msra.mxu0 0.0
  %560 = vmatpush.msra.mxu0 0.0
  %561 = vmatpush.msra.mxu0 0.0
  %562 = vmatpush.msra.mxu0 0.0
  %563 = vmatpush.msra.mxu0 0.0
  %564 = vmatpush.msra.mxu0 0.0
  %565 = vmatpush.msra.mxu0 0.0
  %566 = vmatpush.msra.mxu0 0.0
  %567 = vmatpush.msra.mxu0 0.0
  %568 = vmatpush.msra.mxu0 %v551
  %569 = vmatmul.f32.gmra.mxu0 %v548
  %v570 = vpop.f32.mrf.mxu0
  %v571 = vadd.f32 0.0, %v570
  %572 = vdwg.mxu0
  %v573 = vadd.f32 %v516, %v571
  %v574 = vsel %vm269, %v573, -inf
  %v575 = vrot.slane %v574, 4
  %v576 = vmax.f32 %v574, %v575
  %v577 = vrot.slane %v576, 2
  %v578 = vmax.f32 %v576, %v577
  %v579 = vrot.slane %v578, 1
  %v580 = vmax.f32 %v578, %v579
  %v581 = vsel %vm269, %v67, -inf
  %v582 = vrot.slane %v581, 4
  %v583 = vmax.f32 %v581, %v582
  %v584 = vrot.slane %v583, 2
  %v585 = vmax.f32 %v583, %v584
  %v586 = vrot.slane %v585, 1
  %v587 = vmax.f32 %v585, %v586
  %v588 = vmax.f32 %v580, %v587
  %v589 = vsub.f32 %v573, %v588
  %v590 = vmul.f32 %v589, 1.442695
  %v591 = vpow.pop %v590
  %v592 = vsub.f32 %v67, %v588
  %v593 = vmul.f32 %v592, 1.442695
  %v594 = vpow.pop %v593
  %v595 = vsel %vm269, %v591, 0.0
  %v596 = vrot.slane %v595, 4
  %v597 = vadd.f32 %v595, %v596
  %v598 = vrot.slane %v597, 2
  %v599 = vadd.f32 %v597, %v598
  %v600 = vrot.slane %v599, 1
  %v601 = vadd.f32 %v599, %v600
  %v602 = vsel %vm269, %v594, 0.0
  %v603 = vrot.slane %v602, 4
  %v604 = vadd.f32 %v602, %v603
  %v605 = vrot.slane %v604, 2
  %v606 = vadd.f32 %v604, %v605
  %v607 = vrot.slane %v606, 1
  %v608 = vadd.f32 %v606, %v607
  %v609 = vadd.f32 %v601, %v608
  %v610 = vrcp.pop %v609
  %v611 = vmul.f32 %v591, %v610
  %v612 = vmul.f32 %v594, %v610
  %614 = vset.pattern.permute.xlu0 0
  %615 = vperm.xlu0 %614, %v612
  %v616 = vpop.permute.xlu0 %615
  %v618 = vmul.f32 %v26, %v616
  %v619 = vmul.f32 %v27, %v611
  %621 = vset.pattern.permute.xlu0 0
  %622 = vperm.xlu0 %621, %v619
  %v623 = vpop.permute.xlu0 %622
  %625 = vst [vmem:[#allocation1] ss:$2 sm:$0xff] %v28
  %v626 = vld.sshfl [vmem:[#allocation1] sm:$0xff pattern:$0x75316420]
  %v627 = vld.sshfl [vmem:[#allocation1 + $0x8] sm:$0xff pattern:$0x75316420]
  %v629 = vsel %vm42, %v618, 0
  %v631 = vsel %vm35, %v626, 0
  %v633 = vsel %vm35, %v627, 0
  %635 = vmatpush.msra.mxu0 0.0
  %636 = vmatpush.msra.mxu0 0.0
  %637 = vmatpush.msra.mxu0 0.0
  %638 = vmatpush.msra.mxu0 0.0
  %639 = vmatpush.msra.mxu0 0.0
  %640 = vmatpush.msra.mxu0 0.0
  %641 = vmatpush.msra.mxu0 0.0
  %642 = vmatpush.msra.mxu0 0.0
  %643 = vmatpush.msra.mxu0 0.0
  %644 = vmatpush.msra.mxu0 0.0
  %645 = vmatpush.msra.mxu0 0.0
  %646 = vmatpush.msra.mxu0 0.0
  %647 = vmatpush.msra.mxu0 0.0
  %648 = vmatpush.msra.mxu0 0.0
  %649 = vmatpush.msra.mxu0 0.0
  %650 = vmatpush.msra.mxu0 %v631
  %651 = vmatmul.f32.gmra.mxu0 %v629
  %v652 = vpop.f32.mrf.mxu0
  %v653 = vadd.f32 %v623, %v652
  %654 = vdwg.mxu0
  %655 = vmatpush.msra.mxu0 0.0
  %656 = vmatpush.msra.mxu0 0.0
  %657 = vmatpush.msra.mxu0 0.0
  %658 = vmatpush.msra.mxu0 0.0
  %659 = vmatpush.msra.mxu0 0.0
  %660 = vmatpush.msra.mxu0 0.0
  %661 = vmatpush.msra.mxu0 0.0
  %662 = vmatpush.msra.mxu0 0.0
  %663 = vmatpush.msra.mxu0 0.0
  %664 = vmatpush.msra.mxu0 0.0
  %665 = vmatpush.msra.mxu0 0.0
  %666 = vmatpush.msra.mxu0 0.0
  %667 = vmatpush.msra.mxu0 0.0
  %668 = vmatpush.msra.mxu0 0.0
  %669 = vmatpush.msra.mxu0 0.0
  %670 = vmatpush.msra.mxu0 %v633
  %671 = vmatmul.f32.gmra.mxu0 %v629
  %v672 = vpop.f32.mrf.mxu0
  %v673 = vadd.f32 %v623, %v672
  %674 = vdwg.mxu0
  %676 = vset.pattern.permute.xlu0 0
  %677 = vperm.xlu0 %676, %v611
  %v678 = vpop.permute.xlu0 %677
  %v680 = vmul.f32 %v105, %v678
  %681 = vst [vmem:[#allocation1] ss:$4 sm:$0xff] %v82
  %v682 = vld.sshfl [vmem:[#allocation1] sm:$0xff pattern:$0x73625140]
  %v683 = vld.sshfl [vmem:[#allocation1 + $0x8] sm:$0xff pattern:$0x73625140]
  %v684 = vld.sshfl [vmem:[#allocation1 + $0x10] sm:$0xff pattern:$0x73625140]
  %685 = vrot.lane.b32.xlu0 %v682, 17
  %v686 = vpop.permute.xlu0 %685
  %687 = vrot.lane.b32.xlu0 %v683, 17
  %v688 = vpop.permute.xlu0 %687
  %689 = vrot.lane.b32.xlu0 %v684, 17
  %v690 = vpop.permute.xlu0 %689
  %v691 = vsel %vm94, %v686, %v688
  %v692 = vsel %vm94, %v688, %v690
  %v694 = vsel %vm106, %v680, 0
  %v696 = vsel %vm74, %v691, 0
  %v698 = vsel %vm74, %v692, 0
  %700 = vmatpush.msra.mxu0 0.0
  %701 = vmatpush.msra.mxu0 0.0
  %702 = vmatpush.msra.mxu0 0.0
  %703 = vmatpush.msra.mxu0 0.0
  %704 = vmatpush.msra.mxu0 0.0
  %705 = vmatpush.msra.mxu0 0.0
  %706 = vmatpush.msra.mxu0 0.0
  %707 = vmatpush.msra.mxu0 0.0
  %708 = vmatpush.msra.mxu0 0.0
  %709 = vmatpush.msra.mxu0 0.0
  %710 = vmatpush.msra.mxu0 0.0
  %711 = vmatpush.msra.mxu0 0.0
  %712 = vmatpush.msra.mxu0 0.0
  %713 = vmatpush.msra.mxu0 0.0
  %714 = vmatpush.msra.mxu0 0.0
  %715 = vmatpush.msra.mxu0 %v696
  %716 = vmatmul.f32.gmra.mxu0 %v694
  %v717 = vpop.f32.mrf.mxu0
  %v718 = vadd.f32 0.0, %v717
  %719 = vdwg.mxu0
  %720 = vmatpush.msra.mxu0 0.0
  %721 = vmatpush.msra.mxu0 0.0
  %722 = vmatpush.msra.mxu0 0.0
  %723 = vmatpush.msra.mxu0 0.0
  %724 = vmatpush.msra.mxu0 0.0
  %725 = vmatpush.msra.mxu0 0.0
  %726 = vmatpush.msra.mxu0 0.0
  %727 = vmatpush.msra.mxu0 0.0
  %728 = vmatpush.msra.mxu0 0.0
  %729 = vmatpush.msra.mxu0 0.0
  %730 = vmatpush.msra.mxu0 0.0
  %731 = vmatpush.msra.mxu0 0.0
  %732 = vmatpush.msra.mxu0 0.0
  %733 = vmatpush.msra.mxu0 0.0
  %734 = vmatpush.msra.mxu0 0.0
  %735 = vmatpush.msra.mxu0 %v698
  %736 = vmatmul.f32.gmra.mxu0 %v694
  %v737 = vpop.f32.mrf.mxu0
  %v738 = vadd.f32 0.0, %v737
  %739 = vdwg.mxu0
  %v740 = vadd.f32 %v653, %v718
  %v741 = vadd.f32 %v673, %v738
  %v742 = vmul.f32 %v158, %v678
  %743 = vst [vmem:[#allocation1] ss:$4 sm:$0xff] %v134
  %v744 = vld.sshfl [vmem:[#allocation1] sm:$0xff pattern:$0x73625140]
  %v745 = vld.sshfl [vmem:[#allocation1 + $0x8] sm:$0xff pattern:$0x73625140]
  %v746 = vld.sshfl [vmem:[#allocation1 + $0x10] sm:$0xff pattern:$0x73625140]
  %747 = vrot.lane.b32.xlu0 %v744, 16
  %v748 = vpop.permute.xlu0 %747
  %749 = vrot.lane.b32.xlu0 %v745, 16
  %v750 = vpop.permute.xlu0 %749
  %751 = vrot.lane.b32.xlu0 %v746, 16
  %v752 = vpop.permute.xlu0 %751
  %v753 = vsel %vm146, %v748, %v750
  %v754 = vsel %vm146, %v750, %v752
  %v756 = vsel %vm106, %v742, 0
  %v758 = vsel %vm74, %v753, 0
  %v760 = vsel %vm74, %v754, 0
  %762 = vmatpush.msra.mxu0 0.0
  %763 = vmatpush.msra.mxu0 0.0
  %764 = vmatpush.msra.mxu0 0.0
  %765 = vmatpush.msra.mxu0 0.0
  %766 = vmatpush.msra.mxu0 0.0
  %767 = vmatpush.msra.mxu0 0.0
  %768 = vmatpush.msra.mxu0 0.0
  %769 = vmatpush.msra.mxu0 0.0
  %770 = vmatpush.msra.mxu0 0.0
  %771 = vmatpush.msra.mxu0 0.0
  %772 = vmatpush.msra.mxu0 0.0
  %773 = vmatpush.msra.mxu0 0.0
  %774 = vmatpush.msra.mxu0 0.0
  %775 = vmatpush.msra.mxu0 0.0
  %776 = vmatpush.msra.mxu0 0.0
  %777 = vmatpush.msra.mxu0 %v758
  %778 = vmatmul.f32.gmra.mxu0 %v756
  %v779 = vpop.f32.mrf.mxu0
  %v780 = vadd.f32 0.0, %v779
  %781 = vdwg.mxu0
  %782 = vmatpush.msra.mxu0 0.0
  %783 = vmatpush.msra.mxu0 0.0
  %784 = vmatpush.msra.mxu0 0.0
  %785 = vmatpush.msra.mxu0 0.0
  %786 = vmatpush.msra.mxu0 0.0
  %787 = vmatpush.msra.mxu0 0.0
  %788 = vmatpush.msra.mxu0 0.0
  %789 = vmatpush.msra.mxu0 0.0
  %790 = vmatpush.msra.mxu0 0.0
  %791 = vmatpush.msra.mxu0 0.0
  %792 = vmatpush.msra.mxu0 0.0
  %793 = vmatpush.msra.mxu0 0.0
  %794 = vmatpush.msra.mxu0 0.0
  %795 = vmatpush.msra.mxu0 0.0
  %796 = vmatpush.msra.mxu0 0.0
  %797 = vmatpush.msra.mxu0 %v760
  %798 = vmatmul.f32.gmra.mxu0 %v756
  %v799 = vpop.f32.mrf.mxu0
  %v800 = vadd.f32 0.0, %v799
  %801 = vdwg.mxu0
  %v802 = vadd.f32 %v740, %v780
  %v803 = vadd.f32 %v741, %v800
  %v804 = vmul.f32 %v222, %v678
  %805 = vst [vmem:[#allocation1] ss:$4 sm:$0xff] %v198
  %v806 = vld.sshfl [vmem:[#allocation1] sm:$0xff pattern:$0x73625140]
  %v807 = vld.sshfl [vmem:[#allocation1 + $0x8] sm:$0xff pattern:$0x73625140]
  %v808 = vld.sshfl [vmem:[#allocation1 + $0x10] sm:$0xff pattern:$0x73625140]
  %809 = vrot.lane.b32.xlu0 %v806, 15
  %v810 = vpop.permute.xlu0 %809
  %811 = vrot.lane.b32.xlu0 %v807, 15
  %v812 = vpop.permute.xlu0 %811
  %813 = vrot.lane.b32.xlu0 %v808, 15
  %v814 = vpop.permute.xlu0 %813
  %v815 = vsel %vm210, %v810, %v812
  %v816 = vsel %vm210, %v812, %v814
  %v818 = vsel %vm106, %v804, 0
  %v820 = vsel %vm74, %v815, 0
  %v822 = vsel %vm74, %v816, 0
  %824 = vmatpush.msra.mxu0 0.0
  %825 = vmatpush.msra.mxu0 0.0
  %826 = vmatpush.msra.mxu0 0.0
  %827 = vmatpush.msra.mxu0 0.0
  %828 = vmatpush.msra.mxu0 0.0
  %829 = vmatpush.msra.mxu0 0.0
  %830 = vmatpush.msra.mxu0 0.0
  %831 = vmatpush.msra.mxu0 0.0
  %832 = vmatpush.msra.mxu0 0.0
  %833 = vmatpush.msra.mxu0 0.0
  %834 = vmatpush.msra.mxu0 0.0
  %835 = vmatpush.msra.mxu0 0.0
  %836 = vmatpush.msra.mxu0 0.0
  %837 = vmatpush.msra.mxu0 0.0
  %838 = vmatpush.msra.mxu0 0.0
  %839 = vmatpush.msra.mxu0 %v820
  %840 = vmatmul.f32.gmra.mxu0 %v818
  %v841 = vpop.f32.mrf.mxu0
  %v842 = vadd.f32 0.0, %v841
  %843 = vdwg.mxu0
  %844 = vmatpush.msra.mxu0 0.0
  %845 = vmatpush.msra.mxu0 0.0
  %846 = vmatpush.msra.mxu0 0.0
  %847 = vmatpush.msra.mxu0 0.0
  %848 = vmatpush.msra.mxu0 0.0
  %849 = vmatpush.msra.mxu0 0.0
  %850 = vmatpush.msra.mxu0 0.0
  %851 = vmatpush.msra.mxu0 0.0
  %852 = vmatpush.msra.mxu0 0.0
  %853 = vmatpush.msra.mxu0 0.0
  %854 = vmatpush.msra.mxu0 0.0
  %855 = vmatpush.msra.mxu0 0.0
  %856 = vmatpush.msra.mxu0 0.0
  %857 = vmatpush.msra.mxu0 0.0
  %858 = vmatpush.msra.mxu0 0.0
  %859 = vmatpush.msra.mxu0 %v822
  %860 = vmatmul.f32.gmra.mxu0 %v818
  %v861 = vpop.f32.mrf.mxu0
  %v862 = vadd.f32 0.0, %v861
  %863 = vdwg.mxu0
  %v864 = vadd.f32 %v802, %v842
  %v865 = vadd.f32 %v803, %v862
  %v866 = vmul.f32 %v281, %v678
  %867 = vst [vmem:[#allocation1] ss:$4 sm:$0xff] %v257
  %v868 = vld.sshfl [vmem:[#allocation1] sm:$0xff pattern:$0x73625140]
  %v869 = vld.sshfl [vmem:[#allocation1 + $0x8] sm:$0xff pattern:$0x73625140]
  %v870 = vld.sshfl [vmem:[#allocation1 + $0x10] sm:$0xff pattern:$0x73625140]
  %871 = vrot.lane.b32.xlu0 %v868, 1
  %v872 = vpop.permute.xlu0 %871
  %873 = vrot.lane.b32.xlu0 %v869, 1
  %v874 = vpop.permute.xlu0 %873
  %875 = vrot.lane.b32.xlu0 %v870, 1
  %v876 = vpop.permute.xlu0 %875
  %v877 = vsel %vm269, %v872, %v874
  %v878 = vsel %vm269, %v874, %v876
  %v880 = vsel %vm106, %v866, 0
  %v882 = vsel %vm74, %v877, 0
  %v884 = vsel %vm74, %v878, 0
  %886 = vmatpush.msra.mxu0 0.0
  %887 = vmatpush.msra.mxu0 0.0
  %888 = vmatpush.msra.mxu0 0.0
  %889 = vmatpush.msra.mxu0 0.0
  %890 = vmatpush.msra.mxu0 0.0
  %891 = vmatpush.msra.mxu0 0.0
  %892 = vmatpush.msra.mxu0 0.0
  %893 = vmatpush.msra.mxu0 0.0
  %894 = vmatpush.msra.mxu0 0.0
  %895 = vmatpush.msra.mxu0 0.0
  %896 = vmatpush.msra.mxu0 0.0
  %897 = vmatpush.msra.mxu0 0.0
  %898 = vmatpush.msra.mxu0 0.0
  %899 = vmatpush.msra.mxu0 0.0
  %900 = vmatpush.msra.mxu0 0.0
  %901 = vmatpush.msra.mxu0 %v882
  %902 = vmatmul.f32.gmra.mxu0 %v880
  %v903 = vpop.f32.mrf.mxu0
  %v904 = vadd.f32 0.0, %v903
  %905 = vdwg.mxu0
  %906 = vmatpush.msra.mxu0 0.0
  %907 = vmatpush.msra.mxu0 0.0
  %908 = vmatpush.msra.mxu0 0.0
  %909 = vmatpush.msra.mxu0 0.0
  %910 = vmatpush.msra.mxu0 0.0
  %911 = vmatpush.msra.mxu0 0.0
  %912 = vmatpush.msra.mxu0 0.0
  %913 = vmatpush.msra.mxu0 0.0
  %914 = vmatpush.msra.mxu0 0.0
  %915 = vmatpush.msra.mxu0 0.0
  %916 = vmatpush.msra.mxu0 0.0
  %917 = vmatpush.msra.mxu0 0.0
  %918 = vmatpush.msra.mxu0 0.0
  %919 = vmatpush.msra.mxu0 0.0
  %920 = vmatpush.msra.mxu0 0.0
  %921 = vmatpush.msra.mxu0 %v884
  %922 = vmatmul.f32.gmra.mxu0 %v880
  %v923 = vpop.f32.mrf.mxu0
  %v924 = vadd.f32 0.0, %v923
  %925 = vdwg.mxu0
  %v926 = vadd.f32 %v864, %v904
  %v927 = vadd.f32 %v865, %v924
  %v928 = vmul.f32 %v323, %v678
  %929 = vst [vmem:[#allocation1] ss:$4 sm:$0xff] %v309
  %v930 = vld.sshfl [vmem:[#allocation1] sm:$0xff pattern:$0x73625140]
  %v931 = vld.sshfl [vmem:[#allocation1 + $0x8] sm:$0xff pattern:$0x73625140]
  %v933 = vsel %vm106, %v928, 0
  %v935 = vsel %vm74, %v930, 0
  %v937 = vsel %vm74, %v931, 0
  %939 = vmatpush.msra.mxu0 0.0
  %940 = vmatpush.msra.mxu0 0.0
  %941 = vmatpush.msra.mxu0 0.0
  %942 = vmatpush.msra.mxu0 0.0
  %943 = vmatpush.msra.mxu0 0.0
  %944 = vmatpush.msra.mxu0 0.0
  %945 = vmatpush.msra.mxu0 0.0
  %946 = vmatpush.msra.mxu0 0.0
  %947 = vmatpush.msra.mxu0 0.0
  %948 = vmatpush.msra.mxu0 0.0
  %949 = vmatpush.msra.mxu0 0.0
  %950 = vmatpush.msra.mxu0 0.0
  %951 = vmatpush.msra.mxu0 0.0
  %952 = vmatpush.msra.mxu0 0.0
  %953 = vmatpush.msra.mxu0 0.0
  %954 = vmatpush.msra.mxu0 %v935
  %955 = vmatmul.f32.gmra.mxu0 %v933
  %v956 = vpop.f32.mrf.mxu0
  %v957 = vadd.f32 0.0, %v956
  %958 = vdwg.mxu0
  %959 = vmatpush.msra.mxu0 0.0
  %960 = vmatpush.msra.mxu0 0.0
  %961 = vmatpush.msra.mxu0 0.0
  %962 = vmatpush.msra.mxu0 0.0
  %963 = vmatpush.msra.mxu0 0.0
  %964 = vmatpush.msra.mxu0 0.0
  %965 = vmatpush.msra.mxu0 0.0
  %966 = vmatpush.msra.mxu0 0.0
  %967 = vmatpush.msra.mxu0 0.0
  %968 = vmatpush.msra.mxu0 0.0
  %969 = vmatpush.msra.mxu0 0.0
  %970 = vmatpush.msra.mxu0 0.0
  %971 = vmatpush.msra.mxu0 0.0
  %972 = vmatpush.msra.mxu0 0.0
  %973 = vmatpush.msra.mxu0 0.0
  %974 = vmatpush.msra.mxu0 %v937
  %975 = vmatmul.f32.gmra.mxu0 %v933
  %v976 = vpop.f32.mrf.mxu0
  %v977 = vadd.f32 0.0, %v976
  %978 = vdwg.mxu0
  %v979 = vadd.f32 %v926, %v957
  %v980 = vadd.f32 %v927, %v977
  %v981 = vmul.f32 %v380, %v678
  %982 = vst [vmem:[#allocation1] ss:$4 sm:$0xff] %v357
  %v983 = vld.sshfl [vmem:[#allocation1] sm:$0xff pattern:$0x73625140]
  %v984 = vld.sshfl [vmem:[#allocation1 + $0x8] sm:$0xff pattern:$0x73625140]
  %v985 = vld.sshfl [vmem:[#allocation1 + $0x10] sm:$0xff pattern:$0x73625140]
  %986 = vrot.lane.b32.xlu0 %v983, 127
  %v987 = vpop.permute.xlu0 %986
  %988 = vrot.lane.b32.xlu0 %v984, 127
  %v989 = vpop.permute.xlu0 %988
  %990 = vrot.lane.b32.xlu0 %v985, 127
  %v991 = vpop.permute.xlu0 %990
  %v992 = vsel %vm254, %v987, %v989
  %v993 = vsel %vm254, %v989, %v991
  %v995 = vsel %vm106, %v981, 0
  %v997 = vsel %vm74, %v992, 0
  %v999 = vsel %vm74, %v993, 0
  %1001 = vmatpush.msra.mxu0 0.0
  %1002 = vmatpush.msra.mxu0 0.0
  %1003 = vmatpush.msra.mxu0 0.0
  %1004 = vmatpush.msra.mxu0 0.0
  %1005 = vmatpush.msra.mxu0 0.0
  %1006 = vmatpush.msra.mxu0 0.0
  %1007 = vmatpush.msra.mxu0 0.0
  %1008 = vmatpush.msra.mxu0 0.0
  %1009 = vmatpush.msra.mxu0 0.0
  %1010 = vmatpush.msra.mxu0 0.0
  %1011 = vmatpush.msra.mxu0 0.0
  %1012 = vmatpush.msra.mxu0 0.0
  %1013 = vmatpush.msra.mxu0 0.0
  %1014 = vmatpush.msra.mxu0 0.0
  %1015 = vmatpush.msra.mxu0 0.0
  %1016 = vmatpush.msra.mxu0 %v997
  %1017 = vmatmul.f32.gmra.mxu0 %v995
  %v1018 = vpop.f32.mrf.mxu0
  %v1019 = vadd.f32 0.0, %v1018
  %1020 = vdwg.mxu0
  %1021 = vmatpush.msra.mxu0 0.0
  %1022 = vmatpush.msra.mxu0 0.0
  %1023 = vmatpush.msra.mxu0 0.0
  %1024 = vmatpush.msra.mxu0 0.0
  %1025 = vmatpush.msra.mxu0 0.0
  %1026 = vmatpush.msra.mxu0 0.0
  %1027 = vmatpush.msra.mxu0 0.0
  %1028 = vmatpush.msra.mxu0 0.0
  %1029 = vmatpush.msra.mxu0 0.0
  %1030 = vmatpush.msra.mxu0 0.0
  %1031 = vmatpush.msra.mxu0 0.0
  %1032 = vmatpush.msra.mxu0 0.0
  %1033 = vmatpush.msra.mxu0 0.0
  %1034 = vmatpush.msra.mxu0 0.0
  %1035 = vmatpush.msra.mxu0 0.0
  %1036 = vmatpush.msra.mxu0 %v999
  %1037 = vmatmul.f32.gmra.mxu0 %v995
  %v1038 = vpop.f32.mrf.mxu0
  %v1039 = vadd.f32 0.0, %v1038
  %1040 = vdwg.mxu0
  %v1041 = vadd.f32 %v979, %v1019
  %v1042 = vadd.f32 %v980, %v1039
  %v1043 = vmul.f32 %v437, %v678
  %1044 = vst [vmem:[#allocation1] ss:$4 sm:$0xff] %v414
  %v1045 = vld.sshfl [vmem:[#allocation1] sm:$0xff pattern:$0x73625140]
  %v1046 = vld.sshfl [vmem:[#allocation1 + $0x8] sm:$0xff pattern:$0x73625140]
  %v1047 = vld.sshfl [vmem:[#allocation1 + $0x10] sm:$0xff pattern:$0x73625140]
  %1048 = vrot.lane.b32.xlu0 %v1045, 113
  %v1049 = vpop.permute.xlu0 %1048
  %1050 = vrot.lane.b32.xlu0 %v1046, 113
  %v1051 = vpop.permute.xlu0 %1050
  %1052 = vrot.lane.b32.xlu0 %v1047, 113
  %v1053 = vpop.permute.xlu0 %1052
  %v1054 = vsel %vm195, %v1049, %v1051
  %v1055 = vsel %vm195, %v1051, %v1053
  %v1057 = vsel %vm106, %v1043, 0
  %v1059 = vsel %vm74, %v1054, 0
  %v1061 = vsel %vm74, %v1055, 0
  %1063 = vmatpush.msra.mxu0 0.0
  %1064 = vmatpush.msra.mxu0 0.0
  %1065 = vmatpush.msra.mxu0 0.0
  %1066 = vmatpush.msra.mxu0 0.0
  %1067 = vmatpush.msra.mxu0 0.0
  %1068 = vmatpush.msra.mxu0 0.0
  %1069 = vmatpush.msra.mxu0 0.0
  %1070 = vmatpush.msra.mxu0 0.0
  %1071 = vmatpush.msra.mxu0 0.0
  %1072 = vmatpush.msra.mxu0 0.0
  %1073 = vmatpush.msra.mxu0 0.0
  %1074 = vmatpush.msra.mxu0 0.0
  %1075 = vmatpush.msra.mxu0 0.0
  %1076 = vmatpush.msra.mxu0 0.0
  %1077 = vmatpush.msra.mxu0 0.0
  %1078 = vmatpush.msra.mxu0 %v1059
  %1079 = vmatmul.f32.gmra.mxu0 %v1057
  %v1080 = vpop.f32.mrf.mxu0
  %v1081 = vadd.f32 0.0, %v1080
  %1082 = vdwg.mxu0
  %1083 = vmatpush.msra.mxu0 0.0
  %1084 = vmatpush.msra.mxu0 0.0
  %1085 = vmatpush.msra.mxu0 0.0
  %1086 = vmatpush.msra.mxu0 0.0
  %1087 = vmatpush.msra.mxu0 0.0
  %1088 = vmatpush.msra.mxu0 0.0
  %1089 = vmatpush.msra.mxu0 0.0
  %1090 = vmatpush.msra.mxu0 0.0
  %1091 = vmatpush.msra.mxu0 0.0
  %1092 = vmatpush.msra.mxu0 0.0
  %1093 = vmatpush.msra.mxu0 0.0
  %1094 = vmatpush.msra.mxu0 0.0
  %1095 = vmatpush.msra.mxu0 0.0
  %1096 = vmatpush.msra.mxu0 0.0
  %1097 = vmatpush.msra.mxu0 0.0
  %1098 = vmatpush.msra.mxu0 %v1061
  %1099 = vmatmul.f32.gmra.mxu0 %v1057
  %v1100 = vpop.f32.mrf.mxu0
  %v1101 = vadd.f32 0.0, %v1100
  %1102 = vdwg.mxu0
  %v1103 = vadd.f32 %v1041, %v1081
  %v1104 = vadd.f32 %v1042, %v1101
  %v1105 = vmul.f32 %v489, %v678
  %1106 = vst [vmem:[#allocation1] ss:$4 sm:$0xff] %v465
  %v1107 = vld.sshfl [vmem:[#allocation1] sm:$0xff pattern:$0x73625140]
  %v1108 = vld.sshfl [vmem:[#allocation1 + $0x8] sm:$0xff pattern:$0x73625140]
  %v1109 = vld.sshfl [vmem:[#allocation1 + $0x10] sm:$0xff pattern:$0x73625140]
  %1110 = vrot.lane.b32.xlu0 %v1107, 112
  %v1111 = vpop.permute.xlu0 %1110
  %1112 = vrot.lane.b32.xlu0 %v1108, 112
  %v1113 = vpop.permute.xlu0 %1112
  %1114 = vrot.lane.b32.xlu0 %v1109, 112
  %v1115 = vpop.permute.xlu0 %1114
  %v1116 = vsel %vm477, %v1111, %v1113
  %v1117 = vsel %vm477, %v1113, %v1115
  %v1119 = vsel %vm106, %v1105, 0
  %v1121 = vsel %vm74, %v1116, 0
  %v1123 = vsel %vm74, %v1117, 0
  %1125 = vmatpush.msra.mxu0 0.0
  %1126 = vmatpush.msra.mxu0 0.0
  %1127 = vmatpush.msra.mxu0 0.0
  %1128 = vmatpush.msra.mxu0 0.0
  %1129 = vmatpush.msra.mxu0 0.0
  %1130 = vmatpush.msra.mxu0 0.0
  %1131 = vmatpush.msra.mxu0 0.0
  %1132 = vmatpush.msra.mxu0 0.0
  %1133 = vmatpush.msra.mxu0 0.0
  %1134 = vmatpush.msra.mxu0 0.0
  %1135 = vmatpush.msra.mxu0 0.0
  %1136 = vmatpush.msra.mxu0 0.0
  %1137 = vmatpush.msra.mxu0 0.0
  %1138 = vmatpush.msra.mxu0 0.0
  %1139 = vmatpush.msra.mxu0 0.0
  %1140 = vmatpush.msra.mxu0 %v1121
  %1141 = vmatmul.f32.gmra.mxu0 %v1119
  %v1142 = vpop.f32.mrf.mxu0
  %v1143 = vadd.f32 0.0, %v1142
  %1144 = vdwg.mxu0
  %1145 = vmatpush.msra.mxu0 0.0
  %1146 = vmatpush.msra.mxu0 0.0
  %1147 = vmatpush.msra.mxu0 0.0
  %1148 = vmatpush.msra.mxu0 0.0
  %1149 = vmatpush.msra.mxu0 0.0
  %1150 = vmatpush.msra.mxu0 0.0
  %1151 = vmatpush.msra.mxu0 0.0
  %1152 = vmatpush.msra.mxu0 0.0
  %1153 = vmatpush.msra.mxu0 0.0
  %1154 = vmatpush.msra.mxu0 0.0
  %1155 = vmatpush.msra.mxu0 0.0
  %1156 = vmatpush.msra.mxu0 0.0
  %1157 = vmatpush.msra.mxu0 0.0
  %1158 = vmatpush.msra.mxu0 0.0
  %1159 = vmatpush.msra.mxu0 0.0
  %1160 = vmatpush.msra.mxu0 %v1123
  %1161 = vmatmul.f32.gmra.mxu0 %v1119
  %v1162 = vpop.f32.mrf.mxu0
  %v1163 = vadd.f32 0.0, %v1162
  %1164 = vdwg.mxu0
  %v1165 = vadd.f32 %v1103, %v1143
  %v1166 = vadd.f32 %v1104, %v1163
  %v1167 = vmul.f32 %v546, %v678
  %1168 = vst [vmem:[#allocation1] ss:$4 sm:$0xff] %v523
  %v1169 = vld.sshfl [vmem:[#allocation1] sm:$0xff pattern:$0x73625140]
  %v1170 = vld.sshfl [vmem:[#allocation1 + $0x8] sm:$0xff pattern:$0x73625140]
  %v1171 = vld.sshfl [vmem:[#allocation1 + $0x10] sm:$0xff pattern:$0x73625140]
  %1172 = vrot.lane.b32.xlu0 %v1169, 111
  %v1173 = vpop.permute.xlu0 %1172
  %1174 = vrot.lane.b32.xlu0 %v1170, 111
  %v1175 = vpop.permute.xlu0 %1174
  %1176 = vrot.lane.b32.xlu0 %v1171, 111
  %v1177 = vpop.permute.xlu0 %1176
  %v1178 = vsel %vm79, %v1173, %v1175
  %v1179 = vsel %vm79, %v1175, %v1177
  %v1181 = vsel %vm106, %v1167, 0
  %v1183 = vsel %vm74, %v1178, 0
  %v1185 = vsel %vm74, %v1179, 0
  %1187 = vmatpush.msra.mxu0 0.0
  %1188 = vmatpush.msra.mxu0 0.0
  %1189 = vmatpush.msra.mxu0 0.0
  %1190 = vmatpush.msra.mxu0 0.0
  %1191 = vmatpush.msra.mxu0 0.0
  %1192 = vmatpush.msra.mxu0 0.0
  %1193 = vmatpush.msra.mxu0 0.0
  %1194 = vmatpush.msra.mxu0 0.0
  %1195 = vmatpush.msra.mxu0 0.0
  %1196 = vmatpush.msra.mxu0 0.0
  %1197 = vmatpush.msra.mxu0 0.0
  %1198 = vmatpush.msra.mxu0 0.0
  %1199 = vmatpush.msra.mxu0 0.0
  %1200 = vmatpush.msra.mxu0 0.0
  %1201 = vmatpush.msra.mxu0 0.0
  %1202 = vmatpush.msra.mxu0 %v1183
  %1203 = vmatmul.f32.gmra.mxu0 %v1181
  %v1204 = vpop.f32.mrf.mxu0
  %v1205 = vadd.f32 0.0, %v1204
  %1206 = vdwg.mxu0
  %1207 = vmatpush.msra.mxu0 0.0
  %1208 = vmatpush.msra.mxu0 0.0
  %1209 = vmatpush.msra.mxu0 0.0
  %1210 = vmatpush.msra.mxu0 0.0
  %1211 = vmatpush.msra.mxu0 0.0
  %1212 = vmatpush.msra.mxu0 0.0
  %1213 = vmatpush.msra.mxu0 0.0
  %1214 = vmatpush.msra.mxu0 0.0
  %1215 = vmatpush.msra.mxu0 0.0
  %1216 = vmatpush.msra.mxu0 0.0
  %1217 = vmatpush.msra.mxu0 0.0
  %1218 = vmatpush.msra.mxu0 0.0
  %1219 = vmatpush.msra.mxu0 0.0
  %1220 = vmatpush.msra.mxu0 0.0
  %1221 = vmatpush.msra.mxu0 0.0
  %1222 = vmatpush.msra.mxu0 %v1185
  %1223 = vmatmul.f32.gmra.mxu0 %v1181
  %v1224 = vpop.f32.mrf.mxu0
  %v1225 = vadd.f32 0.0, %v1224
  %1226 = vdwg.mxu0
  %v1227 = vadd.f32 %v1165, %v1205
  %v1228 = vadd.f32 %v1166, %v1225
  %1229 = vst [vmem:[%s6] sm:$0xff] %v1227
  %1230 = vst [vmem:[%s6 + $0x8] sm:$0xff] %v1228
  %s1231 = scalar_lea.vmem %s1, 8
  %v1232 = vld [vmem:[%s1231] sm:$0xff]
  %1234 = vst [vmem:[#allocation1] ss:$2 sm:$0xff] %v1232
  %v1235 = vld.sshfl [vmem:[#allocation1] sm:$0xff pattern:$0x75316420]
  %v1236 = vld.sshfl [vmem:[#allocation1 + $0x8] sm:$0xff pattern:$0x75316420]
  %v1239 = vsel %vm35, %v1235, 0.0
  %v1240 = vsel %vm35, %v1236, 0.0
  %v1241 = vadd.f32 %v1239, %v1240
  %1242 = vadd.xlane.f32.xlu0 %v1241
  %v1243 = vpop.xlane.xlu0 %1242
  %v1244 = vmul.f32 %v1243, 0.00390625
  %v1246 = vsel %vm35, %v1244, 0
  %1248 = vmatpush.msra.mxu0 0.0
  %1249 = vmatpush.msra.mxu0 0.0
  %1250 = vmatpush.msra.mxu0 0.0
  %1251 = vmatpush.msra.mxu0 0.0
  %1252 = vmatpush.msra.mxu0 0.0
  %1253 = vmatpush.msra.mxu0 0.0
  %1254 = vmatpush.msra.mxu0 0.0
  %1255 = vmatpush.msra.mxu0 0.0
  %1256 = vmatpush.msra.mxu0 0.0
  %1257 = vmatpush.msra.mxu0 0.0
  %1258 = vmatpush.msra.mxu0 0.0
  %1259 = vmatpush.msra.mxu0 0.0
  %1260 = vmatpush.msra.mxu0 0.0
  %1261 = vmatpush.msra.mxu0 0.0
  %1262 = vmatpush.msra.mxu0 0.0
  %1263 = vmatpush.msra.mxu0 %v1246
  %1264 = vmatmul.f32.gmra.mxu0 %v44
  %v1265 = vpop.f32.mrf.mxu0
  %v1266 = vadd.f32 0.0, %v1265
  %1267 = vdwg.mxu0
  %s1268 = scalar_lea.vmem %s0, 8
  %v1269 = vld [vmem:[%s1268] sm:$0x3f]
  %v1270 = vmul.f32 %v1269, %v80
  %1272 = vst [vmem:[#allocation1] ss:$4 sm:$0xff] %v1270
  %v1273 = vld.sshfl [vmem:[#allocation1] sm:$0xff pattern:$0x73625140]
  %v1274 = vld.sshfl [vmem:[#allocation1 + $0x8] sm:$0xff pattern:$0x73625140]
  %v1275 = vld.sshfl [vmem:[#allocation1 + $0x10] sm:$0xff pattern:$0x73625140]
  %1276 = vrot.lane.b32.xlu0 %v1273, 17
  %v1277 = vpop.permute.xlu0 %1276
  %1278 = vrot.lane.b32.xlu0 %v1274, 17
  %v1279 = vpop.permute.xlu0 %1278
  %1280 = vrot.lane.b32.xlu0 %v1275, 17
  %v1281 = vpop.permute.xlu0 %1280
  %v1282 = vsel %vm94, %v1277, %v1279
  %v1283 = vsel %vm94, %v1279, %v1281
  %v1286 = vsel %vm74, %v1282, 0.0
  %v1287 = vsel %vm74, %v1283, 0.0
  %v1288 = vadd.f32 %v1286, %v1287
  %1289 = vadd.xlane.f32.xlu0 %v1288
  %v1290 = vpop.xlane.xlu0 %1289
  %v1291 = vmul.f32 %v1290, 0.00390625
  %v1292 = vld [vmem:[%s3] sm:$0xff]
  %v1294 = vsel %vm106, %v1292, 0
  %v1297 = vsel %vm74, %v1291, 0
  %1299 = vmatpush.msra.mxu0 0.0
  %1300 = vmatpush.msra.mxu0 0.0
  %1301 = vmatpush.msra.mxu0 0.0
  %1302 = vmatpush.msra.mxu0 0.0
  %1303 = vmatpush.msra.mxu0 0.0
  %1304 = vmatpush.msra.mxu0 0.0
  %1305 = vmatpush.msra.mxu0 0.0
  %1306 = vmatpush.msra.mxu0 0.0
  %1307 = vmatpush.msra.mxu0 0.0
  %1308 = vmatpush.msra.mxu0 0.0
  %1309 = vmatpush.msra.mxu0 0.0
  %1310 = vmatpush.msra.mxu0 0.0
  %1311 = vmatpush.msra.mxu0 0.0
  %1312 = vmatpush.msra.mxu0 0.0
  %1313 = vmatpush.msra.mxu0 0.0
  %1314 = vmatpush.msra.mxu0 %v1297
  %1315 = vmatmul.f32.gmra.mxu0 %v1294
  %v1316 = vpop.f32.mrf.mxu0
  %v1317 = vadd.f32 0.0, %v1316
  %1318 = vdwg.mxu0
  %v1319 = vadd.f32 %v27, %v1317
  %v1320 = vld [vmem:[%s1268] sm:$0x3f]
  %1322 = vst [vmem:[#allocation1] ss:$4 sm:$0xff] %v1320
  %v1323 = vld.sshfl [vmem:[#allocation1] sm:$0xff pattern:$0x73625140]
  %v1324 = vld.sshfl [vmem:[#allocation1 + $0x8] sm:$0xff pattern:$0x73625140]
  %v1325 = vld.sshfl [vmem:[#allocation1 + $0x10] sm:$0xff pattern:$0x73625140]
  %1326 = vrot.lane.b32.xlu0 %v1323, 16
  %v1327 = vpop.permute.xlu0 %1326
  %1328 = vrot.lane.b32.xlu0 %v1324, 16
  %v1329 = vpop.permute.xlu0 %1328
  %1330 = vrot.lane.b32.xlu0 %v1325, 16
  %v1331 = vpop.permute.xlu0 %1330
  %v1332 = vsel %vm146, %v1327, %v1329
  %v1333 = vsel %vm146, %v1329, %v1331
  %v1336 = vsel %vm74, %v1332, 0.0
  %v1337 = vsel %vm74, %v1333, 0.0
  %v1338 = vadd.f32 %v1336, %v1337
  %1339 = vadd.xlane.f32.xlu0 %v1338
  %v1340 = vpop.xlane.xlu0 %1339
  %v1341 = vmul.f32 %v1340, 0.00390625
  %v1342 = vld [vmem:[%s157] sm:$0xff]
  %v1344 = vsel %vm106, %v1342, 0
  %v1347 = vsel %vm74, %v1341, 0
  %1349 = vmatpush.msra.mxu0 0.0
  %1350 = vmatpush.msra.mxu0 0.0
  %1351 = vmatpush.msra.mxu0 0.0
  %1352 = vmatpush.msra.mxu0 0.0
  %1353 = vmatpush.msra.mxu0 0.0
  %1354 = vmatpush.msra.mxu0 0.0
  %1355 = vmatpush.msra.mxu0 0.0
  %1356 = vmatpush.msra.mxu0 0.0
  %1357 = vmatpush.msra.mxu0 0.0
  %1358 = vmatpush.msra.mxu0 0.0
  %1359 = vmatpush.msra.mxu0 0.0
  %1360 = vmatpush.msra.mxu0 0.0
  %1361 = vmatpush.msra.mxu0 0.0
  %1362 = vmatpush.msra.mxu0 0.0
  %1363 = vmatpush.msra.mxu0 0.0
  %1364 = vmatpush.msra.mxu0 %v1347
  %1365 = vmatmul.f32.gmra.mxu0 %v1344
  %v1366 = vpop.f32.mrf.mxu0
  %v1367 = vadd.f32 0.0, %v1366
  %1368 = vdwg.mxu0
  %v1369 = vadd.f32 %v1319, %v1367
  %v1370 = vld [vmem:[%s1268] sm:$0x3f]
  %v1371 = vmul.f32 %v1370, %v196
  %1373 = vst [vmem:[#allocation1] ss:$4 sm:$0xff] %v1371
  %v1374 = vld.sshfl [vmem:[#allocation1] sm:$0xff pattern:$0x73625140]
  %v1375 = vld.sshfl [vmem:[#allocation1 + $0x8] sm:$0xff pattern:$0x73625140]
  %v1376 = vld.sshfl [vmem:[#allocation1 + $0x10] sm:$0xff pattern:$0x73625140]
  %1377 = vrot.lane.b32.xlu0 %v1374, 15
  %v1378 = vpop.permute.xlu0 %1377
  %1379 = vrot.lane.b32.xlu0 %v1375, 15
  %v1380 = vpop.permute.xlu0 %1379
  %1381 = vrot.lane.b32.xlu0 %v1376, 15
  %v1382 = vpop.permute.xlu0 %1381
  %v1383 = vsel %vm210, %v1378, %v1380
  %v1384 = vsel %vm210, %v1380, %v1382
  %v1387 = vsel %vm74, %v1383, 0.0
  %v1388 = vsel %vm74, %v1384, 0.0
  %v1389 = vadd.f32 %v1387, %v1388
  %1390 = vadd.xlane.f32.xlu0 %v1389
  %v1391 = vpop.xlane.xlu0 %1390
  %v1392 = vmul.f32 %v1391, 0.00390625
  %v1393 = vld [vmem:[%s221] sm:$0xff]
  %v1395 = vsel %vm106, %v1393, 0
  %v1398 = vsel %vm74, %v1392, 0
  %1400 = vmatpush.msra.mxu0 0.0
  %1401 = vmatpush.msra.mxu0 0.0
  %1402 = vmatpush.msra.mxu0 0.0
  %1403 = vmatpush.msra.mxu0 0.0
  %1404 = vmatpush.msra.mxu0 0.0
  %1405 = vmatpush.msra.mxu0 0.0
  %1406 = vmatpush.msra.mxu0 0.0
  %1407 = vmatpush.msra.mxu0 0.0
  %1408 = vmatpush.msra.mxu0 0.0
  %1409 = vmatpush.msra.mxu0 0.0
  %1410 = vmatpush.msra.mxu0 0.0
  %1411 = vmatpush.msra.mxu0 0.0
  %1412 = vmatpush.msra.mxu0 0.0
  %1413 = vmatpush.msra.mxu0 0.0
  %1414 = vmatpush.msra.mxu0 0.0
  %1415 = vmatpush.msra.mxu0 %v1398
  %1416 = vmatmul.f32.gmra.mxu0 %v1395
  %v1417 = vpop.f32.mrf.mxu0
  %v1418 = vadd.f32 0.0, %v1417
  %1419 = vdwg.mxu0
  %v1420 = vadd.f32 %v1369, %v1418
  %v1421 = vld [vmem:[%s1268] sm:$0x3f]
  %v1422 = vmul.f32 %v1421, %v255
  %1424 = vst [vmem:[#allocation1] ss:$4 sm:$0xff] %v1422
  %v1425 = vld.sshfl [vmem:[#allocation1] sm:$0xff pattern:$0x73625140]
  %v1426 = vld.sshfl [vmem:[#allocation1 + $0x8] sm:$0xff pattern:$0x73625140]
  %v1427 = vld.sshfl [vmem:[#allocation1 + $0x10] sm:$0xff pattern:$0x73625140]
  %1428 = vrot.lane.b32.xlu0 %v1425, 1
  %v1429 = vpop.permute.xlu0 %1428
  %1430 = vrot.lane.b32.xlu0 %v1426, 1
  %v1431 = vpop.permute.xlu0 %1430
  %1432 = vrot.lane.b32.xlu0 %v1427, 1
  %v1433 = vpop.permute.xlu0 %1432
  %v1434 = vsel %vm269, %v1429, %v1431
  %v1435 = vsel %vm269, %v1431, %v1433
  %v1438 = vsel %vm74, %v1434, 0.0
  %v1439 = vsel %vm74, %v1435, 0.0
  %v1440 = vadd.f32 %v1438, %v1439
  %1441 = vadd.xlane.f32.xlu0 %v1440
  %v1442 = vpop.xlane.xlu0 %1441
  %v1443 = vmul.f32 %v1442, 0.00390625
  %v1444 = vld [vmem:[%s280] sm:$0xff]
  %v1446 = vsel %vm106, %v1444, 0
  %v1449 = vsel %vm74, %v1443, 0
  %1451 = vmatpush.msra.mxu0 0.0
  %1452 = vmatpush.msra.mxu0 0.0
  %1453 = vmatpush.msra.mxu0 0.0
  %1454 = vmatpush.msra.mxu0 0.0
  %1455 = vmatpush.msra.mxu0 0.0
  %1456 = vmatpush.msra.mxu0 0.0
  %1457 = vmatpush.msra.mxu0 0.0
  %1458 = vmatpush.msra.mxu0 0.0
  %1459 = vmatpush.msra.mxu0 0.0
  %1460 = vmatpush.msra.mxu0 0.0
  %1461 = vmatpush.msra.mxu0 0.0
  %1462 = vmatpush.msra.mxu0 0.0
  %1463 = vmatpush.msra.mxu0 0.0
  %1464 = vmatpush.msra.mxu0 0.0
  %1465 = vmatpush.msra.mxu0 0.0
  %1466 = vmatpush.msra.mxu0 %v1449
  %1467 = vmatmul.f32.gmra.mxu0 %v1446
  %v1468 = vpop.f32.mrf.mxu0
  %v1469 = vadd.f32 0.0, %v1468
  %1470 = vdwg.mxu0
  %v1471 = vadd.f32 %v1420, %v1469
  %v1472 = vld [vmem:[%s1268 + $0x2] sm:$0xf]
  %1474 = vst [vmem:[#allocation1] ss:$4 sm:$0xff] %v1472
  %v1475 = vld.sshfl [vmem:[#allocation1] sm:$0xff pattern:$0x73625140]
  %v1476 = vld.sshfl [vmem:[#allocation1 + $0x8] sm:$0xff pattern:$0x73625140]
  %v1479 = vsel %vm74, %v1475, 0.0
  %v1480 = vsel %vm74, %v1476, 0.0
  %v1481 = vadd.f32 %v1479, %v1480
  %1482 = vadd.xlane.f32.xlu0 %v1481
  %v1483 = vpop.xlane.xlu0 %1482
  %v1484 = vmul.f32 %v1483, 0.00390625
  %v1485 = vld [vmem:[%s322] sm:$0xff]
  %v1487 = vsel %vm106, %v1485, 0
  %v1490 = vsel %vm74, %v1484, 0
  %1492 = vmatpush.msra.mxu0 0.0
  %1493 = vmatpush.msra.mxu0 0.0
  %1494 = vmatpush.msra.mxu0 0.0
  %1495 = vmatpush.msra.mxu0 0.0
  %1496 = vmatpush.msra.mxu0 0.0
  %1497 = vmatpush.msra.mxu0 0.0
  %1498 = vmatpush.msra.mxu0 0.0
  %1499 = vmatpush.msra.mxu0 0.0
  %1500 = vmatpush.msra.mxu0 0.0
  %1501 = vmatpush.msra.mxu0 0.0
  %1502 = vmatpush.msra.mxu0 0.0
  %1503 = vmatpush.msra.mxu0 0.0
  %1504 = vmatpush.msra.mxu0 0.0
  %1505 = vmatpush.msra.mxu0 0.0
  %1506 = vmatpush.msra.mxu0 0.0
  %1507 = vmatpush.msra.mxu0 %v1490
  %1508 = vmatmul.f32.gmra.mxu0 %v1487
  %v1509 = vpop.f32.mrf.mxu0
  %v1510 = vadd.f32 0.0, %v1509
  %1511 = vdwg.mxu0
  %v1512 = vadd.f32 %v1471, %v1510
  %v1513 = vld [vmem:[%s1268 + $0x2] sm:$0x3f]
  %v1514 = vmul.f32 %v1513, %v355
  %1516 = vst [vmem:[#allocation1] ss:$4 sm:$0xff] %v1514
  %v1517 = vld.sshfl [vmem:[#allocation1] sm:$0xff pattern:$0x73625140]
  %v1518 = vld.sshfl [vmem:[#allocation1 + $0x8] sm:$0xff pattern:$0x73625140]
  %v1519 = vld.sshfl [vmem:[#allocation1 + $0x10] sm:$0xff pattern:$0x73625140]
  %1520 = vrot.lane.b32.xlu0 %v1517, 127
  %v1521 = vpop.permute.xlu0 %1520
  %1522 = vrot.lane.b32.xlu0 %v1518, 127
  %v1523 = vpop.permute.xlu0 %1522
  %1524 = vrot.lane.b32.xlu0 %v1519, 127
  %v1525 = vpop.permute.xlu0 %1524
  %v1526 = vsel %vm254, %v1521, %v1523
  %v1527 = vsel %vm254, %v1523, %v1525
  %v1530 = vsel %vm74, %v1526, 0.0
  %v1531 = vsel %vm74, %v1527, 0.0
  %v1532 = vadd.f32 %v1530, %v1531
  %1533 = vadd.xlane.f32.xlu0 %v1532
  %v1534 = vpop.xlane.xlu0 %1533
  %v1535 = vmul.f32 %v1534, 0.00390625
  %v1536 = vld [vmem:[%s379] sm:$0xff]
  %v1538 = vsel %vm106, %v1536, 0
  %v1541 = vsel %vm74, %v1535, 0
  %1543 = vmatpush.msra.mxu0 0.0
  %1544 = vmatpush.msra.mxu0 0.0
  %1545 = vmatpush.msra.mxu0 0.0
  %1546 = vmatpush.msra.mxu0 0.0
  %1547 = vmatpush.msra.mxu0 0.0
  %1548 = vmatpush.msra.mxu0 0.0
  %1549 = vmatpush.msra.mxu0 0.0
  %1550 = vmatpush.msra.mxu0 0.0
  %1551 = vmatpush.msra.mxu0 0.0
  %1552 = vmatpush.msra.mxu0 0.0
  %1553 = vmatpush.msra.mxu0 0.0
  %1554 = vmatpush.msra.mxu0 0.0
  %1555 = vmatpush.msra.mxu0 0.0
  %1556 = vmatpush.msra.mxu0 0.0
  %1557 = vmatpush.msra.mxu0 0.0
  %1558 = vmatpush.msra.mxu0 %v1541
  %1559 = vmatmul.f32.gmra.mxu0 %v1538
  %v1560 = vpop.f32.mrf.mxu0
  %v1561 = vadd.f32 0.0, %v1560
  %1562 = vdwg.mxu0
  %v1563 = vadd.f32 %v1512, %v1561
  %v1564 = vld [vmem:[%s1268 + $0x2] sm:$0x3f]
  %v1565 = vmul.f32 %v1564, %v412
  %1567 = vst [vmem:[#allocation1] ss:$4 sm:$0xff] %v1565
  %v1568 = vld.sshfl [vmem:[#allocation1] sm:$0xff pattern:$0x73625140]
  %v1569 = vld.sshfl [vmem:[#allocation1 + $0x8] sm:$0xff pattern:$0x73625140]
  %v1570 = vld.sshfl [vmem:[#allocation1 + $0x10] sm:$0xff pattern:$0x73625140]
  %1571 = vrot.lane.b32.xlu0 %v1568, 113
  %v1572 = vpop.permute.xlu0 %1571
  %1573 = vrot.lane.b32.xlu0 %v1569, 113
  %v1574 = vpop.permute.xlu0 %1573
  %1575 = vrot.lane.b32.xlu0 %v1570, 113
  %v1576 = vpop.permute.xlu0 %1575
  %v1577 = vsel %vm195, %v1572, %v1574
  %v1578 = vsel %vm195, %v1574, %v1576
  %v1581 = vsel %vm74, %v1577, 0.0
  %v1582 = vsel %vm74, %v1578, 0.0
  %v1583 = vadd.f32 %v1581, %v1582
  %1584 = vadd.xlane.f32.xlu0 %v1583
  %v1585 = vpop.xlane.xlu0 %1584
  %v1586 = vmul.f32 %v1585, 0.00390625
  %v1587 = vld [vmem:[%s436] sm:$0xff]
  %v1589 = vsel %vm106, %v1587, 0
  %v1592 = vsel %vm74, %v1586, 0
  %1594 = vmatpush.msra.mxu0 0.0
  %1595 = vmatpush.msra.mxu0 0.0
  %1596 = vmatpush.msra.mxu0 0.0
  %1597 = vmatpush.msra.mxu0 0.0
  %1598 = vmatpush.msra.mxu0 0.0
  %1599 = vmatpush.msra.mxu0 0.0
  %1600 = vmatpush.msra.mxu0 0.0
  %1601 = vmatpush.msra.mxu0 0.0
  %1602 = vmatpush.msra.mxu0 0.0
  %1603 = vmatpush.msra.mxu0 0.0
  %1604 = vmatpush.msra.mxu0 0.0
  %1605 = vmatpush.msra.mxu0 0.0
  %1606 = vmatpush.msra.mxu0 0.0
  %1607 = vmatpush.msra.mxu0 0.0
  %1608 = vmatpush.msra.mxu0 0.0
  %1609 = vmatpush.msra.mxu0 %v1592
  %1610 = vmatmul.f32.gmra.mxu0 %v1589
  %v1611 = vpop.f32.mrf.mxu0
  %v1612 = vadd.f32 0.0, %v1611
  %1613 = vdwg.mxu0
  %v1614 = vadd.f32 %v1563, %v1612
  %v1615 = vld [vmem:[%s1268 + $0x2] sm:$0x3f]
  %1617 = vst [vmem:[#allocation1] ss:$4 sm:$0xff] %v1615
  %v1618 = vld.sshfl [vmem:[#allocation1] sm:$0xff pattern:$0x73625140]
  %v1619 = vld.sshfl [vmem:[#allocation1 + $0x8] sm:$0xff pattern:$0x73625140]
  %v1620 = vld.sshfl [vmem:[#allocation1 + $0x10] sm:$0xff pattern:$0x73625140]
  %1621 = vrot.lane.b32.xlu0 %v1618, 112
  %v1622 = vpop.permute.xlu0 %1621
  %1623 = vrot.lane.b32.xlu0 %v1619, 112
  %v1624 = vpop.permute.xlu0 %1623
  %1625 = vrot.lane.b32.xlu0 %v1620, 112
  %v1626 = vpop.permute.xlu0 %1625
  %v1627 = vsel %vm477, %v1622, %v1624
  %v1628 = vsel %vm477, %v1624, %v1626
  %v1631 = vsel %vm74, %v1627, 0.0
  %v1632 = vsel %vm74, %v1628, 0.0
  %v1633 = vadd.f32 %v1631, %v1632
  %1634 = vadd.xlane.f32.xlu0 %v1633
  %v1635 = vpop.xlane.xlu0 %1634
  %v1636 = vmul.f32 %v1635, 0.00390625
  %v1637 = vld [vmem:[%s488] sm:$0xff]
  %v1639 = vsel %vm106, %v1637, 0
  %v1642 = vsel %vm74, %v1636, 0
  %1644 = vmatpush.msra.mxu0 0.0
  %1645 = vmatpush.msra.mxu0 0.0
  %1646 = vmatpush.msra.mxu0 0.0
  %1647 = vmatpush.msra.mxu0 0.0
  %1648 = vmatpush.msra.mxu0 0.0
  %1649 = vmatpush.msra.mxu0 0.0
  %1650 = vmatpush.msra.mxu0 0.0
  %1651 = vmatpush.msra.mxu0 0.0
  %1652 = vmatpush.msra.mxu0 0.0
  %1653 = vmatpush.msra.mxu0 0.0
  %1654 = vmatpush.msra.mxu0 0.0
  %1655 = vmatpush.msra.mxu0 0.0
  %1656 = vmatpush.msra.mxu0 0.0
  %1657 = vmatpush.msra.mxu0 0.0
  %1658 = vmatpush.msra.mxu0 0.0
  %1659 = vmatpush.msra.mxu0 %v1642
  %1660 = vmatmul.f32.gmra.mxu0 %v1639
  %v1661 = vpop.f32.mrf.mxu0
  %v1662 = vadd.f32 0.0, %v1661
  %1663 = vdwg.mxu0
  %v1664 = vadd.f32 %v1614, %v1662
  %v1665 = vld [vmem:[%s1268 + $0x2] sm:$0x3f]
  %v1666 = vmul.f32 %v1665, %v521
  %1668 = vst [vmem:[#allocation1] ss:$4 sm:$0xff] %v1666
  %v1669 = vld.sshfl [vmem:[#allocation1] sm:$0xff pattern:$0x73625140]
  %v1670 = vld.sshfl [vmem:[#allocation1 + $0x8] sm:$0xff pattern:$0x73625140]
  %v1671 = vld.sshfl [vmem:[#allocation1 + $0x10] sm:$0xff pattern:$0x73625140]
  %1672 = vrot.lane.b32.xlu0 %v1669, 111
  %v1673 = vpop.permute.xlu0 %1672
  %1674 = vrot.lane.b32.xlu0 %v1670, 111
  %v1675 = vpop.permute.xlu0 %1674
  %1676 = vrot.lane.b32.xlu0 %v1671, 111
  %v1677 = vpop.permute.xlu0 %1676
  %v1678 = vsel %vm79, %v1673, %v1675
  %v1679 = vsel %vm79, %v1675, %v1677
  %v1682 = vsel %vm74, %v1678, 0.0
  %v1683 = vsel %vm74, %v1679, 0.0
  %v1684 = vadd.f32 %v1682, %v1683
  %1685 = vadd.xlane.f32.xlu0 %v1684
  %v1686 = vpop.xlane.xlu0 %1685
  %v1687 = vmul.f32 %v1686, 0.00390625
  %v1688 = vld [vmem:[%s545] sm:$0xff]
  %v1690 = vsel %vm106, %v1688, 0
  %v1693 = vsel %vm74, %v1687, 0
  %1695 = vmatpush.msra.mxu0 0.0
  %1696 = vmatpush.msra.mxu0 0.0
  %1697 = vmatpush.msra.mxu0 0.0
  %1698 = vmatpush.msra.mxu0 0.0
  %1699 = vmatpush.msra.mxu0 0.0
  %1700 = vmatpush.msra.mxu0 0.0
  %1701 = vmatpush.msra.mxu0 0.0
  %1702 = vmatpush.msra.mxu0 0.0
  %1703 = vmatpush.msra.mxu0 0.0
  %1704 = vmatpush.msra.mxu0 0.0
  %1705 = vmatpush.msra.mxu0 0.0
  %1706 = vmatpush.msra.mxu0 0.0
  %1707 = vmatpush.msra.mxu0 0.0
  %1708 = vmatpush.msra.mxu0 0.0
  %1709 = vmatpush.msra.mxu0 0.0
  %1710 = vmatpush.msra.mxu0 %v1693
  %1711 = vmatmul.f32.gmra.mxu0 %v1690
  %v1712 = vpop.f32.mrf.mxu0
  %v1713 = vadd.f32 0.0, %v1712
  %1714 = vdwg.mxu0
  %v1715 = vadd.f32 %v1664, %v1713
  %v1716 = vsel %vm269, %v1715, -inf
  %v1717 = vrot.slane %v1716, 4
  %v1718 = vmax.f32 %v1716, %v1717
  %v1719 = vrot.slane %v1718, 2
  %v1720 = vmax.f32 %v1718, %v1719
  %v1721 = vrot.slane %v1720, 1
  %v1722 = vmax.f32 %v1720, %v1721
  %v1723 = vsel %vm269, %v1266, -inf
  %v1724 = vrot.slane %v1723, 4
  %v1725 = vmax.f32 %v1723, %v1724
  %v1726 = vrot.slane %v1725, 2
  %v1727 = vmax.f32 %v1725, %v1726
  %v1728 = vrot.slane %v1727, 1
  %v1729 = vmax.f32 %v1727, %v1728
  %v1730 = vmax.f32 %v1722, %v1729
  %v1731 = vsub.f32 %v1715, %v1730
  %v1732 = vmul.f32 %v1731, 1.442695
  %v1733 = vpow.pop %v1732
  %v1734 = vsub.f32 %v1266, %v1730
  %v1735 = vmul.f32 %v1734, 1.442695
  %v1736 = vpow.pop %v1735
  %v1737 = vsel %vm269, %v1733, 0.0
  %v1738 = vrot.slane %v1737, 4
  %v1739 = vadd.f32 %v1737, %v1738
  %v1740 = vrot.slane %v1739, 2
  %v1741 = vadd.f32 %v1739, %v1740
  %v1742 = vrot.slane %v1741, 1
  %v1743 = vadd.f32 %v1741, %v1742
  %v1744 = vsel %vm269, %v1736, 0.0
  %v1745 = vrot.slane %v1744, 4
  %v1746 = vadd.f32 %v1744, %v1745
  %v1747 = vrot.slane %v1746, 2
  %v1748 = vadd.f32 %v1746, %v1747
  %v1749 = vrot.slane %v1748, 1
  %v1750 = vadd.f32 %v1748, %v1749
  %v1751 = vadd.f32 %v1743, %v1750
  %v1752 = vrcp.pop %v1751
  %v1753 = vmul.f32 %v1733, %v1752
  %v1754 = vmul.f32 %v1736, %v1752
  %1756 = vset.pattern.permute.xlu0 0
  %1757 = vperm.xlu0 %1756, %v1754
  %v1758 = vpop.permute.xlu0 %1757
  %v1760 = vmul.f32 %v26, %v1758
  %v1761 = vmul.f32 %v27, %v1753
  %1763 = vset.pattern.permute.xlu0 0
  %1764 = vperm.xlu0 %1763, %v1761
  %v1765 = vpop.permute.xlu0 %1764
  %1767 = vst [vmem:[#allocation1] ss:$2 sm:$0xff] %v1232
  %v1768 = vld.sshfl [vmem:[#allocation1] sm:$0xff pattern:$0x75316420]
  %v1769 = vld.sshfl [vmem:[#allocation1 + $0x8] sm:$0xff pattern:$0x75316420]
  %v1771 = vsel %vm42, %v1760, 0
  %v1773 = vsel %vm35, %v1768, 0
  %v1775 = vsel %vm35, %v1769, 0
  %1777 = vmatpush.msra.mxu0 0.0
  %1778 = vmatpush.msra.mxu0 0.0
  %1779 = vmatpush.msra.mxu0 0.0
  %1780 = vmatpush.msra.mxu0 0.0
  %1781 = vmatpush.msra.mxu0 0.0
  %1782 = vmatpush.msra.mxu0 0.0
  %1783 = vmatpush.msra.mxu0 0.0
  %1784 = vmatpush.msra.mxu0 0.0
  %1785 = vmatpush.msra.mxu0 0.0
  %1786 = vmatpush.msra.mxu0 0.0
  %1787 = vmatpush.msra.mxu0 0.0
  %1788 = vmatpush.msra.mxu0 0.0
  %1789 = vmatpush.msra.mxu0 0.0
  %1790 = vmatpush.msra.mxu0 0.0
  %1791 = vmatpush.msra.mxu0 0.0
  %1792 = vmatpush.msra.mxu0 %v1773
  %1793 = vmatmul.f32.gmra.mxu0 %v1771
  %v1794 = vpop.f32.mrf.mxu0
  %v1795 = vadd.f32 %v1765, %v1794
  %1796 = vdwg.mxu0
  %1797 = vmatpush.msra.mxu0 0.0
  %1798 = vmatpush.msra.mxu0 0.0
  %1799 = vmatpush.msra.mxu0 0.0
  %1800 = vmatpush.msra.mxu0 0.0
  %1801 = vmatpush.msra.mxu0 0.0
  %1802 = vmatpush.msra.mxu0 0.0
  %1803 = vmatpush.msra.mxu0 0.0
  %1804 = vmatpush.msra.mxu0 0.0
  %1805 = vmatpush.msra.mxu0 0.0
  %1806 = vmatpush.msra.mxu0 0.0
  %1807 = vmatpush.msra.mxu0 0.0
  %1808 = vmatpush.msra.mxu0 0.0
  %1809 = vmatpush.msra.mxu0 0.0
  %1810 = vmatpush.msra.mxu0 0.0
  %1811 = vmatpush.msra.mxu0 0.0
  %1812 = vmatpush.msra.mxu0 %v1775
  %1813 = vmatmul.f32.gmra.mxu0 %v1771
  %v1814 = vpop.f32.mrf.mxu0
  %v1815 = vadd.f32 %v1765, %v1814
  %1816 = vdwg.mxu0
  %1818 = vset.pattern.permute.xlu0 0
  %1819 = vperm.xlu0 %1818, %v1753
  %v1820 = vpop.permute.xlu0 %1819
  %v1822 = vmul.f32 %v1292, %v1820
  %1823 = vst [vmem:[#allocation1] ss:$4 sm:$0xff] %v1270
  %v1824 = vld.sshfl [vmem:[#allocation1] sm:$0xff pattern:$0x73625140]
  %v1825 = vld.sshfl [vmem:[#allocation1 + $0x8] sm:$0xff pattern:$0x73625140]
  %v1826 = vld.sshfl [vmem:[#allocation1 + $0x10] sm:$0xff pattern:$0x73625140]
  %1827 = vrot.lane.b32.xlu0 %v1824, 17
  %v1828 = vpop.permute.xlu0 %1827
  %1829 = vrot.lane.b32.xlu0 %v1825, 17
  %v1830 = vpop.permute.xlu0 %1829
  %1831 = vrot.lane.b32.xlu0 %v1826, 17
  %v1832 = vpop.permute.xlu0 %1831
  %v1833 = vsel %vm94, %v1828, %v1830
  %v1834 = vsel %vm94, %v1830, %v1832
  %v1836 = vsel %vm106, %v1822, 0
  %v1838 = vsel %vm74, %v1833, 0
  %v1840 = vsel %vm74, %v1834, 0
  %1842 = vmatpush.msra.mxu0 0.0
  %1843 = vmatpush.msra.mxu0 0.0
  %1844 = vmatpush.msra.mxu0 0.0
  %1845 = vmatpush.msra.mxu0 0.0
  %1846 = vmatpush.msra.mxu0 0.0
  %1847 = vmatpush.msra.mxu0 0.0
  %1848 = vmatpush.msra.mxu0 0.0
  %1849 = vmatpush.msra.mxu0 0.0
  %1850 = vmatpush.msra.mxu0 0.0
  %1851 = vmatpush.msra.mxu0 0.0
  %1852 = vmatpush.msra.mxu0 0.0
  %1853 = vmatpush.msra.mxu0 0.0
  %1854 = vmatpush.msra.mxu0 0.0
  %1855 = vmatpush.msra.mxu0 0.0
  %1856 = vmatpush.msra.mxu0 0.0
  %1857 = vmatpush.msra.mxu0 %v1838
  %1858 = vmatmul.f32.gmra.mxu0 %v1836
  %v1859 = vpop.f32.mrf.mxu0
  %v1860 = vadd.f32 0.0, %v1859
  %1861 = vdwg.mxu0
  %1862 = vmatpush.msra.mxu0 0.0
  %1863 = vmatpush.msra.mxu0 0.0
  %1864 = vmatpush.msra.mxu0 0.0
  %1865 = vmatpush.msra.mxu0 0.0
  %1866 = vmatpush.msra.mxu0 0.0
  %1867 = vmatpush.msra.mxu0 0.0
  %1868 = vmatpush.msra.mxu0 0.0
  %1869 = vmatpush.msra.mxu0 0.0
  %1870 = vmatpush.msra.mxu0 0.0
  %1871 = vmatpush.msra.mxu0 0.0
  %1872 = vmatpush.msra.mxu0 0.0
  %1873 = vmatpush.msra.mxu0 0.0
  %1874 = vmatpush.msra.mxu0 0.0
  %1875 = vmatpush.msra.mxu0 0.0
  %1876 = vmatpush.msra.mxu0 0.0
  %1877 = vmatpush.msra.mxu0 %v1840
  %1878 = vmatmul.f32.gmra.mxu0 %v1836
  %v1879 = vpop.f32.mrf.mxu0
  %v1880 = vadd.f32 0.0, %v1879
  %1881 = vdwg.mxu0
  %v1882 = vadd.f32 %v1795, %v1860
  %v1883 = vadd.f32 %v1815, %v1880
  %v1884 = vmul.f32 %v1342, %v1820
  %1885 = vst [vmem:[#allocation1] ss:$4 sm:$0xff] %v1320
  %v1886 = vld.sshfl [vmem:[#allocation1] sm:$0xff pattern:$0x73625140]
  %v1887 = vld.sshfl [vmem:[#allocation1 + $0x8] sm:$0xff pattern:$0x73625140]
  %v1888 = vld.sshfl [vmem:[#allocation1 + $0x10] sm:$0xff pattern:$0x73625140]
  %1889 = vrot.lane.b32.xlu0 %v1886, 16
  %v1890 = vpop.permute.xlu0 %1889
  %1891 = vrot.lane.b32.xlu0 %v1887, 16
  %v1892 = vpop.permute.xlu0 %1891
  %1893 = vrot.lane.b32.xlu0 %v1888, 16
  %v1894 = vpop.permute.xlu0 %1893
  %v1895 = vsel %vm146, %v1890, %v1892
  %v1896 = vsel %vm146, %v1892, %v1894
  %v1898 = vsel %vm106, %v1884, 0
  %v1900 = vsel %vm74, %v1895, 0
  %v1902 = vsel %vm74, %v1896, 0
  %1904 = vmatpush.msra.mxu0 0.0
  %1905 = vmatpush.msra.mxu0 0.0
  %1906 = vmatpush.msra.mxu0 0.0
  %1907 = vmatpush.msra.mxu0 0.0
  %1908 = vmatpush.msra.mxu0 0.0
  %1909 = vmatpush.msra.mxu0 0.0
  %1910 = vmatpush.msra.mxu0 0.0
  %1911 = vmatpush.msra.mxu0 0.0
  %1912 = vmatpush.msra.mxu0 0.0
  %1913 = vmatpush.msra.mxu0 0.0
  %1914 = vmatpush.msra.mxu0 0.0
  %1915 = vmatpush.msra.mxu0 0.0
  %1916 = vmatpush.msra.mxu0 0.0
  %1917 = vmatpush.msra.mxu0 0.0
  %1918 = vmatpush.msra.mxu0 0.0
  %1919 = vmatpush.msra.mxu0 %v1900
  %1920 = vmatmul.f32.gmra.mxu0 %v1898
  %v1921 = vpop.f32.mrf.mxu0
  %v1922 = vadd.f32 0.0, %v1921
  %1923 = vdwg.mxu0
  %1924 = vmatpush.msra.mxu0 0.0
  %1925 = vmatpush.msra.mxu0 0.0
  %1926 = vmatpush.msra.mxu0 0.0
  %1927 = vmatpush.msra.mxu0 0.0
  %1928 = vmatpush.msra.mxu0 0.0
  %1929 = vmatpush.msra.mxu0 0.0
  %1930 = vmatpush.msra.mxu0 0.0
  %1931 = vmatpush.msra.mxu0 0.0
  %1932 = vmatpush.msra.mxu0 0.0
  %1933 = vmatpush.msra.mxu0 0.0
  %1934 = vmatpush.msra.mxu0 0.0
  %1935 = vmatpush.msra.mxu0 0.0
  %1936 = vmatpush.msra.mxu0 0.0
  %1937 = vmatpush.msra.mxu0 0.0
  %1938 = vmatpush.msra.mxu0 0.0
  %1939 = vmatpush.msra.mxu0 %v1902
  %1940 = vmatmul.f32.gmra.mxu0 %v1898
  %v1941 = vpop.f32.mrf.mxu0
  %v1942 = vadd.f32 0.0, %v1941
  %1943 = vdwg.mxu0
  %v1944 = vadd.f32 %v1882, %v1922
  %v1945 = vadd.f32 %v1883, %v1942
  %v1946 = vmul.f32 %v1393, %v1820
  %1947 = vst [vmem:[#allocation1] ss:$4 sm:$0xff] %v1371
  %v1948 = vld.sshfl [vmem:[#allocation1] sm:$0xff pattern:$0x73625140]
  %v1949 = vld.sshfl [vmem:[#allocation1 + $0x8] sm:$0xff pattern:$0x73625140]
  %v1950 = vld.sshfl [vmem:[#allocation1 + $0x10] sm:$0xff pattern:$0x73625140]
  %1951 = vrot.lane.b32.xlu0 %v1948, 15
  %v1952 = vpop.permute.xlu0 %1951
  %1953 = vrot.lane.b32.xlu0 %v1949, 15
  %v1954 = vpop.permute.xlu0 %1953
  %1955 = vrot.lane.b32.xlu0 %v1950, 15
  %v1956 = vpop.permute.xlu0 %1955
  %v1957 = vsel %vm210, %v1952, %v1954
  %v1958 = vsel %vm210, %v1954, %v1956
  %v1960 = vsel %vm106, %v1946, 0
  %v1962 = vsel %vm74, %v1957, 0
  %v1964 = vsel %vm74, %v1958, 0
  %1966 = vmatpush.msra.mxu0 0.0
  %1967 = vmatpush.msra.mxu0 0.0
  %1968 = vmatpush.msra.mxu0 0.0
  %1969 = vmatpush.msra.mxu0 0.0
  %1970 = vmatpush.msra.mxu0 0.0
  %1971 = vmatpush.msra.mxu0 0.0
  %1972 = vmatpush.msra.mxu0 0.0
  %1973 = vmatpush.msra.mxu0 0.0
  %1974 = vmatpush.msra.mxu0 0.0
  %1975 = vmatpush.msra.mxu0 0.0
  %1976 = vmatpush.msra.mxu0 0.0
  %1977 = vmatpush.msra.mxu0 0.0
  %1978 = vmatpush.msra.mxu0 0.0
  %1979 = vmatpush.msra.mxu0 0.0
  %1980 = vmatpush.msra.mxu0 0.0
  %1981 = vmatpush.msra.mxu0 %v1962
  %1982 = vmatmul.f32.gmra.mxu0 %v1960
  %v1983 = vpop.f32.mrf.mxu0
  %v1984 = vadd.f32 0.0, %v1983
  %1985 = vdwg.mxu0
  %1986 = vmatpush.msra.mxu0 0.0
  %1987 = vmatpush.msra.mxu0 0.0
  %1988 = vmatpush.msra.mxu0 0.0
  %1989 = vmatpush.msra.mxu0 0.0
  %1990 = vmatpush.msra.mxu0 0.0
  %1991 = vmatpush.msra.mxu0 0.0
  %1992 = vmatpush.msra.mxu0 0.0
  %1993 = vmatpush.msra.mxu0 0.0
  %1994 = vmatpush.msra.mxu0 0.0
  %1995 = vmatpush.msra.mxu0 0.0
  %1996 = vmatpush.msra.mxu0 0.0
  %1997 = vmatpush.msra.mxu0 0.0
  %1998 = vmatpush.msra.mxu0 0.0
  %1999 = vmatpush.msra.mxu0 0.0
  %2000 = vmatpush.msra.mxu0 0.0
  %2001 = vmatpush.msra.mxu0 %v1964
  %2002 = vmatmul.f32.gmra.mxu0 %v1960
  %v2003 = vpop.f32.mrf.mxu0
  %v2004 = vadd.f32 0.0, %v2003
  %2005 = vdwg.mxu0
  %v2006 = vadd.f32 %v1944, %v1984
  %v2007 = vadd.f32 %v1945, %v2004
  %v2008 = vmul.f32 %v1444, %v1820
  %2009 = vst [vmem:[#allocation1] ss:$4 sm:$0xff] %v1422
  %v2010 = vld.sshfl [vmem:[#allocation1] sm:$0xff pattern:$0x73625140]
  %v2011 = vld.sshfl [vmem:[#allocation1 + $0x8] sm:$0xff pattern:$0x73625140]
  %v2012 = vld.sshfl [vmem:[#allocation1 + $0x10] sm:$0xff pattern:$0x73625140]
  %2013 = vrot.lane.b32.xlu0 %v2010, 1
  %v2014 = vpop.permute.xlu0 %2013
  %2015 = vrot.lane.b32.xlu0 %v2011, 1
  %v2016 = vpop.permute.xlu0 %2015
  %2017 = vrot.lane.b32.xlu0 %v2012, 1
  %v2018 = vpop.permute.xlu0 %2017
  %v2019 = vsel %vm269, %v2014, %v2016
  %v2020 = vsel %vm269, %v2016, %v2018
  %v2022 = vsel %vm106, %v2008, 0
  %v2024 = vsel %vm74, %v2019, 0
  %v2026 = vsel %vm74, %v2020, 0
  %2028 = vmatpush.msra.mxu0 0.0
  %2029 = vmatpush.msra.mxu0 0.0
  %2030 = vmatpush.msra.mxu0 0.0
  %2031 = vmatpush.msra.mxu0 0.0
  %2032 = vmatpush.msra.mxu0 0.0
  %2033 = vmatpush.msra.mxu0 0.0
  %2034 = vmatpush.msra.mxu0 0.0
  %2035 = vmatpush.msra.mxu0 0.0
  %2036 = vmatpush.msra.mxu0 0.0
  %2037 = vmatpush.msra.mxu0 0.0
  %2038 = vmatpush.msra.mxu0 0.0
  %2039 = vmatpush.msra.mxu0 0.0
  %2040 = vmatpush.msra.mxu0 0.0
  %2041 = vmatpush.msra.mxu0 0.0
  %2042 = vmatpush.msra.mxu0 0.0
  %2043 = vmatpush.msra.mxu0 %v2024
  %2044 = vmatmul.f32.gmra.mxu0 %v2022
  %v2045 = vpop.f32.mrf.mxu0
  %v2046 = vadd.f32 0.0, %v2045
  %2047 = vdwg.mxu0
  %2048 = vmatpush.msra.mxu0 0.0
  %2049 = vmatpush.msra.mxu0 0.0
  %2050 = vmatpush.msra.mxu0 0.0
  %2051 = vmatpush.msra.mxu0 0.0
  %2052 = vmatpush.msra.mxu0 0.0
  %2053 = vmatpush.msra.mxu0 0.0
  %2054 = vmatpush.msra.mxu0 0.0
  %2055 = vmatpush.msra.mxu0 0.0
  %2056 = vmatpush.msra.mxu0 0.0
  %2057 = vmatpush.msra.mxu0 0.0
  %2058 = vmatpush.msra.mxu0 0.0
  %2059 = vmatpush.msra.mxu0 0.0
  %2060 = vmatpush.msra.mxu0 0.0
  %2061 = vmatpush.msra.mxu0 0.0
  %2062 = vmatpush.msra.mxu0 0.0
  %2063 = vmatpush.msra.mxu0 %v2026
  %2064 = vmatmul.f32.gmra.mxu0 %v2022
  %v2065 = vpop.f32.mrf.mxu0
  %v2066 = vadd.f32 0.0, %v2065
  %2067 = vdwg.mxu0
  %v2068 = vadd.f32 %v2006, %v2046
  %v2069 = vadd.f32 %v2007, %v2066
  %v2070 = vmul.f32 %v1485, %v1820
  %2071 = vst [vmem:[#allocation1] ss:$4 sm:$0xff] %v1472
  %v2072 = vld.sshfl [vmem:[#allocation1] sm:$0xff pattern:$0x73625140]
  %v2073 = vld.sshfl [vmem:[#allocation1 + $0x8] sm:$0xff pattern:$0x73625140]
  %v2075 = vsel %vm106, %v2070, 0
  %v2077 = vsel %vm74, %v2072, 0
  %v2079 = vsel %vm74, %v2073, 0
  %2081 = vmatpush.msra.mxu0 0.0
  %2082 = vmatpush.msra.mxu0 0.0
  %2083 = vmatpush.msra.mxu0 0.0
  %2084 = vmatpush.msra.mxu0 0.0
  %2085 = vmatpush.msra.mxu0 0.0
  %2086 = vmatpush.msra.mxu0 0.0
  %2087 = vmatpush.msra.mxu0 0.0
  %2088 = vmatpush.msra.mxu0 0.0
  %2089 = vmatpush.msra.mxu0 0.0
  %2090 = vmatpush.msra.mxu0 0.0
  %2091 = vmatpush.msra.mxu0 0.0
  %2092 = vmatpush.msra.mxu0 0.0
  %2093 = vmatpush.msra.mxu0 0.0
  %2094 = vmatpush.msra.mxu0 0.0
  %2095 = vmatpush.msra.mxu0 0.0
  %2096 = vmatpush.msra.mxu0 %v2077
  %2097 = vmatmul.f32.gmra.mxu0 %v2075
  %v2098 = vpop.f32.mrf.mxu0
  %v2099 = vadd.f32 0.0, %v2098
  %2100 = vdwg.mxu0
  %2101 = vmatpush.msra.mxu0 0.0
  %2102 = vmatpush.msra.mxu0 0.0
  %2103 = vmatpush.msra.mxu0 0.0
  %2104 = vmatpush.msra.mxu0 0.0
  %2105 = vmatpush.msra.mxu0 0.0
  %2106 = vmatpush.msra.mxu0 0.0
  %2107 = vmatpush.msra.mxu0 0.0
  %2108 = vmatpush.msra.mxu0 0.0
  %2109 = vmatpush.msra.mxu0 0.0
  %2110 = vmatpush.msra.mxu0 0.0
  %2111 = vmatpush.msra.mxu0 0.0
  %2112 = vmatpush.msra.mxu0 0.0
  %2113 = vmatpush.msra.mxu0 0.0
  %2114 = vmatpush.msra.mxu0 0.0
  %2115 = vmatpush.msra.mxu0 0.0
  %2116 = vmatpush.msra.mxu0 %v2079
  %2117 = vmatmul.f32.gmra.mxu0 %v2075
  %v2118 = vpop.f32.mrf.mxu0
  %v2119 = vadd.f32 0.0, %v2118
  %2120 = vdwg.mxu0
  %v2121 = vadd.f32 %v2068, %v2099
  %v2122 = vadd.f32 %v2069, %v2119
  %v2123 = vmul.f32 %v1536, %v1820
  %2124 = vst [vmem:[#allocation1] ss:$4 sm:$0xff] %v1514
  %v2125 = vld.sshfl [vmem:[#allocation1] sm:$0xff pattern:$0x73625140]
  %v2126 = vld.sshfl [vmem:[#allocation1 + $0x8] sm:$0xff pattern:$0x73625140]
  %v2127 = vld.sshfl [vmem:[#allocation1 + $0x10] sm:$0xff pattern:$0x73625140]
  %2128 = vrot.lane.b32.xlu0 %v2125, 127
  %v2129 = vpop.permute.xlu0 %2128
  %2130 = vrot.lane.b32.xlu0 %v2126, 127
  %v2131 = vpop.permute.xlu0 %2130
  %2132 = vrot.lane.b32.xlu0 %v2127, 127
  %v2133 = vpop.permute.xlu0 %2132
  %v2134 = vsel %vm254, %v2129, %v2131
  %v2135 = vsel %vm254, %v2131, %v2133
  %v2137 = vsel %vm106, %v2123, 0
  %v2139 = vsel %vm74, %v2134, 0
  %v2141 = vsel %vm74, %v2135, 0
  %2143 = vmatpush.msra.mxu0 0.0
  %2144 = vmatpush.msra.mxu0 0.0
  %2145 = vmatpush.msra.mxu0 0.0
  %2146 = vmatpush.msra.mxu0 0.0
  %2147 = vmatpush.msra.mxu0 0.0
  %2148 = vmatpush.msra.mxu0 0.0
  %2149 = vmatpush.msra.mxu0 0.0
  %2150 = vmatpush.msra.mxu0 0.0
  %2151 = vmatpush.msra.mxu0 0.0
  %2152 = vmatpush.msra.mxu0 0.0
  %2153 = vmatpush.msra.mxu0 0.0
  %2154 = vmatpush.msra.mxu0 0.0
  %2155 = vmatpush.msra.mxu0 0.0
  %2156 = vmatpush.msra.mxu0 0.0
  %2157 = vmatpush.msra.mxu0 0.0
  %2158 = vmatpush.msra.mxu0 %v2139
  %2159 = vmatmul.f32.gmra.mxu0 %v2137
  %v2160 = vpop.f32.mrf.mxu0
  %v2161 = vadd.f32 0.0, %v2160
  %2162 = vdwg.mxu0
  %2163 = vmatpush.msra.mxu0 0.0
  %2164 = vmatpush.msra.mxu0 0.0
  %2165 = vmatpush.msra.mxu0 0.0
  %2166 = vmatpush.msra.mxu0 0.0
  %2167 = vmatpush.msra.mxu0 0.0
  %2168 = vmatpush.msra.mxu0 0.0
  %2169 = vmatpush.msra.mxu0 0.0
  %2170 = vmatpush.msra.mxu0 0.0
  %2171 = vmatpush.msra.mxu0 0.0
  %2172 = vmatpush.msra.mxu0 0.0
  %2173 = vmatpush.msra.mxu0 0.0
  %2174 = vmatpush.msra.mxu0 0.0
  %2175 = vmatpush.msra.mxu0 0.0
  %2176 = vmatpush.msra.mxu0 0.0
  %2177 = vmatpush.msra.mxu0 0.0
  %2178 = vmatpush.msra.mxu0 %v2141
  %2179 = vmatmul.f32.gmra.mxu0 %v2137
  %v2180 = vpop.f32.mrf.mxu0
  %v2181 = vadd.f32 0.0, %v2180
  %2182 = vdwg.mxu0
  %v2183 = vadd.f32 %v2121, %v2161
  %v2184 = vadd.f32 %v2122, %v2181
  %v2185 = vmul.f32 %v1587, %v1820
  %2186 = vst [vmem:[#allocation1] ss:$4 sm:$0xff] %v1565
  %v2187 = vld.sshfl [vmem:[#allocation1] sm:$0xff pattern:$0x73625140]
  %v2188 = vld.sshfl [vmem:[#allocation1 + $0x8] sm:$0xff pattern:$0x73625140]
  %v2189 = vld.sshfl [vmem:[#allocation1 + $0x10] sm:$0xff pattern:$0x73625140]
  %2190 = vrot.lane.b32.xlu0 %v2187, 113
  %v2191 = vpop.permute.xlu0 %2190
  %2192 = vrot.lane.b32.xlu0 %v2188, 113
  %v2193 = vpop.permute.xlu0 %2192
  %2194 = vrot.lane.b32.xlu0 %v2189, 113
  %v2195 = vpop.permute.xlu0 %2194
  %v2196 = vsel %vm195, %v2191, %v2193
  %v2197 = vsel %vm195, %v2193, %v2195
  %v2199 = vsel %vm106, %v2185, 0
  %v2201 = vsel %vm74, %v2196, 0
  %v2203 = vsel %vm74, %v2197, 0
  %2205 = vmatpush.msra.mxu0 0.0
  %2206 = vmatpush.msra.mxu0 0.0
  %2207 = vmatpush.msra.mxu0 0.0
  %2208 = vmatpush.msra.mxu0 0.0
  %2209 = vmatpush.msra.mxu0 0.0
  %2210 = vmatpush.msra.mxu0 0.0
  %2211 = vmatpush.msra.mxu0 0.0
  %2212 = vmatpush.msra.mxu0 0.0
  %2213 = vmatpush.msra.mxu0 0.0
  %2214 = vmatpush.msra.mxu0 0.0
  %2215 = vmatpush.msra.mxu0 0.0
  %2216 = vmatpush.msra.mxu0 0.0
  %2217 = vmatpush.msra.mxu0 0.0
  %2218 = vmatpush.msra.mxu0 0.0
  %2219 = vmatpush.msra.mxu0 0.0
  %2220 = vmatpush.msra.mxu0 %v2201
  %2221 = vmatmul.f32.gmra.mxu0 %v2199
  %v2222 = vpop.f32.mrf.mxu0
  %v2223 = vadd.f32 0.0, %v2222
  %2224 = vdwg.mxu0
  %2225 = vmatpush.msra.mxu0 0.0
  %2226 = vmatpush.msra.mxu0 0.0
  %2227 = vmatpush.msra.mxu0 0.0
  %2228 = vmatpush.msra.mxu0 0.0
  %2229 = vmatpush.msra.mxu0 0.0
  %2230 = vmatpush.msra.mxu0 0.0
  %2231 = vmatpush.msra.mxu0 0.0
  %2232 = vmatpush.msra.mxu0 0.0
  %2233 = vmatpush.msra.mxu0 0.0
  %2234 = vmatpush.msra.mxu0 0.0
  %2235 = vmatpush.msra.mxu0 0.0
  %2236 = vmatpush.msra.mxu0 0.0
  %2237 = vmatpush.msra.mxu0 0.0
  %2238 = vmatpush.msra.mxu0 0.0
  %2239 = vmatpush.msra.mxu0 0.0
  %2240 = vmatpush.msra.mxu0 %v2203
  %2241 = vmatmul.f32.gmra.mxu0 %v2199
  %v2242 = vpop.f32.mrf.mxu0
  %v2243 = vadd.f32 0.0, %v2242
  %2244 = vdwg.mxu0
  %v2245 = vadd.f32 %v2183, %v2223
  %v2246 = vadd.f32 %v2184, %v2243
  %v2247 = vmul.f32 %v1637, %v1820
  %2248 = vst [vmem:[#allocation1] ss:$4 sm:$0xff] %v1615
  %v2249 = vld.sshfl [vmem:[#allocation1] sm:$0xff pattern:$0x73625140]
  %v2250 = vld.sshfl [vmem:[#allocation1 + $0x8] sm:$0xff pattern:$0x73625140]
  %v2251 = vld.sshfl [vmem:[#allocation1 + $0x10] sm:$0xff pattern:$0x73625140]
  %2252 = vrot.lane.b32.xlu0 %v2249, 112
  %v2253 = vpop.permute.xlu0 %2252
  %2254 = vrot.lane.b32.xlu0 %v2250, 112
  %v2255 = vpop.permute.xlu0 %2254
  %2256 = vrot.lane.b32.xlu0 %v2251, 112
  %v2257 = vpop.permute.xlu0 %2256
  %v2258 = vsel %vm477, %v2253, %v2255
  %v2259 = vsel %vm477, %v2255, %v2257
  %v2261 = vsel %vm106, %v2247, 0
  %v2263 = vsel %vm74, %v2258, 0
  %v2265 = vsel %vm74, %v2259, 0
  %2267 = vmatpush.msra.mxu0 0.0
  %2268 = vmatpush.msra.mxu0 0.0
  %2269 = vmatpush.msra.mxu0 0.0
  %2270 = vmatpush.msra.mxu0 0.0
  %2271 = vmatpush.msra.mxu0 0.0
  %2272 = vmatpush.msra.mxu0 0.0
  %2273 = vmatpush.msra.mxu0 0.0
  %2274 = vmatpush.msra.mxu0 0.0
  %2275 = vmatpush.msra.mxu0 0.0
  %2276 = vmatpush.msra.mxu0 0.0
  %2277 = vmatpush.msra.mxu0 0.0
  %2278 = vmatpush.msra.mxu0 0.0
  %2279 = vmatpush.msra.mxu0 0.0
  %2280 = vmatpush.msra.mxu0 0.0
  %2281 = vmatpush.msra.mxu0 0.0
  %2282 = vmatpush.msra.mxu0 %v2263
  %2283 = vmatmul.f32.gmra.mxu0 %v2261
  %v2284 = vpop.f32.mrf.mxu0
  %v2285 = vadd.f32 0.0, %v2284
  %2286 = vdwg.mxu0
  %2287 = vmatpush.msra.mxu0 0.0
  %2288 = vmatpush.msra.mxu0 0.0
  %2289 = vmatpush.msra.mxu0 0.0
  %2290 = vmatpush.msra.mxu0 0.0
  %2291 = vmatpush.msra.mxu0 0.0
  %2292 = vmatpush.msra.mxu0 0.0
  %2293 = vmatpush.msra.mxu0 0.0
  %2294 = vmatpush.msra.mxu0 0.0
  %2295 = vmatpush.msra.mxu0 0.0
  %2296 = vmatpush.msra.mxu0 0.0
  %2297 = vmatpush.msra.mxu0 0.0
  %2298 = vmatpush.msra.mxu0 0.0
  %2299 = vmatpush.msra.mxu0 0.0
  %2300 = vmatpush.msra.mxu0 0.0
  %2301 = vmatpush.msra.mxu0 0.0
  %2302 = vmatpush.msra.mxu0 %v2265
  %2303 = vmatmul.f32.gmra.mxu0 %v2261
  %v2304 = vpop.f32.mrf.mxu0
  %v2305 = vadd.f32 0.0, %v2304
  %2306 = vdwg.mxu0
  %v2307 = vadd.f32 %v2245, %v2285
  %v2308 = vadd.f32 %v2246, %v2305
  %v2309 = vmul.f32 %v1688, %v1820
  %2310 = vst [vmem:[#allocation1] ss:$4 sm:$0xff] %v1666
  %v2311 = vld.sshfl [vmem:[#allocation1] sm:$0xff pattern:$0x73625140]
  %v2312 = vld.sshfl [vmem:[#allocation1 + $0x8] sm:$0xff pattern:$0x73625140]
  %v2313 = vld.sshfl [vmem:[#allocation1 + $0x10] sm:$0xff pattern:$0x73625140]
  %2314 = vrot.lane.b32.xlu0 %v2311, 111
  %v2315 = vpop.permute.xlu0 %2314
  %2316 = vrot.lane.b32.xlu0 %v2312, 111
  %v2317 = vpop.permute.xlu0 %2316
  %2318 = vrot.lane.b32.xlu0 %v2313, 111
  %v2319 = vpop.permute.xlu0 %2318
  %v2320 = vsel %vm79, %v2315, %v2317
  %v2321 = vsel %vm79, %v2317, %v2319
  %v2323 = vsel %vm106, %v2309, 0
  %v2325 = vsel %vm74, %v2320, 0
  %v2327 = vsel %vm74, %v2321, 0
  %2329 = vmatpush.msra.mxu0 0.0
  %2330 = vmatpush.msra.mxu0 0.0
  %2331 = vmatpush.msra.mxu0 0.0
  %2332 = vmatpush.msra.mxu0 0.0
  %2333 = vmatpush.msra.mxu0 0.0
  %2334 = vmatpush.msra.mxu0 0.0
  %2335 = vmatpush.msra.mxu0 0.0
  %2336 = vmatpush.msra.mxu0 0.0
  %2337 = vmatpush.msra.mxu0 0.0
  %2338 = vmatpush.msra.mxu0 0.0
  %2339 = vmatpush.msra.mxu0 0.0
  %2340 = vmatpush.msra.mxu0 0.0
  %2341 = vmatpush.msra.mxu0 0.0
  %2342 = vmatpush.msra.mxu0 0.0
  %2343 = vmatpush.msra.mxu0 0.0
  %2344 = vmatpush.msra.mxu0 %v2325
  %2345 = vmatmul.f32.gmra.mxu0 %v2323
  %v2346 = vpop.f32.mrf.mxu0
  %v2347 = vadd.f32 0.0, %v2346
  %2348 = vdwg.mxu0
  %2349 = vmatpush.msra.mxu0 0.0
  %2350 = vmatpush.msra.mxu0 0.0
  %2351 = vmatpush.msra.mxu0 0.0
  %2352 = vmatpush.msra.mxu0 0.0
  %2353 = vmatpush.msra.mxu0 0.0
  %2354 = vmatpush.msra.mxu0 0.0
  %2355 = vmatpush.msra.mxu0 0.0
  %2356 = vmatpush.msra.mxu0 0.0
  %2357 = vmatpush.msra.mxu0 0.0
  %2358 = vmatpush.msra.mxu0 0.0
  %2359 = vmatpush.msra.mxu0 0.0
  %2360 = vmatpush.msra.mxu0 0.0
  %2361 = vmatpush.msra.mxu0 0.0
  %2362 = vmatpush.msra.mxu0 0.0
  %2363 = vmatpush.msra.mxu0 0.0
  %2364 = vmatpush.msra.mxu0 %v2327
  %2365 = vmatmul.f32.gmra.mxu0 %v2323
  %v2366 = vpop.f32.mrf.mxu0
  %v2367 = vadd.f32 0.0, %v2366
  %2368 = vdwg.mxu0
  %v2369 = vadd.f32 %v2307, %v2347
  %v2370 = vadd.f32 %v2308, %v2367
  %s2371 = scalar_lea.vmem %s6, 16
  %2372 = vst [vmem:[%s2371] sm:$0xff] %v2369
  %2373 = vst [vmem:[%s2371 + $0x8] sm:$0xff] %v2370
  // Predicated region
  $region26: #{cru_pallas.1} parent=0 // pred_check
    _
  $region27: #{cru_pallas.1} parent=0 // pred_check_branch
    %2375 = sbr.rel (0) target = $region29
  $region28: #{cru_pallas.1} parent=0 // pred_region
    _
  $region29: #{cru_pallas.1} parent=0 // pred_fallthru
    _
  // Predicated region
  $region30: #{cru_pallas.1} parent=0 // pred_check
    _
  $region31: #{cru_pallas.1} parent=0 // pred_check_branch
    %2377 = sbr.rel (0) target = $region33
  $region32: #{cru_pallas.1} parent=0 // pred_region
    _
  $region33: #{cru_pallas.1} parent=0 // pred_fallthru
    _

</llo_original>
